<compile_context>
chip_gen: v7x
topology: tpu7x:2x2x1
jax: 0.10.0
libtpu: 0.0.40
codegen_flags: <defaults>
</compile_context>

<pallas_src>
import functools

import numpy as np
import jax
import jax.numpy as jnp
from jax.experimental import pallas as pl
from jax.experimental.pallas import tpu as pltpu


def _conv_out(n, k, s):
    return (n - k) // s + 1


# --------------------------- conv1: tiled matmul kernel ---------------------------

def _conv1_kernel(w_ref, p_ref, b_ref, o_ref):
    # (Cout, K) @ (K, TM): bf16 operands, f32 accumulate, f32 epilogue, bf16 store.
    acc = jnp.dot(w_ref[...], p_ref[...], preferred_element_type=jnp.float32)
    acc = acc + b_ref[...]                      # (Cout, 1) broadcasts over lanes
    o_ref[...] = jnp.maximum(acc, 0.0).astype(o_ref.dtype)


def conv1_matmul_relu(w_mat, p, b_col):
    """out(Cout, M) = relu(W(Cout,K) @ patches^T(K,M) + b); bf16 out, M lane-dense."""
    Cout, K = w_mat.shape
    _, M = p.shape
    if M > 1024:
        # Even 2-way split of the M grid for v7x's 2 TensorCores (rounded to 128
        # lanes).  Neutral on single-core v5e/v6e, where the grid is sequential.
        block_m = (((M + 1) // 2 + 127) // 128) * 128
    else:
        block_m = M
    grid_m = (M + block_m - 1) // block_m
    return pl.pallas_call(
        _conv1_kernel,
        out_shape=jax.ShapeDtypeStruct((Cout, M), jnp.bfloat16),
        grid=(grid_m,),
        in_specs=[
            pl.BlockSpec((Cout, K), lambda i: (0, 0)),
            pl.BlockSpec((K, block_m), lambda i: (0, i)),
            pl.BlockSpec((Cout, 1), lambda i: (0, 0)),
        ],
        out_specs=pl.BlockSpec((Cout, block_m), lambda i: (0, i)),
        compiler_params=pltpu.CompilerParams(
            dimension_semantics=("parallel",)),
    )(w_mat, p, b_col)


# --------------- fused tail: conv2 + conv3 + conv4 + pool + fc + head --------------

def _tail_kernel(p2_ref, w2_ref, b2_ref, s3_ref, w3_ref, b3_ref,
                 s4_ref, w4_ref, b4_ref, wfc_ref, bfc_ref, wmv_ref, bmv_ref,
                 eps_ref, z_ref, kl_ref,
                 *, c2, c3, c4, m3, m4, n3, n4, latent, s4_spatial, batch):
    f32 = jnp.float32
    # conv2: (M2, K2) @ (K2, C2) + b, ReLU         (bf16 operands, f32 accumulate)
    out2 = jnp.dot(p2_ref[...], w2_ref[...], preferred_element_type=f32)
    out2 = jnp.maximum(out2 + b2_ref[...], 0.0)                      # (M2, C2) f32

    # conv3: in-kernel im2col.  One one-hot matmul gathers all 9 shifted windows
    # of the VMEM-resident conv2 activation; the conv is then a sum over kernel
    # offsets of small dense matmuls (no strided slicing, no HBM patches).
    r3 = jnp.dot(s3_ref[...].astype(f32), out2,
                 preferred_element_type=f32)                         # (9*M3, C2)
    out3 = jnp.zeros((m3, c3), f32) + b3_ref[...]
    for k in range(n3):
        out3 = out3 + jnp.dot(r3[k * m3:(k + 1) * m3, :],
                              w3_ref[k * c2:(k + 1) * c2, :],
                              preferred_element_type=f32)
    out3 = jnp.maximum(out3, 0.0)                                    # (M3, C3)

    # conv4 (k=4): same scheme, 16 offsets; output (B*S, C4=128) is lane-dense.
    r4 = jnp.dot(s4_ref[...].astype(f32), out3,
                 preferred_element_type=f32)                         # (16*M4, C3)
    out4 = jnp.zeros((m4, c4), f32) + b4_ref[...]
    for k in range(n4):
        out4 = out4 + jnp.dot(r4[k * m4:(k + 1) * m4, :],
                              w4_ref[k * c3:(k + 1) * c3, :],
                              preferred_element_type=f32)
    out4 = jnp.maximum(out4, 0.0)                                    # (B*S, C4)

    # adaptive_avg_pool2d(., 1): per-batch mean over the S conv4 spatial
    # positions (identity when S == 1, which is the case at the demo shapes).
    if s4_spatial == 1:
        feat = out4
    else:
        feat = jnp.concatenate(
            [jnp.mean(out4[b * s4_spatial:(b + 1) * s4_spatial, :],
                      axis=0, keepdims=True) for b in range(batch)], axis=0)

    # fc (no activation), then to_mean | to_var stacked into one matmul.
    h = jnp.dot(feat, wfc_ref[...], preferred_element_type=f32) + bfc_ref[...]  # (B, D2)
    mv = jnp.dot(h, wmv_ref[...], preferred_element_type=f32) + bmv_ref[...]    # (B, 2L)
    mu = mv[:, :latent]
    lv = mv[:, latent:]
    # reparametrization: z = mu + exp(log_var / 2) * eps
    z_ref[...] = mu + jnp.exp(lv * 0.5) * eps_ref[...]
    # kl = sum_b sum_d -0.5 * (1 + log_var - mu^2 - exp(log_var))
    kl_ref[...] = jnp.sum(-0.5 * (1.0 + lv - mu * mu - jnp.exp(lv)),
                          axis=(0, 1), keepdims=True)


def tail_fused(p2, sel3, sel4, prep, eps):
    c2 = prep["w2t"].shape[1]
    c3 = prep["w3p"].shape[1]
    c4 = prep["w4p"].shape[1]
    n3 = prep["w3p"].shape[0] // c2
    n4 = prep["w4p"].shape[0] // c3
    m3 = sel3.shape[0] // n3
    m4 = sel4.shape[0] // n4
    batch, latent = eps.shape
    s4_spatial = m4 // batch
    kernel = functools.partial(
        _tail_kernel, c2=c2, c3=c3, c4=c4, m3=m3, m4=m4, n3=n3, n4=n4,
        latent=latent, s4_spatial=s4_spatial, batch=batch)
    inputs = (p2, prep["w2t"], prep["b2"], sel3, prep["w3p"], prep["b3"],
              sel4, prep["w4p"], prep["b4"], prep["wfct"], prep["bfc"],
              prep["wmvt"], prep["bmv"], eps)
    z, kl = pl.pallas_call(
        kernel,
        out_shape=(jax.ShapeDtypeStruct((batch, latent), jnp.float32),
                   jax.ShapeDtypeStruct((1, 1), jnp.float32)),
        grid=(1,),
        in_specs=[pl.BlockSpec(a.shape, lambda i: (0, 0)) for a in inputs],
        out_specs=(pl.BlockSpec((batch, latent), lambda i: (0, 0)),
                   pl.BlockSpec((1, 1), lambda i: (0, 0))),
        compiler_params=pltpu.CompilerParams(
            dimension_semantics=("arbitrary",)),
    )(*inputs)
    return z, kl


# ------------------------------- parameters / plan -------------------------------

def init_encoder_params(key, latent_dims, size):
    """PyTorch-default (uniform +-1/sqrt(fan_in)) initialisation."""
    ndf = size

    def conv_p(k, cout, cin, ksz):
        k1, k2 = jax.random.split(k)
        bound = 1.0 / float(np.sqrt(cin * ksz * ksz))
        w = jax.random.uniform(k1, (cout, cin, ksz, ksz), jnp.float32, -bound, bound)
        b = jax.random.uniform(k2, (cout,), jnp.float32, -bound, bound)
        return w, b

    def lin_p(k, cin, cout):
        k1, k2 = jax.random.split(k)
        bound = 1.0 / float(np.sqrt(cin))
        w = jax.random.uniform(k1, (cout, cin), jnp.float32, -bound, bound)
        b = jax.random.uniform(k2, (cout,), jnp.float32, -bound, bound)
        return w, b

    keys = jax.random.split(key, 7)
    return {
        "conv1": conv_p(keys[0], ndf, 3, 3),
        "conv2": conv_p(keys[1], ndf * 2, ndf, 3),
        "conv3": conv_p(keys[2], ndf * 4, ndf * 2, 3),
        "conv4": conv_p(keys[3], ndf * 16, ndf * 4, 4),
        "fc": lin_p(keys[4], ndf * 16, ndf * 32),
        "to_mean": lin_p(keys[5], ndf * 32, latent_dims),
        "to_var": lin_p(keys[6], ndf * 32, latent_dims),
    }


def prepare_params(params):
    """One-time re-layout / pre-cast of weights into kernel-ready form."""
    w1, b1 = params["conv1"]
    w2, b2 = params["conv2"]
    w3, b3 = params["conv3"]
    w4, b4 = params["conv4"]
    w_fc, b_fc = params["fc"]
    w_m, b_m = params["to_mean"]
    w_v, b_v = params["to_var"]
    c1, c2, c3, c4 = w1.shape[0], w2.shape[0], w3.shape[0], w4.shape[0]
    return {
        # conv1: (Cout, K) matmul form, bf16 MXU operands.
        "w1": w1.reshape(c1, -1).astype(jnp.bfloat16),
        "b1": b1.reshape(c1, 1).astype(jnp.float32),
        # conv2: sample-major (K, Cout), rows ordered (cin, i, j).
        "w2t": w2.reshape(c2, -1).T.astype(jnp.bfloat16),
        "b2": b2.reshape(1, c2).astype(jnp.float32),
        # conv3 / conv4: rows ordered (i, j, cin) to match the in-kernel offset blocks.
        "w3p": jnp.transpose(w3, (2, 3, 1, 0)).reshape(-1, c3).astype(jnp.float32),
        "b3": b3.reshape(1, c3).astype(jnp.float32),
        "w4p": jnp.transpose(w4, (2, 3, 1, 0)).reshape(-1, c4).astype(jnp.float32),
        "b4": b4.reshape(1, c4).astype(jnp.float32),
        # head, sample-major so C4=128 / D2=256 are lane axes.
        "wfct": w_fc.T.astype(jnp.float32),
        "bfc": b_fc.reshape(1, -1).astype(jnp.float32),
        "wmvt": jnp.concatenate([w_m, w_v], axis=0).T.astype(jnp.float32),
        "bmv": jnp.concatenate([b_m, b_v], axis=0).reshape(1, -1).astype(jnp.float32),
    }


def build_selection_mats(batch, height, width):
    """Constant one-hot row-selection matrices for the in-kernel im2col of
    conv3 (k=3) and conv4 (k=4).  Row (i*k+j)*Mo + m_out selects input row
    (b, stride*ho + i, stride*wo + j) in (b, h, w) b-major order.  Stored in
    bf16 (0/1 is exact) and upcast inside the kernel."""
    h1, w1 = _conv_out(height, 3, 2), _conv_out(width, 3, 2)
    h2, w2 = _conv_out(h1, 3, 2), _conv_out(w1, 3, 2)
    h3, w3 = _conv_out(h2, 3, 2), _conv_out(w2, 3, 2)
    h4, w4 = _conv_out(h3, 4, 2), _conv_out(w3, 4, 2)

    def sel(hi, wi, ho, wo, k, stride):
        mi = batch * hi * wi
        mo = batch * ho * wo
        s = np.zeros((k * k * mo, mi), dtype=np.float32)
        for i in range(k):
            for j in range(k):
                base = (i * k + j) * mo
                for b in range(batch):
                    for oh in range(ho):
                        for ow in range(wo):
                            r = base + b * ho * wo + oh * wo + ow
                            c = b * hi * wi + (stride * oh + i) * wi + (stride * ow + j)
                            s[r, c] = 1.0
        return jnp.asarray(s, dtype=jnp.bfloat16)

    sel3 = sel(h2, w2, h3, w3, 3, 2)   # (9  * B*H3*W3, B*H2*W2)
    sel4 = sel(h3, w3, h4, w4, 4, 2)   # (16 * B*H4*W4, B*H3*W3)
    return sel3, sel4


# ----------------------------------- forward -----------------------------------

@jax.jit
def encoder_forward(prep, sel3, sel4, x, eps):
    """x: (B, 3, H, W) NCHW; eps: (B, latent).  Returns (z, kl); the PyTorch
    module stores kl on self and returns z."""
    B, cin, H, W = x.shape
    c1 = prep["w1"].shape[0]
    h1, w1 = _conv_out(H, 3, 2), _conv_out(W, 3, 2)
    h2, w2 = _conv_out(h1, 3, 2), _conv_out(w1, 3, 2)

    # conv1 im2col (cheap XLA glue that fuses under jit; bf16 halves patch bytes).
    xc = jnp.transpose(x, (1, 0, 2, 3)).astype(jnp.bfloat16)        # (3, B, H, W)
    cols = [xc[:, :, i:i + 2 * h1:2, j:j + 2 * w1:2]
            for i in range(3) for j in range(3)]
    p1 = jnp.stack(cols, axis=1).reshape(cin * 9, B * h1 * w1)      # (27, M1)
    x1 = conv1_matmul_relu(prep["w1"], p1, prep["b1"])              # (C1, M1) bf16

    # conv2 im2col from the bf16 activation (activation stays bf16 end to end).
    x1 = x1.reshape(c1, B, h1, w1)
    cols2 = [x1[:, :, i:i + 2 * h2:2, j:j + 2 * w2:2]
             for i in range(3) for j in range(3)]
    p2 = jnp.stack(cols2, axis=1)                                   # (C1, 9, B, H2, W2)
    p2 = jnp.transpose(p2, (2, 3, 4, 0, 1)).reshape(B * h2 * w2, c1 * 9)

    # conv2..conv4 + pool + fc + to_mean|to_var + reparametrization + KL: ONE kernel.
    z, kl = tail_fused(p2, sel3, sel4, prep, eps)
    return z, kl[0, 0]


if __name__ == "__main__":
    latent_dims = 4
    size = 8                      # ndf; decoupled from image spatial size
    B, H, W = 2, 48, 48           # 48 -> 23 -> 11 -> 5 -> 1 through the conv stack

    key = jax.random.PRNGKey(0)
    pkey, xkey, ekey = jax.random.split(key, 3)
    params = init_encoder_params(pkey, latent_dims, size)
    prep = prepare_params(params)
    sel3, sel4 = build_selection_mats(B, H, W)

    x = jax.random.normal(xkey, (B, 3, H, W), jnp.float32)
    # TODO(synk): torch.randn_like's RNG stream cannot be bit-matched; eps is
    # drawn with jax.random here and consumed inside the fused tail kernel.
    eps = jax.random.normal(ekey, (B, latent_dims), jnp.float32)

    z, kl = encoder_forward(prep, sel3, sel4, x, eps)
    jax.block_until_ready((z, kl))
    assert z.shape == (B, latent_dims)
    assert kl.shape == ()
    assert bool(jnp.all(jnp.isfinite(z))) and bool(jnp.isfinite(kl))
    print("KERNEL_OK")
</pallas_src>

<mosaic_0001>
module attributes {stable_mosaic.version = 11 : i64} {
  func.func @_conv1_kernel(%arg0: i32, %arg1: memref<8x27xbf16, #tpu.memory_space<vmem>>, %arg2: memref<27x640xbf16, #tpu.memory_space<vmem>>, %arg3: memref<8x1xf32, #tpu.memory_space<vmem>>, %arg4: memref<8x640xbf16, #tpu.memory_space<vmem>>) attributes {dimension_semantics = [#tpu.dimension_semantics<parallel>], iteration_bounds = array<i64: 2>, scalar_prefetch = 0 : i64, scratch_operands = 0 : i64, tpu.core_type = #tpu.core_type<tc>, window_params = [{pipeline_mode = #tpu.pipeline_mode<synchronous>, transform_indices = @transform_0, window_bounds = array<i64: 8, 27>}, {transform_indices = @transform_1, window_bounds = array<i64: 27, 640>}, {pipeline_mode = #tpu.pipeline_mode<synchronous>, transform_indices = @transform_2, window_bounds = array<i64: 8, 1>}, {transform_indices = @transform_3, window_bounds = array<i64: 8, 640>}]} {
    %c0 = arith.constant 0 : index
    %c0_0 = arith.constant 0 : index
    %0 = vector.load %arg1[%c0, %c0_0] : memref<8x27xbf16, #tpu.memory_space<vmem>>, vector<8x27xbf16>
    %c0_1 = arith.constant 0 : index
    %c0_2 = arith.constant 0 : index
    %1 = vector.load %arg2[%c0_1, %c0_2] : memref<27x640xbf16, #tpu.memory_space<vmem>>, vector<27x640xbf16>
    %cst = arith.constant dense<0.000000e+00> : vector<8x640xf32>
    %2 = tpu.matmul %0, %1, %cst {dimension_numbers = #tpu.dot_dimension_numbers<[1], [0], [0], [1], [0, 0, 1, 1], [], []>} : vector<8x27xbf16>, vector<27x640xbf16>, vector<8x640xf32> -> vector<8x640xf32>
    %c0_3 = arith.constant 0 : index
    %c0_4 = arith.constant 0 : index
    %3 = vector.load %arg3[%c0_3, %c0_4] : memref<8x1xf32, #tpu.memory_space<vmem>>, vector<8x1xf32>
    %4 = vector.broadcast %3 : vector<8x1xf32> to vector<8x640xf32>
    %5 = arith.addf %2, %4 : vector<8x640xf32>
    %cst_5 = arith.constant 0.000000e+00 : f32
    %6 = vector.broadcast %cst_5 : f32 to vector<8x640xf32>
    %7 = arith.maximumf %5, %6 : vector<8x640xf32>
    %8 = arith.truncf %7 : vector<8x640xf32> to vector<8x640xbf16>
    %c0_6 = arith.constant 0 : index
    %c0_7 = arith.constant 0 : index
    %9 = vector.load %arg4[%c0_6, %c0_7] : memref<8x640xbf16, #tpu.memory_space<vmem>>, vector<8x640xbf16>
    tpu.vector_store %arg4[%c0_6, %c0_7], %8 {strides = array<i32>} : memref<8x640xbf16, #tpu.memory_space<vmem>>, vector<8x640xbf16>,
    return
  }
  func.func @transform_0(%arg0: i32) -> (i32, i32) {
    %c0_i32 = arith.constant 0 : i32
    %c0_i32_0 = arith.constant 0 : i32
    %c0_i32_1 = arith.constant 0 : i32
    return %c0_i32, %c0_i32_0 : i32, i32
  }
  func.func @transform_1(%arg0: i32) -> (i32, i32) {
    %c0_i32 = arith.constant 0 : i32
    %c0_i32_0 = arith.constant 0 : i32
    return %c0_i32, %arg0 : i32, i32
  }
  func.func @transform_2(%arg0: i32) -> (i32, i32) {
    %c0_i32 = arith.constant 0 : i32
    %c0_i32_0 = arith.constant 0 : i32
    %c0_i32_1 = arith.constant 0 : i32
    return %c0_i32, %c0_i32_0 : i32, i32
  }
  func.func @transform_3(%arg0: i32) -> (i32, i32) {
    %c0_i32 = arith.constant 0 : i32
    %c0_i32_0 = arith.constant 0 : i32
    return %c0_i32, %arg0 : i32, i32
  }
}

module attributes {stable_mosaic.version = 11 : i64} {
  func.func @_tail_kernel(%arg0: i32, %arg1: memref<242x72xbf16, #tpu.memory_space<vmem>>, %arg2: memref<72x16xbf16, #tpu.memory_space<vmem>>, %arg3: memref<1x16xf32, #tpu.memory_space<vmem>>, %arg4: memref<450x242xbf16, #tpu.memory_space<vmem>>, %arg5: memref<144x32xf32, #tpu.memory_space<vmem>>, %arg6: memref<1x32xf32, #tpu.memory_space<vmem>>, %arg7: memref<32x50xbf16, #tpu.memory_space<vmem>>, %arg8: memref<512x128xf32, #tpu.memory_space<vmem>>, %arg9: memref<1x128xf32, #tpu.memory_space<vmem>>, %arg10: memref<128x256xf32, #tpu.memory_space<vmem>>, %arg11: memref<1x256xf32, #tpu.memory_space<vmem>>, %arg12: memref<256x8xf32, #tpu.memory_space<vmem>>, %arg13: memref<1x8xf32, #tpu.memory_space<vmem>>, %arg14: memref<2x4xf32, #tpu.memory_space<vmem>>, %arg15: memref<2x4xf32, #tpu.memory_space<vmem>>, %arg16: memref<1x1xf32, #tpu.memory_space<vmem>>) attributes {dimension_semantics = [#tpu.dimension_semantics<arbitrary>], iteration_bounds = array<i64: 1>, scalar_prefetch = 0 : i64, scratch_operands = 0 : i64, tpu.core_type = #tpu.core_type<tc>, window_params = [{pipeline_mode = #tpu.pipeline_mode<synchronous>, transform_indices = @transform_0, window_bounds = array<i64: 242, 72>}, {pipeline_mode = #tpu.pipeline_mode<synchronous>, transform_indices = @transform_1, window_bounds = array<i64: 72, 16>}, {pipeline_mode = #tpu.pipeline_mode<synchronous>, transform_indices = @transform_2, window_bounds = array<i64: 1, 16>}, {pipeline_mode = #tpu.pipeline_mode<synchronous>, transform_indices = @transform_3, window_bounds = array<i64: 450, 242>}, {pipeline_mode = #tpu.pipeline_mode<synchronous>, transform_indices = @transform_4, window_bounds = array<i64: 144, 32>}, {pipeline_mode = #tpu.pipeline_mode<synchronous>, transform_indices = @transform_5, window_bounds = array<i64: 1, 32>}, {pipeline_mode = #tpu.pipeline_mode<synchronous>, transform_indices = @transform_6, window_bounds = array<i64: 32, 50>}, {pipeline_mode = #tpu.pipeline_mode<synchronous>, transform_indices = @transform_7, window_bounds = array<i64: 512, 128>}, {pipeline_mode = #tpu.pipeline_mode<synchronous>, transform_indices = @transform_8, window_bounds = array<i64: 1, 128>}, {pipeline_mode = #tpu.pipeline_mode<synchronous>, transform_indices = @transform_9, window_bounds = array<i64: 128, 256>}, {pipeline_mode = #tpu.pipeline_mode<synchronous>, transform_indices = @transform_10, window_bounds = array<i64: 1, 256>}, {pipeline_mode = #tpu.pipeline_mode<synchronous>, transform_indices = @transform_11, window_bounds = array<i64: 256, 8>}, {pipeline_mode = #tpu.pipeline_mode<synchronous>, transform_indices = @transform_12, window_bounds = array<i64: 1, 8>}, {pipeline_mode = #tpu.pipeline_mode<synchronous>, transform_indices = @transform_13, window_bounds = array<i64: 2, 4>}, {pipeline_mode = #tpu.pipeline_mode<synchronous>, transform_indices = @transform_14, window_bounds = array<i64: 2, 4>}, {pipeline_mode = #tpu.pipeline_mode<synchronous>, transform_indices = @transform_15, window_bounds = array<i64: 1, 1>}]} {
    %c0 = arith.constant 0 : index
    %c0_0 = arith.constant 0 : index
    %0 = vector.load %arg1[%c0, %c0_0] : memref<242x72xbf16, #tpu.memory_space<vmem>>, vector<242x72xbf16>
    %c0_1 = arith.constant 0 : index
    %c0_2 = arith.constant 0 : index
    %1 = vector.load %arg2[%c0_1, %c0_2] : memref<72x16xbf16, #tpu.memory_space<vmem>>, vector<72x16xbf16>
    %cst = arith.constant dense<0.000000e+00> : vector<242x16xf32>
    %2 = tpu.matmul %0, %1, %cst {dimension_numbers = #tpu.dot_dimension_numbers<[1], [0], [0], [1], [0, 0, 1, 1], [], []>} : vector<242x72xbf16>, vector<72x16xbf16>, vector<242x16xf32> -> vector<242x16xf32>
    %c0_3 = arith.constant 0 : index
    %c0_4 = arith.constant 0 : index
    %3 = vector.load %arg3[%c0_3, %c0_4] : memref<1x16xf32, #tpu.memory_space<vmem>>, vector<1x16xf32>
    %4 = vector.broadcast %3 : vector<1x16xf32> to vector<242x16xf32>
    %5 = arith.addf %2, %4 : vector<242x16xf32>
    %cst_5 = arith.constant 0.000000e+00 : f32
    %6 = vector.broadcast %cst_5 : f32 to vector<242x16xf32>
    %7 = arith.maximumf %5, %6 : vector<242x16xf32>
    %c0_6 = arith.constant 0 : index
    %c0_7 = arith.constant 0 : index
    %8 = vector.load %arg4[%c0_6, %c0_7] : memref<450x242xbf16, #tpu.memory_space<vmem>>, vector<450x242xbf16>
    %9 = arith.extf %8 : vector<450x242xbf16> to vector<450x242xf32>
    %cst_8 = arith.constant dense<0.000000e+00> : vector<450x16xf32>
    %10 = tpu.matmul %9, %7, %cst_8 {dimension_numbers = #tpu.dot_dimension_numbers<[1], [0], [0], [1], [0, 0, 1, 1], [], []>} : vector<450x242xf32>, vector<242x16xf32>, vector<450x16xf32> -> vector<450x16xf32>
    %cst_9 = arith.constant 0.000000e+00 : f32
    %11 = vector.broadcast %cst_9 : f32 to vector<50x32xf32>
    %c0_10 = arith.constant 0 : index
    %c0_11 = arith.constant 0 : index
    %12 = vector.load %arg6[%c0_10, %c0_11] : memref<1x32xf32, #tpu.memory_space<vmem>>, vector<1x32xf32>
    %13 = vector.broadcast %12 : vector<1x32xf32> to vector<50x32xf32>
    %14 = arith.addf %11, %13 : vector<50x32xf32>
    %15 = vector.extract_strided_slice %10 {offsets = [0, 0], sizes = [50, 16], strides = [1, 1]} : vector<450x16xf32> to vector<50x16xf32>
    %c0_12 = arith.constant 0 : index
    %c0_13 = arith.constant 0 : index
    %16 = vector.load %arg5[%c0_12, %c0_13] : memref<144x32xf32, #tpu.memory_space<vmem>>, vector<16x32xf32>
    %cst_14 = arith.constant dense<0.000000e+00> : vector<50x32xf32>
    %17 = tpu.matmul %15, %16, %cst_14 {dimension_numbers = #tpu.dot_dimension_numbers<[1], [0], [0], [1], [0, 0, 1, 1], [], []>} : vector<50x16xf32>, vector<16x32xf32>, vector<50x32xf32> -> vector<50x32xf32>
    %18 = arith.addf %14, %17 : vector<50x32xf32>
    %19 = vector.extract_strided_slice %10 {offsets = [50, 0], sizes = [50, 16], strides = [1, 1]} : vector<450x16xf32> to vector<50x16xf32>
    %c16 = arith.constant 16 : index
    %c0_15 = arith.constant 0 : index
    %20 = vector.load %arg5[%c16, %c0_15] : memref<144x32xf32, #tpu.memory_space<vmem>>, vector<16x32xf32>
    %cst_16 = arith.constant dense<0.000000e+00> : vector<50x32xf32>
    %21 = tpu.matmul %19, %20, %cst_16 {dimension_numbers = #tpu.dot_dimension_numbers<[1], [0], [0], [1], [0, 0, 1, 1], [], []>} : vector<50x16xf32>, vector<16x32xf32>, vector<50x32xf32> -> vector<50x32xf32>
    %22 = arith.addf %18, %21 : vector<50x32xf32>
    %23 = vector.extract_strided_slice %10 {offsets = [100, 0], sizes = [50, 16], strides = [1, 1]} : vector<450x16xf32> to vector<50x16xf32>
    %c32 = arith.constant 32 : index
    %c0_17 = arith.constant 0 : index
    %24 = vector.load %arg5[%c32, %c0_17] : memref<144x32xf32, #tpu.memory_space<vmem>>, vector<16x32xf32>
    %cst_18 = arith.constant dense<0.000000e+00> : vector<50x32xf32>
    %25 = tpu.matmul %23, %24, %cst_18 {dimension_numbers = #tpu.dot_dimension_numbers<[1], [0], [0], [1], [0, 0, 1, 1], [], []>} : vector<50x16xf32>, vector<16x32xf32>, vector<50x32xf32> -> vector<50x32xf32>
    %26 = arith.addf %22, %25 : vector<50x32xf32>
    %27 = vector.extract_strided_slice %10 {offsets = [150, 0], sizes = [50, 16], strides = [1, 1]} : vector<450x16xf32> to vector<50x16xf32>
    %c48 = arith.constant 48 : index
    %c0_19 = arith.constant 0 : index
    %28 = vector.load %arg5[%c48, %c0_19] : memref<144x32xf32, #tpu.memory_space<vmem>>, vector<16x32xf32>
    %cst_20 = arith.constant dense<0.000000e+00> : vector<50x32xf32>
    %29 = tpu.matmul %27, %28, %cst_20 {dimension_numbers = #tpu.dot_dimension_numbers<[1], [0], [0], [1], [0, 0, 1, 1], [], []>} : vector<50x16xf32>, vector<16x32xf32>, vector<50x32xf32> -> vector<50x32xf32>
    %30 = arith.addf %26, %29 : vector<50x32xf32>
    %31 = vector.extract_strided_slice %10 {offsets = [200, 0], sizes = [50, 16], strides = [1, 1]} : vector<450x16xf32> to vector<50x16xf32>
    %c64 = arith.constant 64 : index
    %c0_21 = arith.constant 0 : index
    %32 = vector.load %arg5[%c64, %c0_21] : memref<144x32xf32, #tpu.memory_space<vmem>>, vector<16x32xf32>
    %cst_22 = arith.constant dense<0.000000e+00> : vector<50x32xf32>
    %33 = tpu.matmul %31, %32, %cst_22 {dimension_numbers = #tpu.dot_dimension_numbers<[1], [0], [0], [1], [0, 0, 1, 1], [], []>} : vector<50x16xf32>, vector<16x32xf32>, vector<50x32xf32> -> vector<50x32xf32>
    %34 = arith.addf %30, %33 : vector<50x32xf32>
    %35 = vector.extract_strided_slice %10 {offsets = [250, 0], sizes = [50, 16], strides = [1, 1]} : vector<450x16xf32> to vector<50x16xf32>
    %c80 = arith.constant 80 : index
    %c0_23 = arith.constant 0 : index
    %36 = vector.load %arg5[%c80, %c0_23] : memref<144x32xf32, #tpu.memory_space<vmem>>, vector<16x32xf32>
    %cst_24 = arith.constant dense<0.000000e+00> : vector<50x32xf32>
    %37 = tpu.matmul %35, %36, %cst_24 {dimension_numbers = #tpu.dot_dimension_numbers<[1], [0], [0], [1], [0, 0, 1, 1], [], []>} : vector<50x16xf32>, vector<16x32xf32>, vector<50x32xf32> -> vector<50x32xf32>
    %38 = arith.addf %34, %37 : vector<50x32xf32>
    %39 = vector.extract_strided_slice %10 {offsets = [300, 0], sizes = [50, 16], strides = [1, 1]} : vector<450x16xf32> to vector<50x16xf32>
    %c96 = arith.constant 96 : index
    %c0_25 = arith.constant 0 : index
    %40 = vector.load %arg5[%c96, %c0_25] : memref<144x32xf32, #tpu.memory_space<vmem>>, vector<16x32xf32>
    %cst_26 = arith.constant dense<0.000000e+00> : vector<50x32xf32>
    %41 = tpu.matmul %39, %40, %cst_26 {dimension_numbers = #tpu.dot_dimension_numbers<[1], [0], [0], [1], [0, 0, 1, 1], [], []>} : vector<50x16xf32>, vector<16x32xf32>, vector<50x32xf32> -> vector<50x32xf32>
    %42 = arith.addf %38, %41 : vector<50x32xf32>
    %43 = vector.extract_strided_slice %10 {offsets = [350, 0], sizes = [50, 16], strides = [1, 1]} : vector<450x16xf32> to vector<50x16xf32>
    %c112 = arith.constant 112 : index
    %c0_27 = arith.constant 0 : index
    %44 = vector.load %arg5[%c112, %c0_27] : memref<144x32xf32, #tpu.memory_space<vmem>>, vector<16x32xf32>
    %cst_28 = arith.constant dense<0.000000e+00> : vector<50x32xf32>
    %45 = tpu.matmul %43, %44, %cst_28 {dimension_numbers = #tpu.dot_dimension_numbers<[1], [0], [0], [1], [0, 0, 1, 1], [], []>} : vector<50x16xf32>, vector<16x32xf32>, vector<50x32xf32> -> vector<50x32xf32>
    %46 = arith.addf %42, %45 : vector<50x32xf32>
    %47 = vector.extract_strided_slice %10 {offsets = [400, 0], sizes = [50, 16], strides = [1, 1]} : vector<450x16xf32> to vector<50x16xf32>
    %c128 = arith.constant 128 : index
    %c0_29 = arith.constant 0 : index
    %48 = vector.load %arg5[%c128, %c0_29] : memref<144x32xf32, #tpu.memory_space<vmem>>, vector<16x32xf32>
    %cst_30 = arith.constant dense<0.000000e+00> : vector<50x32xf32>
    %49 = tpu.matmul %47, %48, %cst_30 {dimension_numbers = #tpu.dot_dimension_numbers<[1], [0], [0], [1], [0, 0, 1, 1], [], []>} : vector<50x16xf32>, vector<16x32xf32>, vector<50x32xf32> -> vector<50x32xf32>
    %50 = arith.addf %46, %49 : vector<50x32xf32>
    %cst_31 = arith.constant 0.000000e+00 : f32
    %51 = vector.broadcast %cst_31 : f32 to vector<50x32xf32>
    %52 = arith.maximumf %50, %51 : vector<50x32xf32>
    %c0_32 = arith.constant 0 : index
    %c0_33 = arith.constant 0 : index
    %53 = vector.load %arg7[%c0_32, %c0_33] : memref<32x50xbf16, #tpu.memory_space<vmem>>, vector<32x50xbf16>
    %54 = arith.extf %53 : vector<32x50xbf16> to vector<32x50xf32>
    %cst_34 = arith.constant dense<0.000000e+00> : vector<32x32xf32>
    %55 = tpu.matmul %54, %52, %cst_34 {dimension_numbers = #tpu.dot_dimension_numbers<[1], [0], [0], [1], [0, 0, 1, 1], [], []>} : vector<32x50xf32>, vector<50x32xf32>, vector<32x32xf32> -> vector<32x32xf32>
    %cst_35 = arith.constant 0.000000e+00 : f32
    %56 = vector.broadcast %cst_35 : f32 to vector<2x128xf32>
    %c0_36 = arith.constant 0 : index
    %c0_37 = arith.constant 0 : index
    %57 = vector.load %arg9[%c0_36, %c0_37] : memref<1x128xf32, #tpu.memory_space<vmem>>, vector<1x128xf32>
    %58 = vector.broadcast %57 : vector<1x128xf32> to vector<2x128xf32>
    %59 = arith.addf %56, %58 : vector<2x128xf32>
    %60 = vector.extract_strided_slice %55 {offsets = [0, 0], sizes = [2, 32], strides = [1, 1]} : vector<32x32xf32> to vector<2x32xf32>
    %c0_38 = arith.constant 0 : index
    %c0_39 = arith.constant 0 : index
    %61 = vector.load %arg8[%c0_38, %c0_39] : memref<512x128xf32, #tpu.memory_space<vmem>>, vector<32x128xf32>
    %cst_40 = arith.constant dense<0.000000e+00> : vector<2x128xf32>
    %62 = tpu.matmul %60, %61, %cst_40 {dimension_numbers = #tpu.dot_dimension_numbers<[1], [0], [0], [1], [0, 0, 1, 1], [], []>} : vector<2x32xf32>, vector<32x128xf32>, vector<2x128xf32> -> vector<2x128xf32>
    %63 = arith.addf %59, %62 : vector<2x128xf32>
    %64 = vector.extract_strided_slice %55 {offsets = [2, 0], sizes = [2, 32], strides = [1, 1]} : vector<32x32xf32> to vector<2x32xf32>
    %c32_41 = arith.constant 32 : index
    %c0_42 = arith.constant 0 : index
    %65 = vector.load %arg8[%c32_41, %c0_42] : memref<512x128xf32, #tpu.memory_space<vmem>>, vector<32x128xf32>
    %cst_43 = arith.constant dense<0.000000e+00> : vector<2x128xf32>
    %66 = tpu.matmul %64, %65, %cst_43 {dimension_numbers = #tpu.dot_dimension_numbers<[1], [0], [0], [1], [0, 0, 1, 1], [], []>} : vector<2x32xf32>, vector<32x128xf32>, vector<2x128xf32> -> vector<2x128xf32>
    %67 = arith.addf %63, %66 : vector<2x128xf32>
    %68 = vector.extract_strided_slice %55 {offsets = [4, 0], sizes = [2, 32], strides = [1, 1]} : vector<32x32xf32> to vector<2x32xf32>
    %c64_44 = arith.constant 64 : index
    %c0_45 = arith.constant 0 : index
    %69 = vector.load %arg8[%c64_44, %c0_45] : memref<512x128xf32, #tpu.memory_space<vmem>>, vector<32x128xf32>
    %cst_46 = arith.constant dense<0.000000e+00> : vector<2x128xf32>
    %70 = tpu.matmul %68, %69, %cst_46 {dimension_numbers = #tpu.dot_dimension_numbers<[1], [0], [0], [1], [0, 0, 1, 1], [], []>} : vector<2x32xf32>, vector<32x128xf32>, vector<2x128xf32> -> vector<2x128xf32>
    %71 = arith.addf %67, %70 : vector<2x128xf32>
    %72 = vector.extract_strided_slice %55 {offsets = [6, 0], sizes = [2, 32], strides = [1, 1]} : vector<32x32xf32> to vector<2x32xf32>
    %c96_47 = arith.constant 96 : index
    %c0_48 = arith.constant 0 : index
    %73 = vector.load %arg8[%c96_47, %c0_48] : memref<512x128xf32, #tpu.memory_space<vmem>>, vector<32x128xf32>
    %cst_49 = arith.constant dense<0.000000e+00> : vector<2x128xf32>
    %74 = tpu.matmul %72, %73, %cst_49 {dimension_numbers = #tpu.dot_dimension_numbers<[1], [0], [0], [1], [0, 0, 1, 1], [], []>} : vector<2x32xf32>, vector<32x128xf32>, vector<2x128xf32> -> vector<2x128xf32>
    %75 = arith.addf %71, %74 : vector<2x128xf32>
    %76 = vector.extract_strided_slice %55 {offsets = [8, 0], sizes = [2, 32], strides = [1, 1]} : vector<32x32xf32> to vector<2x32xf32>
    %c128_50 = arith.constant 128 : index
    %c0_51 = arith.constant 0 : index
    %77 = vector.load %arg8[%c128_50, %c0_51] : memref<512x128xf32, #tpu.memory_space<vmem>>, vector<32x128xf32>
    %cst_52 = arith.constant dense<0.000000e+00> : vector<2x128xf32>
    %78 = tpu.matmul %76, %77, %cst_52 {dimension_numbers = #tpu.dot_dimension_numbers<[1], [0], [0], [1], [0, 0, 1, 1], [], []>} : vector<2x32xf32>, vector<32x128xf32>, vector<2x128xf32> -> vector<2x128xf32>
    %79 = arith.addf %75, %78 : vector<2x128xf32>
    %80 = vector.extract_strided_slice %55 {offsets = [10, 0], sizes = [2, 32], strides = [1, 1]} : vector<32x32xf32> to vector<2x32xf32>
    %c160 = arith.constant 160 : index
    %c0_53 = arith.constant 0 : index
    %81 = vector.load %arg8[%c160, %c0_53] : memref<512x128xf32, #tpu.memory_space<vmem>>, vector<32x128xf32>
    %cst_54 = arith.constant dense<0.000000e+00> : vector<2x128xf32>
    %82 = tpu.matmul %80, %81, %cst_54 {dimension_numbers = #tpu.dot_dimension_numbers<[1], [0], [0], [1], [0, 0, 1, 1], [], []>} : vector<2x32xf32>, vector<32x128xf32>, vector<2x128xf32> -> vector<2x128xf32>
    %83 = arith.addf %79, %82 : vector<2x128xf32>
    %84 = vector.extract_strided_slice %55 {offsets = [12, 0], sizes = [2, 32], strides = [1, 1]} : vector<32x32xf32> to vector<2x32xf32>
    %c192 = arith.constant 192 : index
    %c0_55 = arith.constant 0 : index
    %85 = vector.load %arg8[%c192, %c0_55] : memref<512x128xf32, #tpu.memory_space<vmem>>, vector<32x128xf32>
    %cst_56 = arith.constant dense<0.000000e+00> : vector<2x128xf32>
    %86 = tpu.matmul %84, %85, %cst_56 {dimension_numbers = #tpu.dot_dimension_numbers<[1], [0], [0], [1], [0, 0, 1, 1], [], []>} : vector<2x32xf32>, vector<32x128xf32>, vector<2x128xf32> -> vector<2x128xf32>
    %87 = arith.addf %83, %86 : vector<2x128xf32>
    %88 = vector.extract_strided_slice %55 {offsets = [14, 0], sizes = [2, 32], strides = [1, 1]} : vector<32x32xf32> to vector<2x32xf32>
    %c224 = arith.constant 224 : index
    %c0_57 = arith.constant 0 : index
    %89 = vector.load %arg8[%c224, %c0_57] : memref<512x128xf32, #tpu.memory_space<vmem>>, vector<32x128xf32>
    %cst_58 = arith.constant dense<0.000000e+00> : vector<2x128xf32>
    %90 = tpu.matmul %88, %89, %cst_58 {dimension_numbers = #tpu.dot_dimension_numbers<[1], [0], [0], [1], [0, 0, 1, 1], [], []>} : vector<2x32xf32>, vector<32x128xf32>, vector<2x128xf32> -> vector<2x128xf32>
    %91 = arith.addf %87, %90 : vector<2x128xf32>
    %92 = vector.extract_strided_slice %55 {offsets = [16, 0], sizes = [2, 32], strides = [1, 1]} : vector<32x32xf32> to vector<2x32xf32>
    %c256 = arith.constant 256 : index
    %c0_59 = arith.constant 0 : index
    %93 = vector.load %arg8[%c256, %c0_59] : memref<512x128xf32, #tpu.memory_space<vmem>>, vector<32x128xf32>
    %cst_60 = arith.constant dense<0.000000e+00> : vector<2x128xf32>
    %94 = tpu.matmul %92, %93, %cst_60 {dimension_numbers = #tpu.dot_dimension_numbers<[1], [0], [0], [1], [0, 0, 1, 1], [], []>} : vector<2x32xf32>, vector<32x128xf32>, vector<2x128xf32> -> vector<2x128xf32>
    %95 = arith.addf %91, %94 : vector<2x128xf32>
    %96 = vector.extract_strided_slice %55 {offsets = [18, 0], sizes = [2, 32], strides = [1, 1]} : vector<32x32xf32> to vector<2x32xf32>
    %c288 = arith.constant 288 : index
    %c0_61 = arith.constant 0 : index
    %97 = vector.load %arg8[%c288, %c0_61] : memref<512x128xf32, #tpu.memory_space<vmem>>, vector<32x128xf32>
    %cst_62 = arith.constant dense<0.000000e+00> : vector<2x128xf32>
    %98 = tpu.matmul %96, %97, %cst_62 {dimension_numbers = #tpu.dot_dimension_numbers<[1], [0], [0], [1], [0, 0, 1, 1], [], []>} : vector<2x32xf32>, vector<32x128xf32>, vector<2x128xf32> -> vector<2x128xf32>
    %99 = arith.addf %95, %98 : vector<2x128xf32>
    %100 = vector.extract_strided_slice %55 {offsets = [20, 0], sizes = [2, 32], strides = [1, 1]} : vector<32x32xf32> to vector<2x32xf32>
    %c320 = arith.constant 320 : index
    %c0_63 = arith.constant 0 : index
    %101 = vector.load %arg8[%c320, %c0_63] : memref<512x128xf32, #tpu.memory_space<vmem>>, vector<32x128xf32>
    %cst_64 = arith.constant dense<0.000000e+00> : vector<2x128xf32>
    %102 = tpu.matmul %100, %101, %cst_64 {dimension_numbers = #tpu.dot_dimension_numbers<[1], [0], [0], [1], [0, 0, 1, 1], [], []>} : vector<2x32xf32>, vector<32x128xf32>, vector<2x128xf32> -> vector<2x128xf32>
    %103 = arith.addf %99, %102 : vector<2x128xf32>
    %104 = vector.extract_strided_slice %55 {offsets = [22, 0], sizes = [2, 32], strides = [1, 1]} : vector<32x32xf32> to vector<2x32xf32>
    %c352 = arith.constant 352 : index
    %c0_65 = arith.constant 0 : index
    %105 = vector.load %arg8[%c352, %c0_65] : memref<512x128xf32, #tpu.memory_space<vmem>>, vector<32x128xf32>
    %cst_66 = arith.constant dense<0.000000e+00> : vector<2x128xf32>
    %106 = tpu.matmul %104, %105, %cst_66 {dimension_numbers = #tpu.dot_dimension_numbers<[1], [0], [0], [1], [0, 0, 1, 1], [], []>} : vector<2x32xf32>, vector<32x128xf32>, vector<2x128xf32> -> vector<2x128xf32>
    %107 = arith.addf %103, %106 : vector<2x128xf32>
    %108 = vector.extract_strided_slice %55 {offsets = [24, 0], sizes = [2, 32], strides = [1, 1]} : vector<32x32xf32> to vector<2x32xf32>
    %c384 = arith.constant 384 : index
    %c0_67 = arith.constant 0 : index
    %109 = vector.load %arg8[%c384, %c0_67] : memref<512x128xf32, #tpu.memory_space<vmem>>, vector<32x128xf32>
    %cst_68 = arith.constant dense<0.000000e+00> : vector<2x128xf32>
    %110 = tpu.matmul %108, %109, %cst_68 {dimension_numbers = #tpu.dot_dimension_numbers<[1], [0], [0], [1], [0, 0, 1, 1], [], []>} : vector<2x32xf32>, vector<32x128xf32>, vector<2x128xf32> -> vector<2x128xf32>
    %111 = arith.addf %107, %110 : vector<2x128xf32>
    %112 = vector.extract_strided_slice %55 {offsets = [26, 0], sizes = [2, 32], strides = [1, 1]} : vector<32x32xf32> to vector<2x32xf32>
    %c416 = arith.constant 416 : index
    %c0_69 = arith.constant 0 : index
    %113 = vector.load %arg8[%c416, %c0_69] : memref<512x128xf32, #tpu.memory_space<vmem>>, vector<32x128xf32>
    %cst_70 = arith.constant dense<0.000000e+00> : vector<2x128xf32>
    %114 = tpu.matmul %112, %113, %cst_70 {dimension_numbers = #tpu.dot_dimension_numbers<[1], [0], [0], [1], [0, 0, 1, 1], [], []>} : vector<2x32xf32>, vector<32x128xf32>, vector<2x128xf32> -> vector<2x128xf32>
    %115 = arith.addf %111, %114 : vector<2x128xf32>
    %116 = vector.extract_strided_slice %55 {offsets = [28, 0], sizes = [2, 32], strides = [1, 1]} : vector<32x32xf32> to vector<2x32xf32>
    %c448 = arith.constant 448 : index
    %c0_71 = arith.constant 0 : index
    %117 = vector.load %arg8[%c448, %c0_71] : memref<512x128xf32, #tpu.memory_space<vmem>>, vector<32x128xf32>
    %cst_72 = arith.constant dense<0.000000e+00> : vector<2x128xf32>
    %118 = tpu.matmul %116, %117, %cst_72 {dimension_numbers = #tpu.dot_dimension_numbers<[1], [0], [0], [1], [0, 0, 1, 1], [], []>} : vector<2x32xf32>, vector<32x128xf32>, vector<2x128xf32> -> vector<2x128xf32>
    %119 = arith.addf %115, %118 : vector<2x128xf32>
    %120 = vector.extract_strided_slice %55 {offsets = [30, 0], sizes = [2, 32], strides = [1, 1]} : vector<32x32xf32> to vector<2x32xf32>
    %c480 = arith.constant 480 : index
    %c0_73 = arith.constant 0 : index
    %121 = vector.load %arg8[%c480, %c0_73] : memref<512x128xf32, #tpu.memory_space<vmem>>, vector<32x128xf32>
    %cst_74 = arith.constant dense<0.000000e+00> : vector<2x128xf32>
    %122 = tpu.matmul %120, %121, %cst_74 {dimension_numbers = #tpu.dot_dimension_numbers<[1], [0], [0], [1], [0, 0, 1, 1], [], []>} : vector<2x32xf32>, vector<32x128xf32>, vector<2x128xf32> -> vector<2x128xf32>
    %123 = arith.addf %119, %122 : vector<2x128xf32>
    %cst_75 = arith.constant 0.000000e+00 : f32
    %124 = vector.broadcast %cst_75 : f32 to vector<2x128xf32>
    %125 = arith.maximumf %123, %124 : vector<2x128xf32>
    %c0_76 = arith.constant 0 : index
    %c0_77 = arith.constant 0 : index
    %126 = vector.load %arg10[%c0_76, %c0_77] : memref<128x256xf32, #tpu.memory_space<vmem>>, vector<128x256xf32>
    %cst_78 = arith.constant dense<0.000000e+00> : vector<2x256xf32>
    %127 = tpu.matmul %125, %126, %cst_78 {dimension_numbers = #tpu.dot_dimension_numbers<[1], [0], [0], [1], [0, 0, 1, 1], [], []>} : vector<2x128xf32>, vector<128x256xf32>, vector<2x256xf32> -> vector<2x256xf32>
    %c0_79 = arith.constant 0 : index
    %c0_80 = arith.constant 0 : index
    %128 = vector.load %arg11[%c0_79, %c0_80] : memref<1x256xf32, #tpu.memory_space<vmem>>, vector<1x256xf32>
    %129 = vector.broadcast %128 : vector<1x256xf32> to vector<2x256xf32>
    %130 = arith.addf %127, %129 : vector<2x256xf32>
    %c0_81 = arith.constant 0 : index
    %c0_82 = arith.constant 0 : index
    %131 = vector.load %arg12[%c0_81, %c0_82] : memref<256x8xf32, #tpu.memory_space<vmem>>, vector<256x8xf32>
    %cst_83 = arith.constant dense<0.000000e+00> : vector<2x8xf32>
    %132 = tpu.matmul %130, %131, %cst_83 {dimension_numbers = #tpu.dot_dimension_numbers<[1], [0], [0], [1], [0, 0, 1, 1], [], []>} : vector<2x256xf32>, vector<256x8xf32>, vector<2x8xf32> -> vector<2x8xf32>
    %c0_84 = arith.constant 0 : index
    %c0_85 = arith.constant 0 : index
    %133 = vector.load %arg13[%c0_84, %c0_85] : memref<1x8xf32, #tpu.memory_space<vmem>>, vector<1x8xf32>
    %134 = vector.broadcast %133 : vector<1x8xf32> to vector<2x8xf32>
    %135 = arith.addf %132, %134 : vector<2x8xf32>
    %136 = vector.extract_strided_slice %135 {offsets = [0, 0], sizes = [2, 4], strides = [1, 1]} : vector<2x8xf32> to vector<2x4xf32>
    %137 = vector.extract_strided_slice %135 {offsets = [0, 4], sizes = [2, 4], strides = [1, 1]} : vector<2x8xf32> to vector<2x4xf32>
    %cst_86 = arith.constant 5.000000e-01 : f32
    %138 = vector.broadcast %cst_86 : f32 to vector<2x4xf32>
    %139 = arith.mulf %137, %138 : vector<2x4xf32>
    %140 = math.exp %139 : vector<2x4xf32>
    %c0_87 = arith.constant 0 : index
    %c0_88 = arith.constant 0 : index
    %141 = vector.load %arg14[%c0_87, %c0_88] : memref<2x4xf32, #tpu.memory_space<vmem>>, vector<2x4xf32>
    %142 = arith.mulf %140, %141 : vector<2x4xf32>
    %143 = arith.addf %136, %142 : vector<2x4xf32>
    %c0_89 = arith.constant 0 : index
    %c0_90 = arith.constant 0 : index
    %144 = vector.load %arg15[%c0_89, %c0_90] : memref<2x4xf32, #tpu.memory_space<vmem>>, vector<2x4xf32>
    tpu.vector_store %arg15[%c0_89, %c0_90], %143 {strides = array<i32>} : memref<2x4xf32, #tpu.memory_space<vmem>>, vector<2x4xf32>,
    %cst_91 = arith.constant 1.000000e+00 : f32
    %145 = vector.broadcast %cst_91 : f32 to vector<2x4xf32>
    %146 = arith.addf %145, %137 : vector<2x4xf32>
    %147 = arith.mulf %136, %136 : vector<2x4xf32>
    %148 = arith.subf %146, %147 : vector<2x4xf32>
    %149 = math.exp %137 : vector<2x4xf32>
    %150 = arith.subf %148, %149 : vector<2x4xf32>
    %cst_92 = arith.constant -5.000000e-01 : f32
    %151 = vector.broadcast %cst_92 : f32 to vector<2x4xf32>
    %152 = arith.mulf %151, %150 : vector<2x4xf32>
    %153 = vector.shape_cast %152 : vector<2x4xf32> to vector<1x2x4xf32>
    %cst_93 = arith.constant dense<0.000000e+00> : vector<1xf32>
    %154 = vector.multi_reduction <add>, %153, %cst_93 [1, 2] : vector<1x2x4xf32> to vector<1xf32>
    %155 = vector.shape_cast %154 : vector<1xf32> to vector<1x1x1xf32>
    %156 = vector.extract %155[0, 0, 0] : f32 from vector<1x1x1xf32>
    %157 = vector.broadcast %156 : f32 to vector<1x1xf32>
    %c0_94 = arith.constant 0 : index
    %c0_95 = arith.constant 0 : index
    %158 = vector.load %arg16[%c0_94, %c0_95] : memref<1x1xf32, #tpu.memory_space<vmem>>, vector<1x1xf32>
    tpu.vector_store %arg16[%c0_94, %c0_95], %157 {strides = array<i32>} : memref<1x1xf32, #tpu.memory_space<vmem>>, vector<1x1xf32>,
    return
  }
  func.func @transform_0(%arg0: i32) -> (i32, i32) {
    %c0_i32 = arith.constant 0 : i32
    %c0_i32_0 = arith.constant 0 : i32
    %c0_i32_1 = arith.constant 0 : i32
    return %c0_i32, %c0_i32_0 : i32, i32
  }
  func.func @transform_1(%arg0: i32) -> (i32, i32) {
    %c0_i32 = arith.constant 0 : i32
    %c0_i32_0 = arith.constant 0 : i32
    %c0_i32_1 = arith.constant 0 : i32
    return %c0_i32, %c0_i32_0 : i32, i32
  }
  func.func @transform_2(%arg0: i32) -> (i32, i32) {
    %c0_i32 = arith.constant 0 : i32
    %c0_i32_0 = arith.constant 0 : i32
    %c0_i32_1 = arith.constant 0 : i32
    return %c0_i32, %c0_i32_0 : i32, i32
  }
  func.func @transform_3(%arg0: i32) -> (i32, i32) {
    %c0_i32 = arith.constant 0 : i32
    %c0_i32_0 = arith.constant 0 : i32
    %c0_i32_1 = arith.constant 0 : i32
    return %c0_i32, %c0_i32_0 : i32, i32
  }
  func.func @transform_4(%arg0: i32) -> (i32, i32) {
    %c0_i32 = arith.constant 0 : i32
    %c0_i32_0 = arith.constant 0 : i32
    %c0_i32_1 = arith.constant 0 : i32
    return %c0_i32, %c0_i32_0 : i32, i32
  }
  func.func @transform_5(%arg0: i32) -> (i32, i32) {
    %c0_i32 = arith.constant 0 : i32
    %c0_i32_0 = arith.constant 0 : i32
    %c0_i32_1 = arith.constant 0 : i32
    return %c0_i32, %c0_i32_0 : i32, i32
  }
  func.func @transform_6(%arg0: i32) -> (i32, i32) {
    %c0_i32 = arith.constant 0 : i32
    %c0_i32_0 = arith.constant 0 : i32
    %c0_i32_1 = arith.constant 0 : i32
    return %c0_i32, %c0_i32_0 : i32, i32
  }
  func.func @transform_7(%arg0: i32) -> (i32, i32) {
    %c0_i32 = arith.constant 0 : i32
    %c0_i32_0 = arith.constant 0 : i32
    %c0_i32_1 = arith.constant 0 : i32
    return %c0_i32, %c0_i32_0 : i32, i32
  }
  func.func @transform_8(%arg0: i32) -> (i32, i32) {
    %c0_i32 = arith.constant 0 : i32
    %c0_i32_0 = arith.constant 0 : i32
    %c0_i32_1 = arith.constant 0 : i32
    return %c0_i32, %c0_i32_0 : i32, i32
  }
  func.func @transform_9(%arg0: i32) -> (i32, i32) {
    %c0_i32 = arith.constant 0 : i32
    %c0_i32_0 = arith.constant 0 : i32
    %c0_i32_1 = arith.constant 0 : i32
    return %c0_i32, %c0_i32_0 : i32, i32
  }
  func.func @transform_10(%arg0: i32) -> (i32, i32) {
    %c0_i32 = arith.constant 0 : i32
    %c0_i32_0 = arith.constant 0 : i32
    %c0_i32_1 = arith.constant 0 : i32
    return %c0_i32, %c0_i32_0 : i32, i32
  }
  func.func @transform_11(%arg0: i32) -> (i32, i32) {
    %c0_i32 = arith.constant 0 : i32
    %c0_i32_0 = arith.constant 0 : i32
    %c0_i32_1 = arith.constant 0 : i32
    return %c0_i32, %c0_i32_0 : i32, i32
  }
  func.func @transform_12(%arg0: i32) -> (i32, i32) {
    %c0_i32 = arith.constant 0 : i32
    %c0_i32_0 = arith.constant 0 : i32
    %c0_i32_1 = arith.constant 0 : i32
    return %c0_i32, %c0_i32_0 : i32, i32
  }
  func.func @transform_13(%arg0: i32) -> (i32, i32) {
    %c0_i32 = arith.constant 0 : i32
    %c0_i32_0 = arith.constant 0 : i32
    %c0_i32_1 = arith.constant 0 : i32
    return %c0_i32, %c0_i32_0 : i32, i32
  }
  func.func @transform_14(%arg0: i32) -> (i32, i32) {
    %c0_i32 = arith.constant 0 : i32
    %c0_i32_0 = arith.constant 0 : i32
    %c0_i32_1 = arith.constant 0 : i32
    return %c0_i32, %c0_i32_0 : i32, i32
  }
  func.func @transform_15(%arg0: i32) -> (i32, i32) {
    %c0_i32 = arith.constant 0 : i32
    %c0_i32_0 = arith.constant 0 : i32
    %c0_i32_1 = arith.constant 0 : i32
    return %c0_i32, %c0_i32_0 : i32, i32
  }
}

</mosaic_0001>

<llo_original>
// kernel: encoder_forward.2
$region0: #{encoder_forward.2}
  #allocation0 [shape = 'u32[]', space=smem, size = 0x4, offset = 0x4, fixed_abs, tag = 'smem constant byte address 0x4 - core index']
  #allocation1 [shape = 'u32[144,128]{1,0:T(1,128)}', space=vmem, size = 0x12000, scoped, tag = 'internal scratch']
  %s0 = inlined_call_operand.vmem [shape: bf16[8,27], index: 0, kind: input, shape index: {}]
  %s1 = inlined_call_operand.vmem [shape: bf16[27,1058], index: 1, kind: input, shape index: {}]
  %s2 = inlined_call_operand.vmem [shape: f32[8,1], index: 2, kind: input, shape index: {}]
  %s3 = inlined_call_operand.vmem [shape: bf16[8,1058], index: 3, kind: output, shape index: {}]
  %s4 = sld [smem:[#allocation0]]
  $region173: #{encoder_forward.2} parent=0
    _
  %s6 = ssub.s32 1, %s4
  %s7 = scalar_select 0, %s6, %s4
  $region1: #{encoder_forward.2} parent=0
    #allocation2 [shape = 'u8[81920]{0}', space=vmem, size = 0x14000, scoped, tag = 'input window, operand 1']
    #allocation3 [shape = 'u8[20480]{0}', space=vmem, size = 0x5000, scoped, tag = 'output window, operand 0']
    loop: start=0, step=1, limit=4
    $region2: #{encoder_forward.2} parent=1 // loop_pre_header
      _
    $region3: #{encoder_forward.2} parent=1 // loop_header
      %s9 = sphi 0, %s13
      %p10 = scmp.ge.s32.totalorder %s9, 4
      %s17 = sphi 0, %s17
      %s19 = sphi 0, %s17
      %s20 = sphi 0, %s19
      %s34 = sphi 0, %s20
      %s40 = sphi 0, %s42
      %s43 = sphi 0, %s40
      %s44 = sphi 0, %s43
      %s60 = sphi 0, %s44
      %s64 = sphi 0, %s64
      %s66 = sphi 0, %s64
      %s67 = sphi 0, %s66
      %s81 = sphi 0, %s67
      %s87 = sphi 0, %s89
      %s90 = sphi 0, %s87
      %s91 = sphi 0, %s90
      %s107 = sphi 0, %s91
    $region4: #{encoder_forward.2} parent=1 // loop_header_branch
      %12 = sbr.rel (%p10) target = $region8
    $region5: #{encoder_forward.2} parent=1 // loop_body
      %s14 = ssub.s32 %s9, 1
      %s15 = ssub.s32 %s9, 2
      %s16 = sadd.s32 %s9, 1
      %s18 = sadd.s32 %s17, 1
      %p21 = scmp.eq.s32.totalorder %s9, 1
      %p22 = scmp.ne.s32.totalorder %s17, %s19
      %p23 = scmp.eq.s32.totalorder %s9, 0
      %p24 = por %p22, %p23
      %p25 = scmp.ne.s32.totalorder %s17, %s19
      %p26 = scmp.eq.s32.totalorder %s14, 1
      %p27 = por %p25, %p26
      %p28 = scmp.ne.s32.totalorder %s19, %s20
      %p29 = scmp.eq.s32.totalorder %s14, 0
      %p30 = por %p28, %p29
      %p31 = scmp.ne.s32.totalorder %s19, %s20
      %p32 = scmp.eq.s32.totalorder %s15, 1
      %p33 = por %p31, %p32
      %p35 = scmp.ne.s32.totalorder %s20, %s34
      %p36 = scmp.eq.s32.totalorder %s15, 0
      %p37 = por %p35, %p36
      %s38 = ssub.s32 %s9, %s16
      %p39 = scmp.eq.s32.totalorder %s38, 0
      %s41 = sadd.s32 %s40, 1
      %s42 = scalar_select %p39, %s40, %s41
      %p45 = pneg %p39
      %p46 = scmp.eq.s32.totalorder %s9, 1
      %p47 = por %p45, %p46
      %p48 = scmp.ne.s32.totalorder %s40, %s43
      %p49 = scmp.eq.s32.totalorder %s9, 0
      %p50 = por %p48, %p49
      %p51 = scmp.ne.s32.totalorder %s40, %s43
      %p52 = scmp.eq.s32.totalorder %s14, 1
      %p53 = por %p51, %p52
      %p54 = scmp.ne.s32.totalorder %s43, %s44
      %p55 = scmp.eq.s32.totalorder %s14, 0
      %p56 = por %p54, %p55
      %p57 = scmp.ne.s32.totalorder %s43, %s44
      %p58 = scmp.eq.s32.totalorder %s15, 1
      %p59 = por %p57, %p58
      %p61 = scmp.ne.s32.totalorder %s44, %s60
      %p62 = scmp.eq.s32.totalorder %s15, 0
      %p63 = por %p61, %p62
      %s65 = sadd.s32 %s64, 1
      %p68 = scmp.eq.s32.totalorder %s9, 1
      %p69 = scmp.ne.s32.totalorder %s64, %s66
      %p70 = scmp.eq.s32.totalorder %s9, 0
      %p71 = por %p69, %p70
      %p72 = scmp.ne.s32.totalorder %s64, %s66
      %p73 = scmp.eq.s32.totalorder %s14, 1
      %p74 = por %p72, %p73
      %p75 = scmp.ne.s32.totalorder %s66, %s67
      %p76 = scmp.eq.s32.totalorder %s14, 0
      %p77 = por %p75, %p76
      %p78 = scmp.ne.s32.totalorder %s66, %s67
      %p79 = scmp.eq.s32.totalorder %s15, 1
      %p80 = por %p78, %p79
      %p82 = scmp.ne.s32.totalorder %s67, %s81
      %p83 = scmp.eq.s32.totalorder %s15, 0
      %p84 = por %p82, %p83
      %s85 = ssub.s32 %s9, %s16
      %p86 = scmp.eq.s32.totalorder %s85, 0
      %s88 = sadd.s32 %s87, 1
      %s89 = scalar_select %p86, %s87, %s88
      %p92 = pneg %p86
      %p93 = scmp.eq.s32.totalorder %s9, 1
      %p94 = por %p92, %p93
      %p95 = scmp.ne.s32.totalorder %s87, %s90
      %p96 = scmp.eq.s32.totalorder %s9, 0
      %p97 = por %p95, %p96
      %p98 = scmp.ne.s32.totalorder %s87, %s90
      %p99 = scmp.eq.s32.totalorder %s14, 1
      %p100 = por %p98, %p99
      %p101 = scmp.ne.s32.totalorder %s90, %s91
      %p102 = scmp.eq.s32.totalorder %s14, 0
      %p103 = por %p101, %p102
      %p104 = scmp.ne.s32.totalorder %s90, %s91
      %p105 = scmp.eq.s32.totalorder %s15, 1
      %p106 = por %p104, %p105
      %p108 = scmp.ne.s32.totalorder %s91, %s107
      %p109 = scmp.eq.s32.totalorder %s15, 0
      %p110 = por %p108, %p109
      %p111 = scmp.le.s32.totalorder 1, %s9
      %p112 = scmp.lt.s32.totalorder %s9, 3
      %p113 = pnand %p111, %p112
      %p114 = pneg %p113
      // Predicated region
      $region9: #{encoder_forward.2} parent=5 // pred_check
        _
      $region10: #{encoder_forward.2} parent=5 // pred_check_branch
        %116 = sbr.rel (%p113) target = $region12
      $region11: #{encoder_forward.2} parent=5 // pred_region
        %s117 = ssub.s32 %s9, 1
        // Predicated region
        $region13: #{encoder_forward.2} parent=11 // pred_check
          %p118 = pneg %p30
        $region14: #{encoder_forward.2} parent=11 // pred_check_branch
          %120 = sbr.rel (%p118) target = $region16
        $region15: #{encoder_forward.2} parent=11 // pred_region
          _
        $region16: #{encoder_forward.2} parent=11 // pred_fallthru
          _
        // Predicated region
        $region17: #{encoder_forward.2} parent=11 // pred_check
          %p121 = pneg %p77
        $region18: #{encoder_forward.2} parent=11 // pred_check_branch
          %123 = sbr.rel (%p121) target = $region20
        $region19: #{encoder_forward.2} parent=11 // pred_region
          _
        $region20: #{encoder_forward.2} parent=11 // pred_fallthru
          _
      $region12: #{encoder_forward.2} parent=5 // pred_fallthru
        _
      %p124 = scmp.lt.s32.totalorder %s9, 2
      // Predicated region
      $region21: #{encoder_forward.2} parent=5 // pred_check
        %p125 = pneg %p124
      $region22: #{encoder_forward.2} parent=5 // pred_check_branch
        %127 = sbr.rel (%p125) target = $region24
      $region23: #{encoder_forward.2} parent=5 // pred_region
        // Predicated region
        $region25: #{encoder_forward.2} parent=23 // pred_check
          %p128 = pneg %p50
        $region26: #{encoder_forward.2} parent=23 // pred_check_branch
          %130 = sbr.rel (%p128) target = $region28
        $region27: #{encoder_forward.2} parent=23 // pred_region
          %s131 = sand.u32 %s40, 1
          %s132 = sand.u32 %s40, 1
          %s133 = smul.addr %s132, 80
          %s134 = scalar_lea.vmem [#allocation2], %s133
          %s135 = smul.u32 5, %s9
          %s136 = ssub.s32 9, %s135
          %p137 = scmp.lt.s32.totalorder %s136, 5
          %s138 = scalar_select %p137, %s136, 5
          %s139 = smul.u32 256, %s138
          %p140 = scmp.ne.s32.totalorder 0, %s139
          %s141 = smul.addr %s135, 4
          %s142 = scalar_lea.vmem %s1, %s141
          %s143 = smul.u32 %s138, 4
          // Predicated region
          $region29: #{encoder_forward.2} parent=27 // pred_check
            %p144 = pneg %p140
          $region30: #{encoder_forward.2} parent=27 // pred_check_branch
            %146 = sbr.rel (%p144) target = $region32
          $region31: #{encoder_forward.2} parent=27 // pred_region
            %p147 = scmp.lt.u32.totalorder %s143, 8
            %p148 = pneg %p147
            // Predicated region
            $region33: #{encoder_forward.2} parent=31 // pred_check
              _
            $region34: #{encoder_forward.2} parent=31 // pred_check_branch
              %150 = sbr.rel (%p147) target = $region36
            $region35: #{encoder_forward.2} parent=31 // pred_region
              %s171 = sand.u32 %s143, 7
              %p172 = scmp.eq.s32.totalorder %s171, 0
              // Predicated region
              $region48: #{encoder_forward.2} parent=35 // pred_check
                %p173 = pneg %p172
              $region49: #{encoder_forward.2} parent=35 // pred_check_branch
                %175 = sbr.rel (%p173) target = $region51
              $region50: #{encoder_forward.2} parent=35 // pred_region
                %s176 = sshrl.u32 %s143, 3
                %s177 = sshrl.u32 %s176, 4
                // While loop
                $region52: #{encoder_forward.2} parent=50 // loop_pre_header
                  _
                $region53: #{encoder_forward.2} parent=50 // loop_header
                  %s181 = sphi 0, %s183
                  %p182 = scmp.ge.s32.totalorder %s181, %s177
                  %s186 = sphi 0, %s319
                  %s187 = sphi %s142, %s322
                  %s188 = sphi %s134, %s323
                $region54: #{encoder_forward.2} parent=50 // loop_header_branch
                  %185 = sbr.rel (%p182) target = $region58
                $region55: #{encoder_forward.2} parent=50 // loop_body
                  %v189 = vld [vmem:[%s187] sm:$0xff]
                  %190 = vst [vmem:[%s188] sm:$0xff] %v189
                  %v191 = vld [vmem:[%s187 + $0x8] sm:$0xff]
                  %192 = vst [vmem:[%s188 + $0x8] sm:$0xff] %v191
                  %v193 = vld [vmem:[%s187 + $0x10] sm:$0xff]
                  %194 = vst [vmem:[%s188 + $0x10] sm:$0xff] %v193
                  %v195 = vld [vmem:[%s187 + $0x18] sm:$0xff]
                  %196 = vst [vmem:[%s188 + $0x18] sm:$0xff] %v195
                  %v197 = vld [vmem:[%s187 + $0x20] sm:$0xff]
                  %198 = vst [vmem:[%s188 + $0x20] sm:$0xff] %v197
                  %v199 = vld [vmem:[%s187 + $0x28] sm:$0xff]
                  %200 = vst [vmem:[%s188 + $0x28] sm:$0xff] %v199
                  %v201 = vld [vmem:[%s187 + $0x30] sm:$0xff]
                  %202 = vst [vmem:[%s188 + $0x30] sm:$0xff] %v201
                  %v203 = vld [vmem:[%s187 + $0x38] sm:$0xff]
                  %204 = vst [vmem:[%s188 + $0x38] sm:$0xff] %v203
                  %v205 = vld [vmem:[%s187 + $0x40] sm:$0xff]
                  %206 = vst [vmem:[%s188 + $0x40] sm:$0xff] %v205
                  %v207 = vld [vmem:[%s187 + $0x48] sm:$0xff]
                  %208 = vst [vmem:[%s188 + $0x48] sm:$0xff] %v207
                  %v209 = vld [vmem:[%s187 + $0x50] sm:$0xff]
                  %210 = vst [vmem:[%s188 + $0x50] sm:$0xff] %v209
                  %v211 = vld [vmem:[%s187 + $0x58] sm:$0xff]
                  %212 = vst [vmem:[%s188 + $0x58] sm:$0xff] %v211
                  %v213 = vld [vmem:[%s187 + $0x60] sm:$0xff]
                  %214 = vst [vmem:[%s188 + $0x60] sm:$0xff] %v213
                  %v215 = vld [vmem:[%s187 + $0x68] sm:$0xff]
                  %216 = vst [vmem:[%s188 + $0x68] sm:$0xff] %v215
                  %v217 = vld [vmem:[%s187 + $0x70] sm:$0xff]
                  %218 = vst [vmem:[%s188 + $0x70] sm:$0xff] %v217
                  %v219 = vld [vmem:[%s187 + $0x78] sm:$0xff]
                  %220 = vst [vmem:[%s188 + $0x78] sm:$0xff] %v219
                  %v221 = vld [vmem:[%s187 + $0x24] sm:$0xff]
                  %222 = vst [vmem:[%s188 + $0x14] sm:$0xff] %v221
                  %v223 = vld [vmem:[%s187 + $0x2c] sm:$0xff]
                  %224 = vst [vmem:[%s188 + $0x1c] sm:$0xff] %v223
                  %v225 = vld [vmem:[%s187 + $0x34] sm:$0xff]
                  %226 = vst [vmem:[%s188 + $0x24] sm:$0xff] %v225
                  %v227 = vld [vmem:[%s187 + $0x3c] sm:$0xff]
                  %228 = vst [vmem:[%s188 + $0x2c] sm:$0xff] %v227
                  %v229 = vld [vmem:[%s187 + $0x44] sm:$0xff]
                  %230 = vst [vmem:[%s188 + $0x34] sm:$0xff] %v229
                  %v231 = vld [vmem:[%s187 + $0x4c] sm:$0xff]
                  %232 = vst [vmem:[%s188 + $0x3c] sm:$0xff] %v231
                  %v233 = vld [vmem:[%s187 + $0x54] sm:$0xff]
                  %234 = vst [vmem:[%s188 + $0x44] sm:$0xff] %v233
                  %v235 = vld [vmem:[%s187 + $0x5c] sm:$0xff]
                  %236 = vst [vmem:[%s188 + $0x4c] sm:$0xff] %v235
                  %v237 = vld [vmem:[%s187 + $0x64] sm:$0xff]
                  %238 = vst [vmem:[%s188 + $0x54] sm:$0xff] %v237
                  %v239 = vld [vmem:[%s187 + $0x6c] sm:$0xff]
                  %240 = vst [vmem:[%s188 + $0x5c] sm:$0xff] %v239
                  %v241 = vld [vmem:[%s187 + $0x74] sm:$0xff]
                  %242 = vst [vmem:[%s188 + $0x64] sm:$0xff] %v241
                  %v243 = vld [vmem:[%s187 + $0x7c] sm:$0xff]
                  %244 = vst [vmem:[%s188 + $0x6c] sm:$0xff] %v243
                  %v245 = vld [vmem:[%s187 + $0x84] sm:$0xff]
                  %246 = vst [vmem:[%s188 + $0x74] sm:$0xff] %v245
                  %v247 = vld [vmem:[%s187 + $0x8c] sm:$0xff]
                  %248 = vst [vmem:[%s188 + $0x7c] sm:$0xff] %v247
                  %v249 = vld [vmem:[%s187 + $0x94] sm:$0xff]
                  %250 = vst [vmem:[%s188 + $0x84] sm:$0xff] %v249
                  %v251 = vld [vmem:[%s187 + $0x9c] sm:$0xff]
                  %252 = vst [vmem:[%s188 + $0x8c] sm:$0xff] %v251
                  %v253 = vld [vmem:[%s187 + $0x48] sm:$0xff]
                  %254 = vst [vmem:[%s188 + $0x28] sm:$0xff] %v253
                  %v255 = vld [vmem:[%s187 + $0x50] sm:$0xff]
                  %256 = vst [vmem:[%s188 + $0x30] sm:$0xff] %v255
                  %v257 = vld [vmem:[%s187 + $0x58] sm:$0xff]
                  %258 = vst [vmem:[%s188 + $0x38] sm:$0xff] %v257
                  %v259 = vld [vmem:[%s187 + $0x60] sm:$0xff]
                  %260 = vst [vmem:[%s188 + $0x40] sm:$0xff] %v259
                  %v261 = vld [vmem:[%s187 + $0x68] sm:$0xff]
                  %262 = vst [vmem:[%s188 + $0x48] sm:$0xff] %v261
                  %v263 = vld [vmem:[%s187 + $0x70] sm:$0xff]
                  %264 = vst [vmem:[%s188 + $0x50] sm:$0xff] %v263
                  %v265 = vld [vmem:[%s187 + $0x78] sm:$0xff]
                  %266 = vst [vmem:[%s188 + $0x58] sm:$0xff] %v265
                  %v267 = vld [vmem:[%s187 + $0x80] sm:$0xff]
                  %268 = vst [vmem:[%s188 + $0x60] sm:$0xff] %v267
                  %v269 = vld [vmem:[%s187 + $0x88] sm:$0xff]
                  %270 = vst [vmem:[%s188 + $0x68] sm:$0xff] %v269
                  %v271 = vld [vmem:[%s187 + $0x90] sm:$0xff]
                  %272 = vst [vmem:[%s188 + $0x70] sm:$0xff] %v271
                  %v273 = vld [vmem:[%s187 + $0x98] sm:$0xff]
                  %274 = vst [vmem:[%s188 + $0x78] sm:$0xff] %v273
                  %v275 = vld [vmem:[%s187 + $0xa0] sm:$0xff]
                  %276 = vst [vmem:[%s188 + $0x80] sm:$0xff] %v275
                  %v277 = vld [vmem:[%s187 + $0xa8] sm:$0xff]
                  %278 = vst [vmem:[%s188 + $0x88] sm:$0xff] %v277
                  %v279 = vld [vmem:[%s187 + $0xb0] sm:$0xff]
                  %280 = vst [vmem:[%s188 + $0x90] sm:$0xff] %v279
                  %v281 = vld [vmem:[%s187 + $0xb8] sm:$0xff]
                  %282 = vst [vmem:[%s188 + $0x98] sm:$0xff] %v281
                  %v283 = vld [vmem:[%s187 + $0xc0] sm:$0xff]
                  %284 = vst [vmem:[%s188 + $0xa0] sm:$0xff] %v283
                  %v285 = vld [vmem:[%s187 + $0x6c] sm:$0xff]
                  %286 = vst [vmem:[%s188 + $0x3c] sm:$0xff] %v285
                  %v287 = vld [vmem:[%s187 + $0x74] sm:$0xff]
                  %288 = vst [vmem:[%s188 + $0x44] sm:$0xff] %v287
                  %v289 = vld [vmem:[%s187 + $0x7c] sm:$0xff]
                  %290 = vst [vmem:[%s188 + $0x4c] sm:$0xff] %v289
                  %v291 = vld [vmem:[%s187 + $0x84] sm:$0xff]
                  %292 = vst [vmem:[%s188 + $0x54] sm:$0xff] %v291
                  %v293 = vld [vmem:[%s187 + $0x8c] sm:$0xff]
                  %294 = vst [vmem:[%s188 + $0x5c] sm:$0xff] %v293
                  %v295 = vld [vmem:[%s187 + $0x94] sm:$0xff]
                  %296 = vst [vmem:[%s188 + $0x64] sm:$0xff] %v295
                  %v297 = vld [vmem:[%s187 + $0x9c] sm:$0xff]
                  %298 = vst [vmem:[%s188 + $0x6c] sm:$0xff] %v297
                  %v299 = vld [vmem:[%s187 + $0xa4] sm:$0xff]
                  %300 = vst [vmem:[%s188 + $0x74] sm:$0xff] %v299
                  %v301 = vld [vmem:[%s187 + $0xac] sm:$0xff]
                  %302 = vst [vmem:[%s188 + $0x7c] sm:$0xff] %v301
                  %v303 = vld [vmem:[%s187 + $0xb4] sm:$0xff]
                  %304 = vst [vmem:[%s188 + $0x84] sm:$0xff] %v303
                  %v305 = vld [vmem:[%s187 + $0xbc] sm:$0xff]
                  %306 = vst [vmem:[%s188 + $0x8c] sm:$0xff] %v305
                  %v307 = vld [vmem:[%s187 + $0xc4] sm:$0xff]
                  %308 = vst [vmem:[%s188 + $0x94] sm:$0xff] %v307
                  %v309 = vld [vmem:[%s187 + $0xcc] sm:$0xff]
                  %310 = vst [vmem:[%s188 + $0x9c] sm:$0xff] %v309
                  %v311 = vld [vmem:[%s187 + $0xd4] sm:$0xff]
                  %312 = vst [vmem:[%s188 + $0xa4] sm:$0xff] %v311
                  %v313 = vld [vmem:[%s187 + $0xdc] sm:$0xff]
                  %314 = vst [vmem:[%s188 + $0xac] sm:$0xff] %v313
                  %v315 = vld [vmem:[%s187 + $0xe4] sm:$0xff]
                  %316 = vst [vmem:[%s188 + $0xb4] sm:$0xff] %v315
                  %s317 = sadd.s32 1, %s186
                  %p318 = scmp.ge.s32.totalorder %s317, %s177
                  %s319 = scalar_select %p318, 0, %s317
                  %s320 = smul.u32 %s319, 128
                  %s321 = smul.u32 %s319, 128
                  %s322 = scalar_lea.vmem %s142, %s320
                  %s323 = scalar_lea.vmem %s134, %s321 [#allocation2]
                $region56: #{encoder_forward.2} parent=50 // loop_footer
                  %s183 = sadd.s32 %s181, 1
                $region57: #{encoder_forward.2} parent=50 // loop_footer_branch
                  %180 = sbr.rel target = $region53
                $region58: #{encoder_forward.2} parent=50 // loop_exit
                  _
                %s324 = sshrl.u32 %s176, 4
                %s325 = sand.u32 %s176, 15
                %s326 = smul.u32 %s324, 16
                %s327 = smul.u32 128, %s326
                %s328 = sshra.s32 %s327, 4
                %s329 = scalar_lea.vmem %s142, %s328
                %s330 = smul.u32 128, %s326
                %s331 = sshra.s32 %s330, 4
                %s332 = scalar_lea.vmem %s134, %s331 [#allocation2]
                // While loop
                $region59: #{encoder_forward.2} parent=50 // loop_pre_header
                  _
                $region60: #{encoder_forward.2} parent=50 // loop_header
                  %s336 = sphi 0, %s338
                  %p337 = scmp.ge.s32.totalorder %s336, %s325
                  %s341 = sphi 0, %s354
                  %s342 = sphi %s329, %s357
                  %s343 = sphi %s332, %s358
                $region61: #{encoder_forward.2} parent=50 // loop_header_branch
                  %340 = sbr.rel (%p337) target = $region65
                $region62: #{encoder_forward.2} parent=50 // loop_body
                  %v344 = vld [vmem:[%s342] sm:$0xff]
                  %345 = vst [vmem:[%s343] sm:$0xff] %v344
                  %v346 = vld [vmem:[%s342 + $0x24] sm:$0xff]
                  %347 = vst [vmem:[%s343 + $0x14] sm:$0xff] %v346
                  %v348 = vld [vmem:[%s342 + $0x48] sm:$0xff]
                  %349 = vst [vmem:[%s343 + $0x28] sm:$0xff] %v348
                  %v350 = vld [vmem:[%s342 + $0x6c] sm:$0xff]
                  %351 = vst [vmem:[%s343 + $0x3c] sm:$0xff] %v350
                  %s352 = sadd.s32 1, %s341
                  %p353 = scmp.ge.s32.totalorder %s352, %s325
                  %s354 = scalar_select %p353, 0, %s352
                  %s355 = smul.u32 %s354, 8
                  %s356 = smul.u32 %s354, 8
                  %s357 = scalar_lea.vmem %s329, %s355
                  %s358 = scalar_lea.vmem %s332, %s356 [#allocation2]
                $region63: #{encoder_forward.2} parent=50 // loop_footer
                  %s338 = sadd.s32 %s336, 1
                $region64: #{encoder_forward.2} parent=50 // loop_footer_branch
                  %335 = sbr.rel target = $region60
                $region65: #{encoder_forward.2} parent=50 // loop_exit
                  _
              $region51: #{encoder_forward.2} parent=35 // pred_fallthru
                _
              %p359 = pneg %p172
              // Predicated region
              $region66: #{encoder_forward.2} parent=35 // pred_check
                _
              $region67: #{encoder_forward.2} parent=35 // pred_check_branch
                %361 = sbr.rel (%p172) target = $region69
              $region68: #{encoder_forward.2} parent=35 // pred_region
                %s362 = sand.u32 %s143, 7
                %s363 = ssub.s32 %s143, %s362
                %s364 = scalar_lea.vmem %s142, %s363
                %s365 = ssub.s32 %s143, %s362
                %s366 = scalar_lea.vmem %s134, %s365 [#allocation2]
                %s367 = sshrl.u32 %s143, 3
                %s368 = sshrl.u32 %s367, 4
                // While loop
                $region70: #{encoder_forward.2} parent=68 // loop_pre_header
                  _
                $region71: #{encoder_forward.2} parent=68 // loop_header
                  %s372 = sphi 0, %s374
                  %p373 = scmp.ge.s32.totalorder %s372, %s368
                  %s377 = sphi 0, %s510
                  %s378 = sphi %s142, %s513
                  %s379 = sphi %s134, %s514
                $region72: #{encoder_forward.2} parent=68 // loop_header_branch
                  %376 = sbr.rel (%p373) target = $region76
                $region73: #{encoder_forward.2} parent=68 // loop_body
                  %v380 = vld [vmem:[%s378] sm:$0xff]
                  %381 = vst [vmem:[%s379] sm:$0xff] %v380
                  %v382 = vld [vmem:[%s378 + $0x8] sm:$0xff]
                  %383 = vst [vmem:[%s379 + $0x8] sm:$0xff] %v382
                  %v384 = vld [vmem:[%s378 + $0x10] sm:$0xff]
                  %385 = vst [vmem:[%s379 + $0x10] sm:$0xff] %v384
                  %v386 = vld [vmem:[%s378 + $0x18] sm:$0xff]
                  %387 = vst [vmem:[%s379 + $0x18] sm:$0xff] %v386
                  %v388 = vld [vmem:[%s378 + $0x20] sm:$0xff]
                  %389 = vst [vmem:[%s379 + $0x20] sm:$0xff] %v388
                  %v390 = vld [vmem:[%s378 + $0x28] sm:$0xff]
                  %391 = vst [vmem:[%s379 + $0x28] sm:$0xff] %v390
                  %v392 = vld [vmem:[%s378 + $0x30] sm:$0xff]
                  %393 = vst [vmem:[%s379 + $0x30] sm:$0xff] %v392
                  %v394 = vld [vmem:[%s378 + $0x38] sm:$0xff]
                  %395 = vst [vmem:[%s379 + $0x38] sm:$0xff] %v394
                  %v396 = vld [vmem:[%s378 + $0x40] sm:$0xff]
                  %397 = vst [vmem:[%s379 + $0x40] sm:$0xff] %v396
                  %v398 = vld [vmem:[%s378 + $0x48] sm:$0xff]
                  %399 = vst [vmem:[%s379 + $0x48] sm:$0xff] %v398
                  %v400 = vld [vmem:[%s378 + $0x50] sm:$0xff]
                  %401 = vst [vmem:[%s379 + $0x50] sm:$0xff] %v400
                  %v402 = vld [vmem:[%s378 + $0x58] sm:$0xff]
                  %403 = vst [vmem:[%s379 + $0x58] sm:$0xff] %v402
                  %v404 = vld [vmem:[%s378 + $0x60] sm:$0xff]
                  %405 = vst [vmem:[%s379 + $0x60] sm:$0xff] %v404
                  %v406 = vld [vmem:[%s378 + $0x68] sm:$0xff]
                  %407 = vst [vmem:[%s379 + $0x68] sm:$0xff] %v406
                  %v408 = vld [vmem:[%s378 + $0x70] sm:$0xff]
                  %409 = vst [vmem:[%s379 + $0x70] sm:$0xff] %v408
                  %v410 = vld [vmem:[%s378 + $0x78] sm:$0xff]
                  %411 = vst [vmem:[%s379 + $0x78] sm:$0xff] %v410
                  %v412 = vld [vmem:[%s378 + $0x24] sm:$0xff]
                  %413 = vst [vmem:[%s379 + $0x14] sm:$0xff] %v412
                  %v414 = vld [vmem:[%s378 + $0x2c] sm:$0xff]
                  %415 = vst [vmem:[%s379 + $0x1c] sm:$0xff] %v414
                  %v416 = vld [vmem:[%s378 + $0x34] sm:$0xff]
                  %417 = vst [vmem:[%s379 + $0x24] sm:$0xff] %v416
                  %v418 = vld [vmem:[%s378 + $0x3c] sm:$0xff]
                  %419 = vst [vmem:[%s379 + $0x2c] sm:$0xff] %v418
                  %v420 = vld [vmem:[%s378 + $0x44] sm:$0xff]
                  %421 = vst [vmem:[%s379 + $0x34] sm:$0xff] %v420
                  %v422 = vld [vmem:[%s378 + $0x4c] sm:$0xff]
                  %423 = vst [vmem:[%s379 + $0x3c] sm:$0xff] %v422
                  %v424 = vld [vmem:[%s378 + $0x54] sm:$0xff]
                  %425 = vst [vmem:[%s379 + $0x44] sm:$0xff] %v424
                  %v426 = vld [vmem:[%s378 + $0x5c] sm:$0xff]
                  %427 = vst [vmem:[%s379 + $0x4c] sm:$0xff] %v426
                  %v428 = vld [vmem:[%s378 + $0x64] sm:$0xff]
                  %429 = vst [vmem:[%s379 + $0x54] sm:$0xff] %v428
                  %v430 = vld [vmem:[%s378 + $0x6c] sm:$0xff]
                  %431 = vst [vmem:[%s379 + $0x5c] sm:$0xff] %v430
                  %v432 = vld [vmem:[%s378 + $0x74] sm:$0xff]
                  %433 = vst [vmem:[%s379 + $0x64] sm:$0xff] %v432
                  %v434 = vld [vmem:[%s378 + $0x7c] sm:$0xff]
                  %435 = vst [vmem:[%s379 + $0x6c] sm:$0xff] %v434
                  %v436 = vld [vmem:[%s378 + $0x84] sm:$0xff]
                  %437 = vst [vmem:[%s379 + $0x74] sm:$0xff] %v436
                  %v438 = vld [vmem:[%s378 + $0x8c] sm:$0xff]
                  %439 = vst [vmem:[%s379 + $0x7c] sm:$0xff] %v438
                  %v440 = vld [vmem:[%s378 + $0x94] sm:$0xff]
                  %441 = vst [vmem:[%s379 + $0x84] sm:$0xff] %v440
                  %v442 = vld [vmem:[%s378 + $0x9c] sm:$0xff]
                  %443 = vst [vmem:[%s379 + $0x8c] sm:$0xff] %v442
                  %v444 = vld [vmem:[%s378 + $0x48] sm:$0xff]
                  %445 = vst [vmem:[%s379 + $0x28] sm:$0xff] %v444
                  %v446 = vld [vmem:[%s378 + $0x50] sm:$0xff]
                  %447 = vst [vmem:[%s379 + $0x30] sm:$0xff] %v446
                  %v448 = vld [vmem:[%s378 + $0x58] sm:$0xff]
                  %449 = vst [vmem:[%s379 + $0x38] sm:$0xff] %v448
                  %v450 = vld [vmem:[%s378 + $0x60] sm:$0xff]
                  %451 = vst [vmem:[%s379 + $0x40] sm:$0xff] %v450
                  %v452 = vld [vmem:[%s378 + $0x68] sm:$0xff]
                  %453 = vst [vmem:[%s379 + $0x48] sm:$0xff] %v452
                  %v454 = vld [vmem:[%s378 + $0x70] sm:$0xff]
                  %455 = vst [vmem:[%s379 + $0x50] sm:$0xff] %v454
                  %v456 = vld [vmem:[%s378 + $0x78] sm:$0xff]
                  %457 = vst [vmem:[%s379 + $0x58] sm:$0xff] %v456
                  %v458 = vld [vmem:[%s378 + $0x80] sm:$0xff]
                  %459 = vst [vmem:[%s379 + $0x60] sm:$0xff] %v458
                  %v460 = vld [vmem:[%s378 + $0x88] sm:$0xff]
                  %461 = vst [vmem:[%s379 + $0x68] sm:$0xff] %v460
                  %v462 = vld [vmem:[%s378 + $0x90] sm:$0xff]
                  %463 = vst [vmem:[%s379 + $0x70] sm:$0xff] %v462
                  %v464 = vld [vmem:[%s378 + $0x98] sm:$0xff]
                  %465 = vst [vmem:[%s379 + $0x78] sm:$0xff] %v464
                  %v466 = vld [vmem:[%s378 + $0xa0] sm:$0xff]
                  %467 = vst [vmem:[%s379 + $0x80] sm:$0xff] %v466
                  %v468 = vld [vmem:[%s378 + $0xa8] sm:$0xff]
                  %469 = vst [vmem:[%s379 + $0x88] sm:$0xff] %v468
                  %v470 = vld [vmem:[%s378 + $0xb0] sm:$0xff]
                  %471 = vst [vmem:[%s379 + $0x90] sm:$0xff] %v470
                  %v472 = vld [vmem:[%s378 + $0xb8] sm:$0xff]
                  %473 = vst [vmem:[%s379 + $0x98] sm:$0xff] %v472
                  %v474 = vld [vmem:[%s378 + $0xc0] sm:$0xff]
                  %475 = vst [vmem:[%s379 + $0xa0] sm:$0xff] %v474
                  %v476 = vld [vmem:[%s378 + $0x6c] sm:$0xff]
                  %477 = vst [vmem:[%s379 + $0x3c] sm:$0xff] %v476
                  %v478 = vld [vmem:[%s378 + $0x74] sm:$0xff]
                  %479 = vst [vmem:[%s379 + $0x44] sm:$0xff] %v478
                  %v480 = vld [vmem:[%s378 + $0x7c] sm:$0xff]
                  %481 = vst [vmem:[%s379 + $0x4c] sm:$0xff] %v480
                  %v482 = vld [vmem:[%s378 + $0x84] sm:$0xff]
                  %483 = vst [vmem:[%s379 + $0x54] sm:$0xff] %v482
                  %v484 = vld [vmem:[%s378 + $0x8c] sm:$0xff]
                  %485 = vst [vmem:[%s379 + $0x5c] sm:$0xff] %v484
                  %v486 = vld [vmem:[%s378 + $0x94] sm:$0xff]
                  %487 = vst [vmem:[%s379 + $0x64] sm:$0xff] %v486
                  %v488 = vld [vmem:[%s378 + $0x9c] sm:$0xff]
                  %489 = vst [vmem:[%s379 + $0x6c] sm:$0xff] %v488
                  %v490 = vld [vmem:[%s378 + $0xa4] sm:$0xff]
                  %491 = vst [vmem:[%s379 + $0x74] sm:$0xff] %v490
                  %v492 = vld [vmem:[%s378 + $0xac] sm:$0xff]
                  %493 = vst [vmem:[%s379 + $0x7c] sm:$0xff] %v492
                  %v494 = vld [vmem:[%s378 + $0xb4] sm:$0xff]
                  %495 = vst [vmem:[%s379 + $0x84] sm:$0xff] %v494
                  %v496 = vld [vmem:[%s378 + $0xbc] sm:$0xff]
                  %497 = vst [vmem:[%s379 + $0x8c] sm:$0xff] %v496
                  %v498 = vld [vmem:[%s378 + $0xc4] sm:$0xff]
                  %499 = vst [vmem:[%s379 + $0x94] sm:$0xff] %v498
                  %v500 = vld [vmem:[%s378 + $0xcc] sm:$0xff]
                  %501 = vst [vmem:[%s379 + $0x9c] sm:$0xff] %v500
                  %v502 = vld [vmem:[%s378 + $0xd4] sm:$0xff]
                  %503 = vst [vmem:[%s379 + $0xa4] sm:$0xff] %v502
                  %v504 = vld [vmem:[%s378 + $0xdc] sm:$0xff]
                  %505 = vst [vmem:[%s379 + $0xac] sm:$0xff] %v504
                  %v506 = vld [vmem:[%s378 + $0xe4] sm:$0xff]
                  %507 = vst [vmem:[%s379 + $0xb4] sm:$0xff] %v506
                  %s508 = sadd.s32 1, %s377
                  %p509 = scmp.ge.s32.totalorder %s508, %s368
                  %s510 = scalar_select %p509, 0, %s508
                  %s511 = smul.u32 %s510, 128
                  %s512 = smul.u32 %s510, 128
                  %s513 = scalar_lea.vmem %s142, %s511
                  %s514 = scalar_lea.vmem %s134, %s512 [#allocation2]
                $region74: #{encoder_forward.2} parent=68 // loop_footer
                  %s374 = sadd.s32 %s372, 1
                $region75: #{encoder_forward.2} parent=68 // loop_footer_branch
                  %371 = sbr.rel target = $region71
                $region76: #{encoder_forward.2} parent=68 // loop_exit
                  _
                %s515 = sshrl.u32 %s367, 4
                %s516 = sand.u32 %s367, 15
                %s517 = smul.u32 %s515, 16
                %s518 = smul.u32 128, %s517
                %s519 = sshra.s32 %s518, 4
                %s520 = scalar_lea.vmem %s142, %s519
                %s521 = smul.u32 128, %s517
                %s522 = sshra.s32 %s521, 4
                %s523 = scalar_lea.vmem %s134, %s522 [#allocation2]
                // While loop
                $region77: #{encoder_forward.2} parent=68 // loop_pre_header
                  _
                $region78: #{encoder_forward.2} parent=68 // loop_header
                  %s527 = sphi 0, %s529
                  %p528 = scmp.ge.s32.totalorder %s527, %s516
                  %s532 = sphi 0, %s545
                  %s533 = sphi %s520, %s548
                  %s534 = sphi %s523, %s549
                $region79: #{encoder_forward.2} parent=68 // loop_header_branch
                  %531 = sbr.rel (%p528) target = $region83
                $region80: #{encoder_forward.2} parent=68 // loop_body
                  %v535 = vld [vmem:[%s533] sm:$0xff]
                  %536 = vst [vmem:[%s534] sm:$0xff] %v535
                  %v537 = vld [vmem:[%s533 + $0x24] sm:$0xff]
                  %538 = vst [vmem:[%s534 + $0x14] sm:$0xff] %v537
                  %v539 = vld [vmem:[%s533 + $0x48] sm:$0xff]
                  %540 = vst [vmem:[%s534 + $0x28] sm:$0xff] %v539
                  %v541 = vld [vmem:[%s533 + $0x6c] sm:$0xff]
                  %542 = vst [vmem:[%s534 + $0x3c] sm:$0xff] %v541
                  %s543 = sadd.s32 1, %s532
                  %p544 = scmp.ge.s32.totalorder %s543, %s516
                  %s545 = scalar_select %p544, 0, %s543
                  %s546 = smul.u32 %s545, 8
                  %s547 = smul.u32 %s545, 8
                  %s548 = scalar_lea.vmem %s520, %s546
                  %s549 = scalar_lea.vmem %s523, %s547 [#allocation2]
                $region81: #{encoder_forward.2} parent=68 // loop_footer
                  %s529 = sadd.s32 %s527, 1
                $region82: #{encoder_forward.2} parent=68 // loop_footer_branch
                  %526 = sbr.rel target = $region78
                $region83: #{encoder_forward.2} parent=68 // loop_exit
                  _
                %s550 = sshllo.u32 0, %s362
                loop: start=0, step=1, limit=1
                $region84: #{encoder_forward.2} parent=68 // loop_pre_header
                  _
                $region85: #{encoder_forward.2} parent=68 // loop_header
                  %s552 = sphi 0, %s556
                  %p553 = scmp.ge.s32.totalorder %s552, 1
                  %s557 = sphi %s364, %s364
                  %s558 = sphi %s366, %s366
                $region86: #{encoder_forward.2} parent=68 // loop_header_branch
                  %555 = sbr.rel (%p553) target = $region90
                $region87: #{encoder_forward.2} parent=68 // loop_body
                  %v559 = vld [vmem:[%s557] sm:%s550]
                  %560 = vst [vmem:[%s558] sm:%s550] %v559
                  %v561 = vld [vmem:[%s557 + $0x24] sm:%s550]
                  %562 = vst [vmem:[%s558 + $0x14] sm:%s550] %v561
                  %v563 = vld [vmem:[%s557 + $0x48] sm:%s550]
                  %564 = vst [vmem:[%s558 + $0x28] sm:%s550] %v563
                  %v565 = vld [vmem:[%s557 + $0x6c] sm:%s550]
                  %566 = vst [vmem:[%s558 + $0x3c] sm:%s550] %v565
                $region88: #{encoder_forward.2} parent=68 // loop_footer
                  %s556 = sadd.s32 1, %s552
                $region89: #{encoder_forward.2} parent=68 // loop_footer_branch
                  %551 = sbr.rel target = $region85
                $region90: #{encoder_forward.2} parent=68 // loop_exit
                  _
              $region69: #{encoder_forward.2} parent=35 // pred_fallthru
                _
            $region36: #{encoder_forward.2} parent=31 // pred_fallthru
              _
            // Predicated region
            $region37: #{encoder_forward.2} parent=31 // pred_check
              %p151 = pneg %p147
            $region38: #{encoder_forward.2} parent=31 // pred_check_branch
              %153 = sbr.rel (%p151) target = $region40
            $region39: #{encoder_forward.2} parent=31 // pred_region
              %s154 = sshllo.u32 0, %s143
              loop: start=0, step=1, limit=1
              $region41: #{encoder_forward.2} parent=39 // loop_pre_header
                _
              $region42: #{encoder_forward.2} parent=39 // loop_header
                %s156 = sphi 0, %s160
                %p157 = scmp.ge.s32.totalorder %s156, 1
                %s161 = sphi %s142, %s142
                %s162 = sphi %s134, %s134
              $region43: #{encoder_forward.2} parent=39 // loop_header_branch
                %159 = sbr.rel (%p157) target = $region47
              $region44: #{encoder_forward.2} parent=39 // loop_body
                %v163 = vld [vmem:[%s161] sm:%s154]
                %164 = vst [vmem:[%s162] sm:%s154] %v163
                %v165 = vld [vmem:[%s161 + $0x24] sm:%s154]
                %166 = vst [vmem:[%s162 + $0x14] sm:%s154] %v165
                %v167 = vld [vmem:[%s161 + $0x48] sm:%s154]
                %168 = vst [vmem:[%s162 + $0x28] sm:%s154] %v167
                %v169 = vld [vmem:[%s161 + $0x6c] sm:%s154]
                %170 = vst [vmem:[%s162 + $0x3c] sm:%s154] %v169
              $region45: #{encoder_forward.2} parent=39 // loop_footer
                %s160 = sadd.s32 1, %s156
              $region46: #{encoder_forward.2} parent=39 // loop_footer_branch
                %155 = sbr.rel target = $region42
              $region47: #{encoder_forward.2} parent=39 // loop_exit
                _
            $region40: #{encoder_forward.2} parent=31 // pred_fallthru
              _
          $region32: #{encoder_forward.2} parent=27 // pred_fallthru
            _
          %567 = vnop
        $region28: #{encoder_forward.2} parent=23 // pred_fallthru
          _
      $region24: #{encoder_forward.2} parent=5 // pred_fallthru
        _
      %p568 = scmp.le.s32.totalorder 1, %s9
      %p569 = scmp.lt.s32.totalorder %s9, 3
      %p570 = pnand %p568, %p569
      %p571 = pneg %p570
      // Predicated region
      $region91: #{encoder_forward.2} parent=5 // pred_check
        _
      $region92: #{encoder_forward.2} parent=5 // pred_check_branch
        %573 = sbr.rel (%p570) target = $region94
      $region93: #{encoder_forward.2} parent=5 // pred_region
        %s574 = ssub.s32 %s9, 1
        %s575 = sand.u32 %s43, 1
        %s576 = sand.u32 %s43, 1
        %s577 = smul.addr %s576, 80
        %s578 = scalar_lea.vmem [#allocation2], %s577
        // Predicated region
        $region95: #{encoder_forward.2} parent=93 // pred_check
          %p579 = pneg %p56
        $region96: #{encoder_forward.2} parent=93 // pred_check_branch
          %581 = sbr.rel (%p579) target = $region98
        $region97: #{encoder_forward.2} parent=93 // pred_region
          _
        $region98: #{encoder_forward.2} parent=93 // pred_fallthru
          _
        %p582 = pneg %p30
        %p583 = pneg %p27
        %s584 = sand.u32 %s43, 1
        %s585 = sand.u32 %s43, 1
        %s586 = smul.addr %s585, 80
        %s587 = scalar_lea.vmem [#allocation2], %s586
        %p588 = pneg %p56
        %p589 = pneg %p53
        %p590 = pneg %p77
        %p591 = pneg %p74
        %p592 = pneg %p103
        %p593 = pneg %p100
        %s594 = sand.u32 %s90, 1
        %s595 = sand.u32 %s90, 1
        %s596 = smul.addr %s595, 20
        %s597 = scalar_lea.vmem [#allocation3], %s596
        %s598 = smul.u32 5, %s14
        %s599 = ssub.s32 9, %s598
        %p600 = scmp.lt.s32.totalorder %s599, 5
        %s601 = scalar_select %p600, %s599, 5
        %s602 = smul.u32 256, %s601
        %s603 = smul.u32 5, %s14
        %s604 = ssub.s32 9, %s603
        %p605 = scmp.lt.s32.totalorder %s604, 5
        %s606 = scalar_select %p605, %s604, 5
        %s607 = smul.u32 64, %s606
        %v609 = vld [vmem:[%s0] sm:$0xf]
        %v610 = vld [vmem:[%s578] sm:$0xff]
        %v611 = vld [vmem:[%s578 + $0x8] sm:$0xff]
        %v612 = vld [vmem:[%s578 + $0x10] sm:$0xf]
        %v613 = vld [vmem:[%s578 + $0x14] sm:$0xff]
        %v614 = vld [vmem:[%s578 + $0x1c] sm:$0xff]
        %v615 = vld [vmem:[%s578 + $0x24] sm:$0xf]
        %v616 = vld [vmem:[%s578 + $0x28] sm:$0xff]
        %v617 = vld [vmem:[%s578 + $0x30] sm:$0xff]
        %v618 = vld [vmem:[%s578 + $0x38] sm:$0xf]
        %v619 = vld [vmem:[%s578 + $0x3c] sm:$0x33]
        %v620 = vld [vmem:[%s578 + $0x44] sm:$0x33]
        %v621 = vld [vmem:[%s578 + $0x4c] sm:$0x3]
        %v622 = vld [vmem:[%s2] sm:$0xff]
        %624 = vset.pattern.permute.xlu0 0
        %625 = vperm.xlu0 %624, %v622
        %v626 = vpop.permute.xlu0 %625
        %v640 = vunpack.c.l.b16 %v610
        %v641 = vunpack.c.h.b16 %v610
        %v642 = vunpack.c.l.b16 %v611
        %v643 = vunpack.c.h.b16 %v611
        %v644 = vunpack.c.l.b16 %v612
        %v645 = vunpack.c.l.b16 %v613
        %v646 = vunpack.c.h.b16 %v613
        %v647 = vunpack.c.l.b16 %v614
        %v648 = vunpack.c.h.b16 %v614
        %v649 = vunpack.c.l.b16 %v615
        %v650 = vunpack.c.l.b16 %v616
        %v651 = vunpack.c.h.b16 %v616
        %v652 = vunpack.c.l.b16 %v617
        %v653 = vunpack.c.h.b16 %v617
        %v654 = vunpack.c.l.b16 %v618
        %v655 = vunpack.c.l.b16 %v619
        %v656 = vunpack.c.h.b16 %v619
        %v657 = vunpack.c.l.b16 %v620
        %v658 = vunpack.c.h.b16 %v620
        %v659 = vunpack.c.l.b16 %v621
        %v660 = vpack.c.b16 %v645, %v640
        %v661 = vpack.c.b16 %v646, %v641
        %v662 = vpack.c.b16 %v647, %v642
        %v663 = vpack.c.b16 %v648, %v643
        %v664 = vpack.c.b16 %v649, %v644
        %v665 = vpack.c.b16 %v655, %v650
        %v666 = vpack.c.b16 %v656, %v651
        %v667 = vpack.c.b16 %v657, %v652
        %v668 = vpack.c.b16 %v658, %v653
        %v669 = vpack.c.b16 %v659, %v654
        %vm675 = vcmask 220160
        %v677 = vsel %vm675, %v609, 0
        %vm679 = vcmask 1044480
        %vm680 = vcmask 1045504
        %v681 = vsel %vm679, 4294967295, 65535
        %v682 = vsel %vm680, %v681, 0
        %v684 = vand.u32 %v665, %v682
        %v687 = vand.u32 %v666, %v682
        %v690 = vand.u32 %v667, %v682
        %v693 = vand.u32 %v668, %v682
        %v696 = vand.u32 %v669, %v682
        %698 = vmatprep.subr.bf16.mxu0 %v661
        %699 = vmatpush1.bf16.msra.mxu0 %v660
        %700 = vmatprep.subr.bf16.mxu0 %v687
        %701 = vmatpush1.bf16.msra.mxu0 %v684
        %702 = vmatprep.subr.bf16.mxu0 0
        %703 = vmatpush1.bf16.msra.mxu0 0
        %704 = vmatprep.subr.bf16.mxu0 0
        %705 = vmatpush1.bf16.msra.mxu0 0
        %706 = vmatprep.subr.bf16.mxu0 0
        %707 = vmatpush1.bf16.msra.mxu0 0
        %708 = vmatprep.subr.bf16.mxu0 0
        %709 = vmatpush1.bf16.msra.mxu0 0
        %710 = vmatprep.subr.bf16.mxu0 0
        %711 = vmatpush1.bf16.msra.mxu0 0
        %712 = vmatprep.subr.bf16.mxu0 0
        %713 = vmatpush1.bf16.msra.mxu0 0
        %714 = vmatprep.subr.bf16.mxu0 0
        %715 = vmatpush1.bf16.msra.mxu0 0
        %716 = vmatprep.subr.bf16.mxu0 0
        %717 = vmatpush1.bf16.msra.mxu0 0
        %718 = vmatprep.subr.bf16.mxu0 0
        %719 = vmatpush1.bf16.msra.mxu0 0
        %720 = vmatprep.subr.bf16.mxu0 0
        %721 = vmatpush1.bf16.msra.mxu0 0
        %722 = vmatprep.subr.bf16.mxu0 0
        %723 = vmatpush1.bf16.msra.mxu0 0
        %724 = vmatprep.subr.bf16.mxu0 0
        %725 = vmatpush1.bf16.msra.mxu0 0
        %726 = vmatprep.subr.bf16.mxu0 0
        %727 = vmatpush1.bf16.msra.mxu0 0
        %728 = vmatprep.subr.bf16.mxu0 0
        %729 = vmatpush1.bf16.msra.mxu0 0
        %730 = vmatprep.mubr.bf16.mxu0 0
        %731 = vmatmul.mubr.bf16.gmra.mrb[0].mxu0 %v677
        %v732 = vpop.f32.mrb[0].mxu0
        %v733 = vadd.f32 %v626, %v732
        %v734 = vpop.f32.mrb[0].mxu0
        %v735 = vadd.f32 %v626, %v734
        %v736 = vpop.f32.mrb[0].mxu0
        %v737 = vpop.f32.mrb[0].mxu0
        %738 = vdwg.mxu0
        %739 = vmatprep.subr.bf16.mxu0 %v663
        %740 = vmatpush1.bf16.msra.mxu0 %v662
        %741 = vmatprep.subr.bf16.mxu0 %v693
        %742 = vmatpush1.bf16.msra.mxu0 %v690
        %743 = vmatprep.subr.bf16.mxu0 0
        %744 = vmatpush1.bf16.msra.mxu0 0
        %745 = vmatprep.subr.bf16.mxu0 0
        %746 = vmatpush1.bf16.msra.mxu0 0
        %747 = vmatprep.subr.bf16.mxu0 0
        %748 = vmatpush1.bf16.msra.mxu0 0
        %749 = vmatprep.subr.bf16.mxu0 0
        %750 = vmatpush1.bf16.msra.mxu0 0
        %751 = vmatprep.subr.bf16.mxu0 0
        %752 = vmatpush1.bf16.msra.mxu0 0
        %753 = vmatprep.subr.bf16.mxu0 0
        %754 = vmatpush1.bf16.msra.mxu0 0
        %755 = vmatprep.subr.bf16.mxu0 0
        %756 = vmatpush1.bf16.msra.mxu0 0
        %757 = vmatprep.subr.bf16.mxu0 0
        %758 = vmatpush1.bf16.msra.mxu0 0
        %759 = vmatprep.subr.bf16.mxu0 0
        %760 = vmatpush1.bf16.msra.mxu0 0
        %761 = vmatprep.subr.bf16.mxu0 0
        %762 = vmatpush1.bf16.msra.mxu0 0
        %763 = vmatprep.subr.bf16.mxu0 0
        %764 = vmatpush1.bf16.msra.mxu0 0
        %765 = vmatprep.subr.bf16.mxu0 0
        %766 = vmatpush1.bf16.msra.mxu0 0
        %767 = vmatprep.subr.bf16.mxu0 0
        %768 = vmatpush1.bf16.msra.mxu0 0
        %769 = vmatprep.subr.bf16.mxu0 0
        %770 = vmatpush1.bf16.msra.mxu0 0
        %771 = vmatprep.mubr.bf16.mxu0 0
        %772 = vmatmul.mubr.bf16.gmra.mrb[0].mxu0 %v677
        %v773 = vpop.f32.mrb[0].mxu0
        %v774 = vadd.f32 %v626, %v773
        %v775 = vpop.f32.mrb[0].mxu0
        %v776 = vadd.f32 %v626, %v775
        %v777 = vpop.f32.mrb[0].mxu0
        %v778 = vpop.f32.mrb[0].mxu0
        %779 = vdwg.mxu0
        %780 = vmatprep.subr.bf16.mxu0 0
        %781 = vmatpush1.bf16.msra.mxu0 %v664
        %782 = vmatprep.subr.bf16.mxu0 0
        %783 = vmatpush1.bf16.msra.mxu0 %v696
        %784 = vmatprep.subr.bf16.mxu0 0
        %785 = vmatpush1.bf16.msra.mxu0 0
        %786 = vmatprep.subr.bf16.mxu0 0
        %787 = vmatpush1.bf16.msra.mxu0 0
        %788 = vmatprep.subr.bf16.mxu0 0
        %789 = vmatpush1.bf16.msra.mxu0 0
        %790 = vmatprep.subr.bf16.mxu0 0
        %791 = vmatpush1.bf16.msra.mxu0 0
        %792 = vmatprep.subr.bf16.mxu0 0
        %793 = vmatpush1.bf16.msra.mxu0 0
        %794 = vmatprep.subr.bf16.mxu0 0
        %795 = vmatpush1.bf16.msra.mxu0 0
        %796 = vmatprep.subr.bf16.mxu0 0
        %797 = vmatpush1.bf16.msra.mxu0 0
        %798 = vmatprep.subr.bf16.mxu0 0
        %799 = vmatpush1.bf16.msra.mxu0 0
        %800 = vmatprep.subr.bf16.mxu0 0
        %801 = vmatpush1.bf16.msra.mxu0 0
        %802 = vmatprep.subr.bf16.mxu0 0
        %803 = vmatpush1.bf16.msra.mxu0 0
        %804 = vmatprep.subr.bf16.mxu0 0
        %805 = vmatpush1.bf16.msra.mxu0 0
        %806 = vmatprep.subr.bf16.mxu0 0
        %807 = vmatpush1.bf16.msra.mxu0 0
        %808 = vmatprep.subr.bf16.mxu0 0
        %809 = vmatpush1.bf16.msra.mxu0 0
        %810 = vmatprep.subr.bf16.mxu0 0
        %811 = vmatpush1.bf16.msra.mxu0 0
        %812 = vmatprep.mubr.bf16.mxu0 0
        %813 = vmatmul.mubr.bf16.gmra.mrb[0].mxu0 %v677
        %v814 = vpop.f32.mrb[0].mxu0
        %v815 = vadd.f32 %v626, %v814
        %v816 = vpop.f32.mrb[0].mxu0
        %v817 = vpop.f32.mrb[0].mxu0
        %v818 = vpop.f32.mrb[0].mxu0
        %819 = vdwg.mxu0
        %v820 = vmax.f32 %v733, 0.0
        %v821 = vmax.f32 %v735, 0.0
        %v822 = vmax.f32 %v774, 0.0
        %v823 = vmax.f32 %v776, 0.0
        %v824 = vmax.f32 %v815, 0.0
        %v825 = vpack.c.bf16 %v820, %v820
        %v826 = vpack.c.bf16 %v821, %v821
        %v827 = vpack.c.bf16 %v822, %v822
        %v828 = vpack.c.bf16 %v823, %v823
        %v829 = vpack.c.bf16 %v824, %v824
        %v835 = vunpack.c.l.b16 %v825
        %v836 = vunpack.c.l.b16 %v826
        %v837 = vunpack.c.l.b16 %v827
        %v838 = vunpack.c.l.b16 %v828
        %v839 = vunpack.c.l.b16 %v829
        %v840 = vpack.c.b16 %v836, %v835
        %v841 = vpack.c.b16 %v838, %v837
        %v842 = vpack.c.b16 %v839, %v839
        %846 = vst [vmem:[%s597] sm:$0xff] %v840
        %847 = vst [vmem:[%s597 + $0x8] sm:$0xff] %v841
        %848 = vst [vmem:[%s597 + $0x10] sm:$0xf] %v842
        %s849 = sand.u32 %s90, 1
        %s850 = sand.u32 %s90, 1
        %s851 = smul.addr %s850, 20
        %s852 = scalar_lea.vmem [#allocation3], %s851
        // Predicated region
        $region99: #{encoder_forward.2} parent=93 // pred_check
          %p853 = pneg %p100
        $region100: #{encoder_forward.2} parent=93 // pred_check_branch
          %855 = sbr.rel (%p853) target = $region102
        $region101: #{encoder_forward.2} parent=93 // pred_region
          %s856 = smul.u32 5, %s14
          %s857 = ssub.s32 9, %s856
          %p858 = scmp.lt.s32.totalorder %s857, 5
          %s859 = scalar_select %p858, %s857, 5
          %s860 = smul.u32 64, %s859
          %p861 = scmp.ne.s32.totalorder 0, %s860
          %s862 = smul.addr %s856, 4
          %s863 = scalar_lea.vmem %s3, %s862
          %s864 = smul.u32 %s859, 4
          // Predicated region
          $region103: #{encoder_forward.2} parent=101 // pred_check
            %p865 = pneg %p861
          $region104: #{encoder_forward.2} parent=101 // pred_check_branch
            %867 = sbr.rel (%p865) target = $region106
          $region105: #{encoder_forward.2} parent=101 // pred_region
            %p868 = scmp.lt.u32.totalorder %s864, 8
            %p869 = pneg %p868
            // Predicated region
            $region107: #{encoder_forward.2} parent=105 // pred_check
              _
            $region108: #{encoder_forward.2} parent=105 // pred_check_branch
              %871 = sbr.rel (%p868) target = $region110
            $region109: #{encoder_forward.2} parent=105 // pred_region
              %s886 = sand.u32 %s864, 7
              %p887 = scmp.eq.s32.totalorder %s886, 0
              // Predicated region
              $region122: #{encoder_forward.2} parent=109 // pred_check
                %p888 = pneg %p887
              $region123: #{encoder_forward.2} parent=109 // pred_check_branch
                %890 = sbr.rel (%p888) target = $region125
              $region124: #{encoder_forward.2} parent=109 // pred_region
                %s891 = sshrl.u32 %s864, 3
                %s892 = sshrl.u32 %s891, 6
                // While loop
                $region126: #{encoder_forward.2} parent=124 // loop_pre_header
                  _
                $region127: #{encoder_forward.2} parent=124 // loop_header
                  %s896 = sphi 0, %s898
                  %p897 = scmp.ge.s32.totalorder %s896, %s892
                  %s901 = sphi 0, %s1034
                  %s902 = sphi %s852, %s1037
                  %s903 = sphi %s863, %s1038
                $region128: #{encoder_forward.2} parent=124 // loop_header_branch
                  %900 = sbr.rel (%p897) target = $region132
                $region129: #{encoder_forward.2} parent=124 // loop_body
                  %v904 = vld [vmem:[%s902] sm:$0xff]
                  %905 = vst [vmem:[%s903] sm:$0xff] %v904
                  %v906 = vld [vmem:[%s902 + $0x8] sm:$0xff]
                  %907 = vst [vmem:[%s903 + $0x8] sm:$0xff] %v906
                  %v908 = vld [vmem:[%s902 + $0x10] sm:$0xff]
                  %909 = vst [vmem:[%s903 + $0x10] sm:$0xff] %v908
                  %v910 = vld [vmem:[%s902 + $0x18] sm:$0xff]
                  %911 = vst [vmem:[%s903 + $0x18] sm:$0xff] %v910
                  %v912 = vld [vmem:[%s902 + $0x20] sm:$0xff]
                  %913 = vst [vmem:[%s903 + $0x20] sm:$0xff] %v912
                  %v914 = vld [vmem:[%s902 + $0x28] sm:$0xff]
                  %915 = vst [vmem:[%s903 + $0x28] sm:$0xff] %v914
                  %v916 = vld [vmem:[%s902 + $0x30] sm:$0xff]
                  %917 = vst [vmem:[%s903 + $0x30] sm:$0xff] %v916
                  %v918 = vld [vmem:[%s902 + $0x38] sm:$0xff]
                  %919 = vst [vmem:[%s903 + $0x38] sm:$0xff] %v918
                  %v920 = vld [vmem:[%s902 + $0x40] sm:$0xff]
                  %921 = vst [vmem:[%s903 + $0x40] sm:$0xff] %v920
                  %v922 = vld [vmem:[%s902 + $0x48] sm:$0xff]
                  %923 = vst [vmem:[%s903 + $0x48] sm:$0xff] %v922
                  %v924 = vld [vmem:[%s902 + $0x50] sm:$0xff]
                  %925 = vst [vmem:[%s903 + $0x50] sm:$0xff] %v924
                  %v926 = vld [vmem:[%s902 + $0x58] sm:$0xff]
                  %927 = vst [vmem:[%s903 + $0x58] sm:$0xff] %v926
                  %v928 = vld [vmem:[%s902 + $0x60] sm:$0xff]
                  %929 = vst [vmem:[%s903 + $0x60] sm:$0xff] %v928
                  %v930 = vld [vmem:[%s902 + $0x68] sm:$0xff]
                  %931 = vst [vmem:[%s903 + $0x68] sm:$0xff] %v930
                  %v932 = vld [vmem:[%s902 + $0x70] sm:$0xff]
                  %933 = vst [vmem:[%s903 + $0x70] sm:$0xff] %v932
                  %v934 = vld [vmem:[%s902 + $0x78] sm:$0xff]
                  %935 = vst [vmem:[%s903 + $0x78] sm:$0xff] %v934
                  %v936 = vld [vmem:[%s902 + $0x80] sm:$0xff]
                  %937 = vst [vmem:[%s903 + $0x80] sm:$0xff] %v936
                  %v938 = vld [vmem:[%s902 + $0x88] sm:$0xff]
                  %939 = vst [vmem:[%s903 + $0x88] sm:$0xff] %v938
                  %v940 = vld [vmem:[%s902 + $0x90] sm:$0xff]
                  %941 = vst [vmem:[%s903 + $0x90] sm:$0xff] %v940
                  %v942 = vld [vmem:[%s902 + $0x98] sm:$0xff]
                  %943 = vst [vmem:[%s903 + $0x98] sm:$0xff] %v942
                  %v944 = vld [vmem:[%s902 + $0xa0] sm:$0xff]
                  %945 = vst [vmem:[%s903 + $0xa0] sm:$0xff] %v944
                  %v946 = vld [vmem:[%s902 + $0xa8] sm:$0xff]
                  %947 = vst [vmem:[%s903 + $0xa8] sm:$0xff] %v946
                  %v948 = vld [vmem:[%s902 + $0xb0] sm:$0xff]
                  %949 = vst [vmem:[%s903 + $0xb0] sm:$0xff] %v948
                  %v950 = vld [vmem:[%s902 + $0xb8] sm:$0xff]
                  %951 = vst [vmem:[%s903 + $0xb8] sm:$0xff] %v950
                  %v952 = vld [vmem:[%s902 + $0xc0] sm:$0xff]
                  %953 = vst [vmem:[%s903 + $0xc0] sm:$0xff] %v952
                  %v954 = vld [vmem:[%s902 + $0xc8] sm:$0xff]
                  %955 = vst [vmem:[%s903 + $0xc8] sm:$0xff] %v954
                  %v956 = vld [vmem:[%s902 + $0xd0] sm:$0xff]
                  %957 = vst [vmem:[%s903 + $0xd0] sm:$0xff] %v956
                  %v958 = vld [vmem:[%s902 + $0xd8] sm:$0xff]
                  %959 = vst [vmem:[%s903 + $0xd8] sm:$0xff] %v958
                  %v960 = vld [vmem:[%s902 + $0xe0] sm:$0xff]
                  %961 = vst [vmem:[%s903 + $0xe0] sm:$0xff] %v960
                  %v962 = vld [vmem:[%s902 + $0xe8] sm:$0xff]
                  %963 = vst [vmem:[%s903 + $0xe8] sm:$0xff] %v962
                  %v964 = vld [vmem:[%s902 + $0xf0] sm:$0xff]
                  %965 = vst [vmem:[%s903 + $0xf0] sm:$0xff] %v964
                  %v966 = vld [vmem:[%s902 + $0xf8] sm:$0xff]
                  %967 = vst [vmem:[%s903 + $0xf8] sm:$0xff] %v966
                  %v968 = vld [vmem:[%s902 + $0x100] sm:$0xff]
                  %969 = vst [vmem:[%s903 + $0x100] sm:$0xff] %v968
                  %v970 = vld [vmem:[%s902 + $0x108] sm:$0xff]
                  %971 = vst [vmem:[%s903 + $0x108] sm:$0xff] %v970
                  %v972 = vld [vmem:[%s902 + $0x110] sm:$0xff]
                  %973 = vst [vmem:[%s903 + $0x110] sm:$0xff] %v972
                  %v974 = vld [vmem:[%s902 + $0x118] sm:$0xff]
                  %975 = vst [vmem:[%s903 + $0x118] sm:$0xff] %v974
                  %v976 = vld [vmem:[%s902 + $0x120] sm:$0xff]
                  %977 = vst [vmem:[%s903 + $0x120] sm:$0xff] %v976
                  %v978 = vld [vmem:[%s902 + $0x128] sm:$0xff]
                  %979 = vst [vmem:[%s903 + $0x128] sm:$0xff] %v978
                  %v980 = vld [vmem:[%s902 + $0x130] sm:$0xff]
                  %981 = vst [vmem:[%s903 + $0x130] sm:$0xff] %v980
                  %v982 = vld [vmem:[%s902 + $0x138] sm:$0xff]
                  %983 = vst [vmem:[%s903 + $0x138] sm:$0xff] %v982
                  %v984 = vld [vmem:[%s902 + $0x140] sm:$0xff]
                  %985 = vst [vmem:[%s903 + $0x140] sm:$0xff] %v984
                  %v986 = vld [vmem:[%s902 + $0x148] sm:$0xff]
                  %987 = vst [vmem:[%s903 + $0x148] sm:$0xff] %v986
                  %v988 = vld [vmem:[%s902 + $0x150] sm:$0xff]
                  %989 = vst [vmem:[%s903 + $0x150] sm:$0xff] %v988
                  %v990 = vld [vmem:[%s902 + $0x158] sm:$0xff]
                  %991 = vst [vmem:[%s903 + $0x158] sm:$0xff] %v990
                  %v992 = vld [vmem:[%s902 + $0x160] sm:$0xff]
                  %993 = vst [vmem:[%s903 + $0x160] sm:$0xff] %v992
                  %v994 = vld [vmem:[%s902 + $0x168] sm:$0xff]
                  %995 = vst [vmem:[%s903 + $0x168] sm:$0xff] %v994
                  %v996 = vld [vmem:[%s902 + $0x170] sm:$0xff]
                  %997 = vst [vmem:[%s903 + $0x170] sm:$0xff] %v996
                  %v998 = vld [vmem:[%s902 + $0x178] sm:$0xff]
                  %999 = vst [vmem:[%s903 + $0x178] sm:$0xff] %v998
                  %v1000 = vld [vmem:[%s902 + $0x180] sm:$0xff]
                  %1001 = vst [vmem:[%s903 + $0x180] sm:$0xff] %v1000
                  %v1002 = vld [vmem:[%s902 + $0x188] sm:$0xff]
                  %1003 = vst [vmem:[%s903 + $0x188] sm:$0xff] %v1002
                  %v1004 = vld [vmem:[%s902 + $0x190] sm:$0xff]
                  %1005 = vst [vmem:[%s903 + $0x190] sm:$0xff] %v1004
                  %v1006 = vld [vmem:[%s902 + $0x198] sm:$0xff]
                  %1007 = vst [vmem:[%s903 + $0x198] sm:$0xff] %v1006
                  %v1008 = vld [vmem:[%s902 + $0x1a0] sm:$0xff]
                  %1009 = vst [vmem:[%s903 + $0x1a0] sm:$0xff] %v1008
                  %v1010 = vld [vmem:[%s902 + $0x1a8] sm:$0xff]
                  %1011 = vst [vmem:[%s903 + $0x1a8] sm:$0xff] %v1010
                  %v1012 = vld [vmem:[%s902 + $0x1b0] sm:$0xff]
                  %1013 = vst [vmem:[%s903 + $0x1b0] sm:$0xff] %v1012
                  %v1014 = vld [vmem:[%s902 + $0x1b8] sm:$0xff]
                  %1015 = vst [vmem:[%s903 + $0x1b8] sm:$0xff] %v1014
                  %v1016 = vld [vmem:[%s902 + $0x1c0] sm:$0xff]
                  %1017 = vst [vmem:[%s903 + $0x1c0] sm:$0xff] %v1016
                  %v1018 = vld [vmem:[%s902 + $0x1c8] sm:$0xff]
                  %1019 = vst [vmem:[%s903 + $0x1c8] sm:$0xff] %v1018
                  %v1020 = vld [vmem:[%s902 + $0x1d0] sm:$0xff]
                  %1021 = vst [vmem:[%s903 + $0x1d0] sm:$0xff] %v1020
                  %v1022 = vld [vmem:[%s902 + $0x1d8] sm:$0xff]
                  %1023 = vst [vmem:[%s903 + $0x1d8] sm:$0xff] %v1022
                  %v1024 = vld [vmem:[%s902 + $0x1e0] sm:$0xff]
                  %1025 = vst [vmem:[%s903 + $0x1e0] sm:$0xff] %v1024
                  %v1026 = vld [vmem:[%s902 + $0x1e8] sm:$0xff]
                  %1027 = vst [vmem:[%s903 + $0x1e8] sm:$0xff] %v1026
                  %v1028 = vld [vmem:[%s902 + $0x1f0] sm:$0xff]
                  %1029 = vst [vmem:[%s903 + $0x1f0] sm:$0xff] %v1028
                  %v1030 = vld [vmem:[%s902 + $0x1f8] sm:$0xff]
                  %1031 = vst [vmem:[%s903 + $0x1f8] sm:$0xff] %v1030
                  %s1032 = sadd.s32 1, %s901
                  %p1033 = scmp.ge.s32.totalorder %s1032, %s892
                  %s1034 = scalar_select %p1033, 0, %s1032
                  %s1035 = smul.u32 %s1034, 512
                  %s1036 = smul.u32 %s1034, 512
                  %s1037 = scalar_lea.vmem %s852, %s1035 [#allocation3]
                  %s1038 = scalar_lea.vmem %s863, %s1036
                $region130: #{encoder_forward.2} parent=124 // loop_footer
                  %s898 = sadd.s32 %s896, 1
                $region131: #{encoder_forward.2} parent=124 // loop_footer_branch
                  %895 = sbr.rel target = $region127
                $region132: #{encoder_forward.2} parent=124 // loop_exit
                  _
                %s1039 = sshrl.u32 %s891, 6
                %s1040 = sand.u32 %s891, 63
                %s1041 = smul.u32 %s1039, 64
                %s1042 = smul.u32 128, %s1041
                %s1043 = sshra.s32 %s1042, 4
                %s1044 = scalar_lea.vmem %s852, %s1043 [#allocation3]
                %s1045 = smul.u32 128, %s1041
                %s1046 = sshra.s32 %s1045, 4
                %s1047 = scalar_lea.vmem %s863, %s1046
                // While loop
                $region133: #{encoder_forward.2} parent=124 // loop_pre_header
                  _
                $region134: #{encoder_forward.2} parent=124 // loop_header
                  %s1051 = sphi 0, %s1053
                  %p1052 = scmp.ge.s32.totalorder %s1051, %s1040
                  %s1056 = sphi 0, %s1063
                  %s1057 = sphi %s1044, %s1066
                  %s1058 = sphi %s1047, %s1067
                $region135: #{encoder_forward.2} parent=124 // loop_header_branch
                  %1055 = sbr.rel (%p1052) target = $region139
                $region136: #{encoder_forward.2} parent=124 // loop_body
                  %v1059 = vld [vmem:[%s1057] sm:$0xff]
                  %1060 = vst [vmem:[%s1058] sm:$0xff] %v1059
                  %s1061 = sadd.s32 1, %s1056
                  %p1062 = scmp.ge.s32.totalorder %s1061, %s1040
                  %s1063 = scalar_select %p1062, 0, %s1061
                  %s1064 = smul.u32 %s1063, 8
                  %s1065 = smul.u32 %s1063, 8
                  %s1066 = scalar_lea.vmem %s1044, %s1064 [#allocation3]
                  %s1067 = scalar_lea.vmem %s1047, %s1065
                $region137: #{encoder_forward.2} parent=124 // loop_footer
                  %s1053 = sadd.s32 %s1051, 1
                $region138: #{encoder_forward.2} parent=124 // loop_footer_branch
                  %1050 = sbr.rel target = $region134
                $region139: #{encoder_forward.2} parent=124 // loop_exit
                  _
              $region125: #{encoder_forward.2} parent=109 // pred_fallthru
                _
              %p1068 = pneg %p887
              // Predicated region
              $region140: #{encoder_forward.2} parent=109 // pred_check
                _
              $region141: #{encoder_forward.2} parent=109 // pred_check_branch
                %1070 = sbr.rel (%p887) target = $region143
              $region142: #{encoder_forward.2} parent=109 // pred_region
                %s1071 = sand.u32 %s864, 7
                %s1072 = ssub.s32 %s864, %s1071
                %s1073 = scalar_lea.vmem %s852, %s1072 [#allocation3]
                %s1074 = ssub.s32 %s864, %s1071
                %s1075 = scalar_lea.vmem %s863, %s1074
                %s1076 = sshrl.u32 %s864, 3
                %s1077 = sshrl.u32 %s1076, 6
                // While loop
                $region144: #{encoder_forward.2} parent=142 // loop_pre_header
                  _
                $region145: #{encoder_forward.2} parent=142 // loop_header
                  %s1081 = sphi 0, %s1083
                  %p1082 = scmp.ge.s32.totalorder %s1081, %s1077
                  %s1086 = sphi 0, %s1219
                  %s1087 = sphi %s852, %s1222
                  %s1088 = sphi %s863, %s1223
                $region146: #{encoder_forward.2} parent=142 // loop_header_branch
                  %1085 = sbr.rel (%p1082) target = $region150
                $region147: #{encoder_forward.2} parent=142 // loop_body
                  %v1089 = vld [vmem:[%s1087] sm:$0xff]
                  %1090 = vst [vmem:[%s1088] sm:$0xff] %v1089
                  %v1091 = vld [vmem:[%s1087 + $0x8] sm:$0xff]
                  %1092 = vst [vmem:[%s1088 + $0x8] sm:$0xff] %v1091
                  %v1093 = vld [vmem:[%s1087 + $0x10] sm:$0xff]
                  %1094 = vst [vmem:[%s1088 + $0x10] sm:$0xff] %v1093
                  %v1095 = vld [vmem:[%s1087 + $0x18] sm:$0xff]
                  %1096 = vst [vmem:[%s1088 + $0x18] sm:$0xff] %v1095
                  %v1097 = vld [vmem:[%s1087 + $0x20] sm:$0xff]
                  %1098 = vst [vmem:[%s1088 + $0x20] sm:$0xff] %v1097
                  %v1099 = vld [vmem:[%s1087 + $0x28] sm:$0xff]
                  %1100 = vst [vmem:[%s1088 + $0x28] sm:$0xff] %v1099
                  %v1101 = vld [vmem:[%s1087 + $0x30] sm:$0xff]
                  %1102 = vst [vmem:[%s1088 + $0x30] sm:$0xff] %v1101
                  %v1103 = vld [vmem:[%s1087 + $0x38] sm:$0xff]
                  %1104 = vst [vmem:[%s1088 + $0x38] sm:$0xff] %v1103
                  %v1105 = vld [vmem:[%s1087 + $0x40] sm:$0xff]
                  %1106 = vst [vmem:[%s1088 + $0x40] sm:$0xff] %v1105
                  %v1107 = vld [vmem:[%s1087 + $0x48] sm:$0xff]
                  %1108 = vst [vmem:[%s1088 + $0x48] sm:$0xff] %v1107
                  %v1109 = vld [vmem:[%s1087 + $0x50] sm:$0xff]
                  %1110 = vst [vmem:[%s1088 + $0x50] sm:$0xff] %v1109
                  %v1111 = vld [vmem:[%s1087 + $0x58] sm:$0xff]
                  %1112 = vst [vmem:[%s1088 + $0x58] sm:$0xff] %v1111
                  %v1113 = vld [vmem:[%s1087 + $0x60] sm:$0xff]
                  %1114 = vst [vmem:[%s1088 + $0x60] sm:$0xff] %v1113
                  %v1115 = vld [vmem:[%s1087 + $0x68] sm:$0xff]
                  %1116 = vst [vmem:[%s1088 + $0x68] sm:$0xff] %v1115
                  %v1117 = vld [vmem:[%s1087 + $0x70] sm:$0xff]
                  %1118 = vst [vmem:[%s1088 + $0x70] sm:$0xff] %v1117
                  %v1119 = vld [vmem:[%s1087 + $0x78] sm:$0xff]
                  %1120 = vst [vmem:[%s1088 + $0x78] sm:$0xff] %v1119
                  %v1121 = vld [vmem:[%s1087 + $0x80] sm:$0xff]
                  %1122 = vst [vmem:[%s1088 + $0x80] sm:$0xff] %v1121
                  %v1123 = vld [vmem:[%s1087 + $0x88] sm:$0xff]
                  %1124 = vst [vmem:[%s1088 + $0x88] sm:$0xff] %v1123
                  %v1125 = vld [vmem:[%s1087 + $0x90] sm:$0xff]
                  %1126 = vst [vmem:[%s1088 + $0x90] sm:$0xff] %v1125
                  %v1127 = vld [vmem:[%s1087 + $0x98] sm:$0xff]
                  %1128 = vst [vmem:[%s1088 + $0x98] sm:$0xff] %v1127
                  %v1129 = vld [vmem:[%s1087 + $0xa0] sm:$0xff]
                  %1130 = vst [vmem:[%s1088 + $0xa0] sm:$0xff] %v1129
                  %v1131 = vld [vmem:[%s1087 + $0xa8] sm:$0xff]
                  %1132 = vst [vmem:[%s1088 + $0xa8] sm:$0xff] %v1131
                  %v1133 = vld [vmem:[%s1087 + $0xb0] sm:$0xff]
                  %1134 = vst [vmem:[%s1088 + $0xb0] sm:$0xff] %v1133
                  %v1135 = vld [vmem:[%s1087 + $0xb8] sm:$0xff]
                  %1136 = vst [vmem:[%s1088 + $0xb8] sm:$0xff] %v1135
                  %v1137 = vld [vmem:[%s1087 + $0xc0] sm:$0xff]
                  %1138 = vst [vmem:[%s1088 + $0xc0] sm:$0xff] %v1137
                  %v1139 = vld [vmem:[%s1087 + $0xc8] sm:$0xff]
                  %1140 = vst [vmem:[%s1088 + $0xc8] sm:$0xff] %v1139
                  %v1141 = vld [vmem:[%s1087 + $0xd0] sm:$0xff]
                  %1142 = vst [vmem:[%s1088 + $0xd0] sm:$0xff] %v1141
                  %v1143 = vld [vmem:[%s1087 + $0xd8] sm:$0xff]
                  %1144 = vst [vmem:[%s1088 + $0xd8] sm:$0xff] %v1143
                  %v1145 = vld [vmem:[%s1087 + $0xe0] sm:$0xff]
                  %1146 = vst [vmem:[%s1088 + $0xe0] sm:$0xff] %v1145
                  %v1147 = vld [vmem:[%s1087 + $0xe8] sm:$0xff]
                  %1148 = vst [vmem:[%s1088 + $0xe8] sm:$0xff] %v1147
                  %v1149 = vld [vmem:[%s1087 + $0xf0] sm:$0xff]
                  %1150 = vst [vmem:[%s1088 + $0xf0] sm:$0xff] %v1149
                  %v1151 = vld [vmem:[%s1087 + $0xf8] sm:$0xff]
                  %1152 = vst [vmem:[%s1088 + $0xf8] sm:$0xff] %v1151
                  %v1153 = vld [vmem:[%s1087 + $0x100] sm:$0xff]
                  %1154 = vst [vmem:[%s1088 + $0x100] sm:$0xff] %v1153
                  %v1155 = vld [vmem:[%s1087 + $0x108] sm:$0xff]
                  %1156 = vst [vmem:[%s1088 + $0x108] sm:$0xff] %v1155
                  %v1157 = vld [vmem:[%s1087 + $0x110] sm:$0xff]
                  %1158 = vst [vmem:[%s1088 + $0x110] sm:$0xff] %v1157
                  %v1159 = vld [vmem:[%s1087 + $0x118] sm:$0xff]
                  %1160 = vst [vmem:[%s1088 + $0x118] sm:$0xff] %v1159
                  %v1161 = vld [vmem:[%s1087 + $0x120] sm:$0xff]
                  %1162 = vst [vmem:[%s1088 + $0x120] sm:$0xff] %v1161
                  %v1163 = vld [vmem:[%s1087 + $0x128] sm:$0xff]
                  %1164 = vst [vmem:[%s1088 + $0x128] sm:$0xff] %v1163
                  %v1165 = vld [vmem:[%s1087 + $0x130] sm:$0xff]
                  %1166 = vst [vmem:[%s1088 + $0x130] sm:$0xff] %v1165
                  %v1167 = vld [vmem:[%s1087 + $0x138] sm:$0xff]
                  %1168 = vst [vmem:[%s1088 + $0x138] sm:$0xff] %v1167
                  %v1169 = vld [vmem:[%s1087 + $0x140] sm:$0xff]
                  %1170 = vst [vmem:[%s1088 + $0x140] sm:$0xff] %v1169
                  %v1171 = vld [vmem:[%s1087 + $0x148] sm:$0xff]
                  %1172 = vst [vmem:[%s1088 + $0x148] sm:$0xff] %v1171
                  %v1173 = vld [vmem:[%s1087 + $0x150] sm:$0xff]
                  %1174 = vst [vmem:[%s1088 + $0x150] sm:$0xff] %v1173
                  %v1175 = vld [vmem:[%s1087 + $0x158] sm:$0xff]
                  %1176 = vst [vmem:[%s1088 + $0x158] sm:$0xff] %v1175
                  %v1177 = vld [vmem:[%s1087 + $0x160] sm:$0xff]
                  %1178 = vst [vmem:[%s1088 + $0x160] sm:$0xff] %v1177
                  %v1179 = vld [vmem:[%s1087 + $0x168] sm:$0xff]
                  %1180 = vst [vmem:[%s1088 + $0x168] sm:$0xff] %v1179
                  %v1181 = vld [vmem:[%s1087 + $0x170] sm:$0xff]
                  %1182 = vst [vmem:[%s1088 + $0x170] sm:$0xff] %v1181
                  %v1183 = vld [vmem:[%s1087 + $0x178] sm:$0xff]
                  %1184 = vst [vmem:[%s1088 + $0x178] sm:$0xff] %v1183
                  %v1185 = vld [vmem:[%s1087 + $0x180] sm:$0xff]
                  %1186 = vst [vmem:[%s1088 + $0x180] sm:$0xff] %v1185
                  %v1187 = vld [vmem:[%s1087 + $0x188] sm:$0xff]
                  %1188 = vst [vmem:[%s1088 + $0x188] sm:$0xff] %v1187
                  %v1189 = vld [vmem:[%s1087 + $0x190] sm:$0xff]
                  %1190 = vst [vmem:[%s1088 + $0x190] sm:$0xff] %v1189
                  %v1191 = vld [vmem:[%s1087 + $0x198] sm:$0xff]
                  %1192 = vst [vmem:[%s1088 + $0x198] sm:$0xff] %v1191
                  %v1193 = vld [vmem:[%s1087 + $0x1a0] sm:$0xff]
                  %1194 = vst [vmem:[%s1088 + $0x1a0] sm:$0xff] %v1193
                  %v1195 = vld [vmem:[%s1087 + $0x1a8] sm:$0xff]
                  %1196 = vst [vmem:[%s1088 + $0x1a8] sm:$0xff] %v1195
                  %v1197 = vld [vmem:[%s1087 + $0x1b0] sm:$0xff]
                  %1198 = vst [vmem:[%s1088 + $0x1b0] sm:$0xff] %v1197
                  %v1199 = vld [vmem:[%s1087 + $0x1b8] sm:$0xff]
                  %1200 = vst [vmem:[%s1088 + $0x1b8] sm:$0xff] %v1199
                  %v1201 = vld [vmem:[%s1087 + $0x1c0] sm:$0xff]
                  %1202 = vst [vmem:[%s1088 + $0x1c0] sm:$0xff] %v1201
                  %v1203 = vld [vmem:[%s1087 + $0x1c8] sm:$0xff]
                  %1204 = vst [vmem:[%s1088 + $0x1c8] sm:$0xff] %v1203
                  %v1205 = vld [vmem:[%s1087 + $0x1d0] sm:$0xff]
                  %1206 = vst [vmem:[%s1088 + $0x1d0] sm:$0xff] %v1205
                  %v1207 = vld [vmem:[%s1087 + $0x1d8] sm:$0xff]
                  %1208 = vst [vmem:[%s1088 + $0x1d8] sm:$0xff] %v1207
                  %v1209 = vld [vmem:[%s1087 + $0x1e0] sm:$0xff]
                  %1210 = vst [vmem:[%s1088 + $0x1e0] sm:$0xff] %v1209
                  %v1211 = vld [vmem:[%s1087 + $0x1e8] sm:$0xff]
                  %1212 = vst [vmem:[%s1088 + $0x1e8] sm:$0xff] %v1211
                  %v1213 = vld [vmem:[%s1087 + $0x1f0] sm:$0xff]
                  %1214 = vst [vmem:[%s1088 + $0x1f0] sm:$0xff] %v1213
                  %v1215 = vld [vmem:[%s1087 + $0x1f8] sm:$0xff]
                  %1216 = vst [vmem:[%s1088 + $0x1f8] sm:$0xff] %v1215
                  %s1217 = sadd.s32 1, %s1086
                  %p1218 = scmp.ge.s32.totalorder %s1217, %s1077
                  %s1219 = scalar_select %p1218, 0, %s1217
                  %s1220 = smul.u32 %s1219, 512
                  %s1221 = smul.u32 %s1219, 512
                  %s1222 = scalar_lea.vmem %s852, %s1220 [#allocation3]
                  %s1223 = scalar_lea.vmem %s863, %s1221
                $region148: #{encoder_forward.2} parent=142 // loop_footer
                  %s1083 = sadd.s32 %s1081, 1
                $region149: #{encoder_forward.2} parent=142 // loop_footer_branch
                  %1080 = sbr.rel target = $region145
                $region150: #{encoder_forward.2} parent=142 // loop_exit
                  _
                %s1224 = sshrl.u32 %s1076, 6
                %s1225 = sand.u32 %s1076, 63
                %s1226 = smul.u32 %s1224, 64
                %s1227 = smul.u32 128, %s1226
                %s1228 = sshra.s32 %s1227, 4
                %s1229 = scalar_lea.vmem %s852, %s1228 [#allocation3]
                %s1230 = smul.u32 128, %s1226
                %s1231 = sshra.s32 %s1230, 4
                %s1232 = scalar_lea.vmem %s863, %s1231
                // While loop
                $region151: #{encoder_forward.2} parent=142 // loop_pre_header
                  _
                $region152: #{encoder_forward.2} parent=142 // loop_header
                  %s1236 = sphi 0, %s1238
                  %p1237 = scmp.ge.s32.totalorder %s1236, %s1225
                  %s1241 = sphi 0, %s1248
                  %s1242 = sphi %s1229, %s1251
                  %s1243 = sphi %s1232, %s1252
                $region153: #{encoder_forward.2} parent=142 // loop_header_branch
                  %1240 = sbr.rel (%p1237) target = $region157
                $region154: #{encoder_forward.2} parent=142 // loop_body
                  %v1244 = vld [vmem:[%s1242] sm:$0xff]
                  %1245 = vst [vmem:[%s1243] sm:$0xff] %v1244
                  %s1246 = sadd.s32 1, %s1241
                  %p1247 = scmp.ge.s32.totalorder %s1246, %s1225
                  %s1248 = scalar_select %p1247, 0, %s1246
                  %s1249 = smul.u32 %s1248, 8
                  %s1250 = smul.u32 %s1248, 8
                  %s1251 = scalar_lea.vmem %s1229, %s1249 [#allocation3]
                  %s1252 = scalar_lea.vmem %s1232, %s1250
                $region155: #{encoder_forward.2} parent=142 // loop_footer
                  %s1238 = sadd.s32 %s1236, 1
                $region156: #{encoder_forward.2} parent=142 // loop_footer_branch
                  %1235 = sbr.rel target = $region152
                $region157: #{encoder_forward.2} parent=142 // loop_exit
                  _
                %s1253 = sshllo.u32 0, %s1071
                loop: start=0, step=1, limit=1
                $region158: #{encoder_forward.2} parent=142 // loop_pre_header
                  _
                $region159: #{encoder_forward.2} parent=142 // loop_header
                  %s1255 = sphi 0, %s1259
                  %p1256 = scmp.ge.s32.totalorder %s1255, 1
                  %s1260 = sphi %s1073, %s1073
                  %s1261 = sphi %s1075, %s1075
                $region160: #{encoder_forward.2} parent=142 // loop_header_branch
                  %1258 = sbr.rel (%p1256) target = $region164
                $region161: #{encoder_forward.2} parent=142 // loop_body
                  %v1262 = vld [vmem:[%s1260] sm:%s1253]
                  %1263 = vst [vmem:[%s1261] sm:%s1253] %v1262
                $region162: #{encoder_forward.2} parent=142 // loop_footer
                  %s1259 = sadd.s32 1, %s1255
                $region163: #{encoder_forward.2} parent=142 // loop_footer_branch
                  %1254 = sbr.rel target = $region159
                $region164: #{encoder_forward.2} parent=142 // loop_exit
                  _
              $region143: #{encoder_forward.2} parent=109 // pred_fallthru
                _
            $region110: #{encoder_forward.2} parent=105 // pred_fallthru
              _
            // Predicated region
            $region111: #{encoder_forward.2} parent=105 // pred_check
              %p872 = pneg %p868
            $region112: #{encoder_forward.2} parent=105 // pred_check_branch
              %874 = sbr.rel (%p872) target = $region114
            $region113: #{encoder_forward.2} parent=105 // pred_region
              %s875 = sshllo.u32 0, %s864
              loop: start=0, step=1, limit=1
              $region115: #{encoder_forward.2} parent=113 // loop_pre_header
                _
              $region116: #{encoder_forward.2} parent=113 // loop_header
                %s877 = sphi 0, %s881
                %p878 = scmp.ge.s32.totalorder %s877, 1
                %s882 = sphi %s852, %s852
                %s883 = sphi %s863, %s863
              $region117: #{encoder_forward.2} parent=113 // loop_header_branch
                %880 = sbr.rel (%p878) target = $region121
              $region118: #{encoder_forward.2} parent=113 // loop_body
                %v884 = vld [vmem:[%s882] sm:%s875]
                %885 = vst [vmem:[%s883] sm:%s875] %v884
              $region119: #{encoder_forward.2} parent=113 // loop_footer
                %s881 = sadd.s32 1, %s877
              $region120: #{encoder_forward.2} parent=113 // loop_footer_branch
                %876 = sbr.rel target = $region116
              $region121: #{encoder_forward.2} parent=113 // loop_exit
                _
            $region114: #{encoder_forward.2} parent=105 // pred_fallthru
              _
          $region106: #{encoder_forward.2} parent=101 // pred_fallthru
            _
          %1264 = vnop
        $region102: #{encoder_forward.2} parent=93 // pred_fallthru
          _
      $region94: #{encoder_forward.2} parent=5 // pred_fallthru
        _
      %p1265 = scmp.le.s32.totalorder 2, %s9
      // Predicated region
      $region165: #{encoder_forward.2} parent=5 // pred_check
        %p1266 = pneg %p1265
      $region166: #{encoder_forward.2} parent=5 // pred_check_branch
        %1268 = sbr.rel (%p1266) target = $region168
      $region167: #{encoder_forward.2} parent=5 // pred_region
        %s1269 = ssub.s32 %s9, 2
        // Predicated region
        $region169: #{encoder_forward.2} parent=167 // pred_check
          %p1270 = pneg %p106
        $region170: #{encoder_forward.2} parent=167 // pred_check_branch
          %1272 = sbr.rel (%p1270) target = $region172
        $region171: #{encoder_forward.2} parent=167 // pred_region
          %s1273 = sand.u32 %s91, 1
          %s1274 = sand.u32 %s91, 1
          %s1275 = smul.addr %s1274, 20
          %s1276 = scalar_lea.vmem [#allocation3], %s1275
        $region172: #{encoder_forward.2} parent=167 // pred_fallthru
          _
      $region168: #{encoder_forward.2} parent=5 // pred_fallthru
        _
    $region6: #{encoder_forward.2} parent=1 // loop_footer
      %s13 = sadd.s32 1, %s9
    $region7: #{encoder_forward.2} parent=1 // loop_footer_branch
      %8 = sbr.rel target = $region3
    $region8: #{encoder_forward.2} parent=1 // loop_exit
      _

// kernel: encoder_forward.3
$region0: #{encoder_forward.3}
  #allocation0 [shape = 'u32[]', space=smem, size = 0x4, offset = 0x4, fixed_abs, tag = 'smem constant byte address 0x4 - core index']
  #allocation1 [shape = 'u32[144,128]{1,0:T(1,128)}', space=vmem, size = 0x12000, scoped, tag = 'internal scratch']
  %s0 = inlined_call_operand.vmem [shape: bf16[242,72], index: 0, kind: input, shape index: {}]
  %s1 = inlined_call_operand.vmem [shape: bf16[72,16], index: 1, kind: input, shape index: {}]
  %s2 = inlined_call_operand.vmem [shape: f32[1,16], index: 2, kind: input, shape index: {}]
  %s3 = inlined_call_operand.vmem [shape: bf16[450,242], index: 3, kind: input, shape index: {}]
  %s4 = inlined_call_operand.vmem [shape: f32[144,32], index: 4, kind: input, shape index: {}]
  %s5 = inlined_call_operand.vmem [shape: f32[1,32], index: 5, kind: input, shape index: {}]
  %s6 = inlined_call_operand.vmem [shape: bf16[32,50], index: 6, kind: input, shape index: {}]
  %s7 = inlined_call_operand.vmem [shape: f32[512,128], index: 7, kind: input, shape index: {}]
  %s8 = inlined_call_operand.vmem [shape: f32[1,128], index: 8, kind: input, shape index: {}]
  %s9 = inlined_call_operand.vmem [shape: f32[128,256], index: 9, kind: input, shape index: {}]
  %s10 = inlined_call_operand.vmem [shape: f32[1,256], index: 10, kind: input, shape index: {}]
  %s11 = inlined_call_operand.vmem [shape: f32[256,8], index: 11, kind: input, shape index: {}]
  %s12 = inlined_call_operand.vmem [shape: f32[1,8], index: 12, kind: input, shape index: {}]
  %s13 = inlined_call_operand.vmem [shape: f32[2,4], index: 13, kind: input, shape index: {}]
  %s14 = inlined_call_operand.hbm [shape: f32[2,4], index: 14, kind: output, shape index: {0}]
  %s15 = inlined_call_operand.hbm [shape: f32[1,1], index: 15, kind: output, shape index: {1}]
  %16 = xla_tuple %s14, %s15
  %s17 = sld [smem:[#allocation0]]
  $region74: #{encoder_forward.3} parent=0
    _
  %s19 = ssub.s32 1, %s17
  %s20 = scalar_select 0, %s19, %s17
  $region1: #{encoder_forward.3} parent=0
    #allocation2 [shape = 'u8[1024]{0}', space=vmem, size = 0x400, scoped, tag = 'output window, operand 0, single buffered']
    #allocation3 [shape = 's32[1]{0}', space=sflag, size = 0x4, scoped, tag = 'scoped memory for encoder_forward.3']
    #allocation4 [shape = 'u8[512]{0}', space=vmem, size = 0x400, scoped, tag = 'output window, operand 1, single buffered']
    #allocation5 [shape = 's32[1]{0}', space=sflag, size = 0x4, scoped, tag = 'scoped memory for encoder_forward.3']
    %21 = vsyncpa [#allocation3], 0
    %22 = vsyncpa [#allocation5], 0
    // Predicated region
    $region2: #{encoder_forward.3} parent=1 // pred_check
      _
    $region3: #{encoder_forward.3} parent=1 // pred_check_branch
      %24 = sbr.rel (0) target = $region5
    $region4: #{encoder_forward.3} parent=1 // pred_region
      _
    $region5: #{encoder_forward.3} parent=1 // pred_fallthru
      _
    // Predicated region
    $region6: #{encoder_forward.3} parent=1 // pred_check
      _
    $region7: #{encoder_forward.3} parent=1 // pred_check_branch
      %26 = sbr.rel (0) target = $region9
    $region8: #{encoder_forward.3} parent=1 // pred_region
      _
    $region9: #{encoder_forward.3} parent=1 // pred_fallthru
      _
    // Predicated region
    $region10: #{encoder_forward.3} parent=1 // pred_check
      _
    $region11: #{encoder_forward.3} parent=1 // pred_check_branch
      %28 = sbr.rel (0) target = $region13
    $region12: #{encoder_forward.3} parent=1 // pred_region
      _
    $region13: #{encoder_forward.3} parent=1 // pred_fallthru
      _
    // Predicated region
    $region14: #{encoder_forward.3} parent=1 // pred_check
      _
    $region15: #{encoder_forward.3} parent=1 // pred_check_branch
      %30 = sbr.rel (0) target = $region17
    $region16: #{encoder_forward.3} parent=1 // pred_region
      _
    $region17: #{encoder_forward.3} parent=1 // pred_fallthru
      _
    // Predicated region
    $region18: #{encoder_forward.3} parent=1 // pred_check
      _
    $region19: #{encoder_forward.3} parent=1 // pred_check_branch
      %32 = sbr.rel (0) target = $region21
    $region20: #{encoder_forward.3} parent=1 // pred_region
      _
    $region21: #{encoder_forward.3} parent=1 // pred_fallthru
      _
    // Predicated region
    $region22: #{encoder_forward.3} parent=1 // pred_check
      _
    $region23: #{encoder_forward.3} parent=1 // pred_check_branch
      %34 = sbr.rel (0) target = $region25
    $region24: #{encoder_forward.3} parent=1 // pred_region
      _
    $region25: #{encoder_forward.3} parent=1 // pred_fallthru
      _
    // Predicated region
    $region26: #{encoder_forward.3} parent=1 // pred_check
      _
    $region27: #{encoder_forward.3} parent=1 // pred_check_branch
      %36 = sbr.rel (0) target = $region29
    $region28: #{encoder_forward.3} parent=1 // pred_region
      _
    $region29: #{encoder_forward.3} parent=1 // pred_fallthru
      _
    // Predicated region
    $region30: #{encoder_forward.3} parent=1 // pred_check
      _
    $region31: #{encoder_forward.3} parent=1 // pred_check_branch
      %38 = sbr.rel (0) target = $region33
    $region32: #{encoder_forward.3} parent=1 // pred_region
      _
    $region33: #{encoder_forward.3} parent=1 // pred_fallthru
      _
    // Predicated region
    $region34: #{encoder_forward.3} parent=1 // pred_check
      _
    $region35: #{encoder_forward.3} parent=1 // pred_check_branch
      %40 = sbr.rel (0) target = $region37
    $region36: #{encoder_forward.3} parent=1 // pred_region
      _
    $region37: #{encoder_forward.3} parent=1 // pred_fallthru
      _
    // Predicated region
    $region38: #{encoder_forward.3} parent=1 // pred_check
      _
    $region39: #{encoder_forward.3} parent=1 // pred_check_branch
      %42 = sbr.rel (0) target = $region41
    $region40: #{encoder_forward.3} parent=1 // pred_region
      _
    $region41: #{encoder_forward.3} parent=1 // pred_fallthru
      _
    // Predicated region
    $region42: #{encoder_forward.3} parent=1 // pred_check
      _
    $region43: #{encoder_forward.3} parent=1 // pred_check_branch
      %44 = sbr.rel (0) target = $region45
    $region44: #{encoder_forward.3} parent=1 // pred_region
      _
    $region45: #{encoder_forward.3} parent=1 // pred_fallthru
      _
    // Predicated region
    $region46: #{encoder_forward.3} parent=1 // pred_check
      _
    $region47: #{encoder_forward.3} parent=1 // pred_check_branch
      %46 = sbr.rel (0) target = $region49
    $region48: #{encoder_forward.3} parent=1 // pred_region
      _
    $region49: #{encoder_forward.3} parent=1 // pred_fallthru
      _
    // Predicated region
    $region50: #{encoder_forward.3} parent=1 // pred_check
      _
    $region51: #{encoder_forward.3} parent=1 // pred_check_branch
      %48 = sbr.rel (0) target = $region53
    $region52: #{encoder_forward.3} parent=1 // pred_region
      _
    $region53: #{encoder_forward.3} parent=1 // pred_fallthru
      _
    // Predicated region
    $region54: #{encoder_forward.3} parent=1 // pred_check
      _
    $region55: #{encoder_forward.3} parent=1 // pred_check_branch
      %50 = sbr.rel (0) target = $region57
    $region56: #{encoder_forward.3} parent=1 // pred_region
      _
    $region57: #{encoder_forward.3} parent=1 // pred_fallthru
      _
    %v52 = vld [vmem:[%s0] sm:$0xf]
    %v53 = vld [vmem:[%s0 + $0x4] sm:$0xf]
    %v54 = vld [vmem:[%s0 + $0x8] sm:$0xf]
    %v55 = vld [vmem:[%s0 + $0xc] sm:$0xf]
    %v56 = vld [vmem:[%s0 + $0x10] sm:$0xf]
    %v57 = vld [vmem:[%s0 + $0x14] sm:$0xf]
    %v58 = vld [vmem:[%s0 + $0x18] sm:$0xf]
    %v59 = vld [vmem:[%s0 + $0x1c] sm:$0xf]
    %v60 = vld [vmem:[%s0 + $0x20] sm:$0xf]
    %v61 = vld [vmem:[%s0 + $0x24] sm:$0xf]
    %v62 = vld [vmem:[%s0 + $0x28] sm:$0xf]
    %v63 = vld [vmem:[%s0 + $0x2c] sm:$0xf]
    %v64 = vld [vmem:[%s0 + $0x30] sm:$0xf]
    %v65 = vld [vmem:[%s0 + $0x34] sm:$0xf]
    %v66 = vld [vmem:[%s0 + $0x38] sm:$0xf]
    %v67 = vld [vmem:[%s0 + $0x3c] sm:$0xf]
    %v68 = vld [vmem:[%s0 + $0x40] sm:$0xf]
    %v69 = vld [vmem:[%s0 + $0x44] sm:$0xf]
    %v70 = vld [vmem:[%s0 + $0x48] sm:$0xf]
    %v71 = vld [vmem:[%s0 + $0x4c] sm:$0xf]
    %v72 = vld [vmem:[%s0 + $0x50] sm:$0xf]
    %v73 = vld [vmem:[%s0 + $0x54] sm:$0xf]
    %v74 = vld [vmem:[%s0 + $0x58] sm:$0xf]
    %v75 = vld [vmem:[%s0 + $0x5c] sm:$0xf]
    %v76 = vld [vmem:[%s0 + $0x60] sm:$0xf]
    %v77 = vld [vmem:[%s0 + $0x64] sm:$0xf]
    %v78 = vld [vmem:[%s0 + $0x68] sm:$0xf]
    %v79 = vld [vmem:[%s0 + $0x6c] sm:$0xf]
    %v80 = vld [vmem:[%s0 + $0x70] sm:$0xf]
    %v81 = vld [vmem:[%s0 + $0x74] sm:$0xf]
    %v82 = vld [vmem:[%s0 + $0x78] sm:$0x1]
    %v83 = vld [vmem:[%s1] sm:$0xf]
    %v84 = vld [vmem:[%s1 + $0x4] sm:$0xf]
    %v85 = vld [vmem:[%s1 + $0x8] sm:$0xf]
    %v86 = vld [vmem:[%s1 + $0xc] sm:$0xf]
    %v87 = vld [vmem:[%s1 + $0x10] sm:$0xf]
    %v88 = vld [vmem:[%s1 + $0x14] sm:$0xf]
    %v89 = vld [vmem:[%s1 + $0x18] sm:$0xf]
    %v90 = vld [vmem:[%s1 + $0x1c] sm:$0xf]
    %v91 = vld [vmem:[%s1 + $0x20] sm:$0xf]
    %v92 = vld [vmem:[%s2] sm:$0x1]
    %v94 = vlaneseq
    %v95 = vshrl.u32 %v94, 7
    %v96 = vsub.s32 0, %v95
    %v97 = vrot.slane %v92, %v96
    %v130 = vunpack.c.l.b16 %v52
    %v131 = vunpack.c.l.b16 %v53
    %v132 = vunpack.c.l.b16 %v54
    %v133 = vunpack.c.l.b16 %v55
    %v134 = vunpack.c.l.b16 %v56
    %v135 = vunpack.c.l.b16 %v57
    %v136 = vunpack.c.l.b16 %v58
    %v137 = vunpack.c.l.b16 %v59
    %v138 = vunpack.c.l.b16 %v60
    %v139 = vunpack.c.l.b16 %v61
    %v140 = vunpack.c.l.b16 %v62
    %v141 = vunpack.c.l.b16 %v63
    %v142 = vunpack.c.l.b16 %v64
    %v143 = vunpack.c.l.b16 %v65
    %v144 = vunpack.c.l.b16 %v66
    %v145 = vunpack.c.l.b16 %v67
    %v146 = vunpack.c.l.b16 %v68
    %v147 = vunpack.c.l.b16 %v69
    %v148 = vunpack.c.l.b16 %v70
    %v149 = vunpack.c.l.b16 %v71
    %v150 = vunpack.c.l.b16 %v72
    %v151 = vunpack.c.l.b16 %v73
    %v152 = vunpack.c.l.b16 %v74
    %v153 = vunpack.c.l.b16 %v75
    %v154 = vunpack.c.l.b16 %v76
    %v155 = vunpack.c.l.b16 %v77
    %v156 = vunpack.c.l.b16 %v78
    %v157 = vunpack.c.l.b16 %v79
    %v158 = vunpack.c.l.b16 %v80
    %v159 = vunpack.c.l.b16 %v81
    %v160 = vunpack.c.l.b16 %v82
    %v161 = vpack.c.b16 %v131, %v130
    %v162 = vpack.c.b16 %v133, %v132
    %v163 = vpack.c.b16 %v135, %v134
    %v164 = vpack.c.b16 %v137, %v136
    %v165 = vpack.c.b16 %v139, %v138
    %v166 = vpack.c.b16 %v141, %v140
    %v167 = vpack.c.b16 %v143, %v142
    %v168 = vpack.c.b16 %v145, %v144
    %v169 = vpack.c.b16 %v147, %v146
    %v170 = vpack.c.b16 %v149, %v148
    %v171 = vpack.c.b16 %v151, %v150
    %v172 = vpack.c.b16 %v153, %v152
    %v173 = vpack.c.b16 %v155, %v154
    %v174 = vpack.c.b16 %v157, %v156
    %v175 = vpack.c.b16 %v159, %v158
    %v176 = vpack.c.b16 %v160, %v160
    %v186 = vunpack.c.l.b16 %v83
    %v187 = vunpack.c.l.b16 %v84
    %v188 = vunpack.c.l.b16 %v85
    %v189 = vunpack.c.l.b16 %v86
    %v190 = vunpack.c.l.b16 %v87
    %v191 = vunpack.c.l.b16 %v88
    %v192 = vunpack.c.l.b16 %v89
    %v193 = vunpack.c.l.b16 %v90
    %v194 = vunpack.c.l.b16 %v91
    %v195 = vpack.c.b16 %v187, %v186
    %v196 = vpack.c.b16 %v189, %v188
    %v197 = vpack.c.b16 %v191, %v190
    %v198 = vpack.c.b16 %v193, %v192
    %v199 = vpack.c.b16 %v194, %v194
    %vm204 = vcmask 588800
    %v206 = vsel %vm204, %v161, 0
    %v209 = vsel %vm204, %v162, 0
    %v212 = vsel %vm204, %v163, 0
    %v215 = vsel %vm204, %v164, 0
    %v218 = vsel %vm204, %v165, 0
    %v221 = vsel %vm204, %v166, 0
    %v224 = vsel %vm204, %v167, 0
    %v227 = vsel %vm204, %v168, 0
    %v230 = vsel %vm204, %v169, 0
    %v233 = vsel %vm204, %v170, 0
    %v236 = vsel %vm204, %v171, 0
    %v239 = vsel %vm204, %v172, 0
    %v242 = vsel %vm204, %v173, 0
    %v245 = vsel %vm204, %v174, 0
    %v248 = vsel %vm204, %v175, 0
    %v251 = vsel %vm204, %v176, 0
    %vm253 = vcmask 1043456
    %v255 = vsel %vm253, %v199, 0
    %257 = vmatprep.subr.bf16.mxu0 0
    %258 = vmatpush1.bf16.msra.mxu0 %v195
    %259 = vmatprep.subr.bf16.mxu0 0
    %260 = vmatpush1.bf16.msra.mxu0 %v196
    %261 = vmatprep.subr.bf16.mxu0 0
    %262 = vmatpush1.bf16.msra.mxu0 %v197
    %263 = vmatprep.subr.bf16.mxu0 0
    %264 = vmatpush1.bf16.msra.mxu0 %v198
    %265 = vmatprep.subr.bf16.mxu0 0
    %266 = vmatpush1.bf16.msra.mxu0 %v255
    %267 = vmatprep.subr.bf16.mxu0 0
    %268 = vmatpush1.bf16.msra.mxu0 0
    %269 = vmatprep.subr.bf16.mxu0 0
    %270 = vmatpush1.bf16.msra.mxu0 0
    %271 = vmatprep.subr.bf16.mxu0 0
    %272 = vmatpush1.bf16.msra.mxu0 0
    %273 = vmatprep.subr.bf16.mxu0 0
    %274 = vmatpush1.bf16.msra.mxu0 0
    %275 = vmatprep.subr.bf16.mxu0 0
    %276 = vmatpush1.bf16.msra.mxu0 0
    %277 = vmatprep.subr.bf16.mxu0 0
    %278 = vmatpush1.bf16.msra.mxu0 0
    %279 = vmatprep.subr.bf16.mxu0 0
    %280 = vmatpush1.bf16.msra.mxu0 0
    %281 = vmatprep.subr.bf16.mxu0 0
    %282 = vmatpush1.bf16.msra.mxu0 0
    %283 = vmatprep.subr.bf16.mxu0 0
    %284 = vmatpush1.bf16.msra.mxu0 0
    %285 = vmatprep.subr.bf16.mxu0 0
    %286 = vmatpush1.bf16.msra.mxu0 0
    %287 = vmatprep.subr.bf16.mxu0 0
    %288 = vmatpush1.bf16.msra.mxu0 0
    %289 = vmatprep.mubr.bf16.mxu0 0
    %290 = vmatmul.mubr.bf16.gmra.mrb[0].mxu0 %v206
    %v291 = vpop.f32.mrb[0].mxu0
    %v292 = vadd.f32 %v97, %v291
    %v293 = vpop.f32.mrb[0].mxu0
    %v294 = vpop.f32.mrb[0].mxu0
    %v295 = vadd.f32 %v97, %v294
    %v296 = vpop.f32.mrb[0].mxu0
    %297 = vmatprep.mubr.bf16.mxu0 0
    %298 = vmatmul.mubr.bf16.gmra.mrb[0].mxu0 %v209
    %v299 = vpop.f32.mrb[0].mxu0
    %v300 = vadd.f32 %v97, %v299
    %v301 = vpop.f32.mrb[0].mxu0
    %v302 = vpop.f32.mrb[0].mxu0
    %v303 = vadd.f32 %v97, %v302
    %v304 = vpop.f32.mrb[0].mxu0
    %305 = vmatprep.mubr.bf16.mxu0 0
    %306 = vmatmul.mubr.bf16.gmra.mrb[0].mxu0 %v212
    %v307 = vpop.f32.mrb[0].mxu0
    %v308 = vadd.f32 %v97, %v307
    %v309 = vpop.f32.mrb[0].mxu0
    %v310 = vpop.f32.mrb[0].mxu0
    %v311 = vadd.f32 %v97, %v310
    %v312 = vpop.f32.mrb[0].mxu0
    %313 = vmatprep.mubr.bf16.mxu0 0
    %314 = vmatmul.mubr.bf16.gmra.mrb[0].mxu0 %v215
    %v315 = vpop.f32.mrb[0].mxu0
    %v316 = vadd.f32 %v97, %v315
    %v317 = vpop.f32.mrb[0].mxu0
    %v318 = vpop.f32.mrb[0].mxu0
    %v319 = vadd.f32 %v97, %v318
    %v320 = vpop.f32.mrb[0].mxu0
    %321 = vmatprep.mubr.bf16.mxu0 0
    %322 = vmatmul.mubr.bf16.gmra.mrb[0].mxu0 %v218
    %v323 = vpop.f32.mrb[0].mxu0
    %v324 = vadd.f32 %v97, %v323
    %v325 = vpop.f32.mrb[0].mxu0
    %v326 = vpop.f32.mrb[0].mxu0
    %v327 = vadd.f32 %v97, %v326
    %v328 = vpop.f32.mrb[0].mxu0
    %329 = vmatprep.mubr.bf16.mxu0 0
    %330 = vmatmul.mubr.bf16.gmra.mrb[0].mxu0 %v221
    %v331 = vpop.f32.mrb[0].mxu0
    %v332 = vadd.f32 %v97, %v331
    %v333 = vpop.f32.mrb[0].mxu0
    %v334 = vpop.f32.mrb[0].mxu0
    %v335 = vadd.f32 %v97, %v334
    %v336 = vpop.f32.mrb[0].mxu0
    %337 = vmatprep.mubr.bf16.mxu0 0
    %338 = vmatmul.mubr.bf16.gmra.mrb[0].mxu0 %v224
    %v339 = vpop.f32.mrb[0].mxu0
    %v340 = vadd.f32 %v97, %v339
    %v341 = vpop.f32.mrb[0].mxu0
    %v342 = vpop.f32.mrb[0].mxu0
    %v343 = vadd.f32 %v97, %v342
    %v344 = vpop.f32.mrb[0].mxu0
    %345 = vmatprep.mubr.bf16.mxu0 0
    %346 = vmatmul.mubr.bf16.gmra.mrb[0].mxu0 %v227
    %v347 = vpop.f32.mrb[0].mxu0
    %v348 = vadd.f32 %v97, %v347
    %v349 = vpop.f32.mrb[0].mxu0
    %v350 = vpop.f32.mrb[0].mxu0
    %v351 = vadd.f32 %v97, %v350
    %v352 = vpop.f32.mrb[0].mxu0
    %353 = vmatprep.mubr.bf16.mxu0 0
    %354 = vmatmul.mubr.bf16.gmra.mrb[0].mxu0 %v230
    %v355 = vpop.f32.mrb[0].mxu0
    %v356 = vadd.f32 %v97, %v355
    %v357 = vpop.f32.mrb[0].mxu0
    %v358 = vpop.f32.mrb[0].mxu0
    %v359 = vadd.f32 %v97, %v358
    %v360 = vpop.f32.mrb[0].mxu0
    %361 = vmatprep.mubr.bf16.mxu0 0
    %362 = vmatmul.mubr.bf16.gmra.mrb[0].mxu0 %v233
    %v363 = vpop.f32.mrb[0].mxu0
    %v364 = vadd.f32 %v97, %v363
    %v365 = vpop.f32.mrb[0].mxu0
    %v366 = vpop.f32.mrb[0].mxu0
    %v367 = vadd.f32 %v97, %v366
    %v368 = vpop.f32.mrb[0].mxu0
    %369 = vmatprep.mubr.bf16.mxu0 0
    %370 = vmatmul.mubr.bf16.gmra.mrb[0].mxu0 %v236
    %v371 = vpop.f32.mrb[0].mxu0
    %v372 = vadd.f32 %v97, %v371
    %v373 = vpop.f32.mrb[0].mxu0
    %v374 = vpop.f32.mrb[0].mxu0
    %v375 = vadd.f32 %v97, %v374
    %v376 = vpop.f32.mrb[0].mxu0
    %377 = vmatprep.mubr.bf16.mxu0 0
    %378 = vmatmul.mubr.bf16.gmra.mrb[0].mxu0 %v239
    %v379 = vpop.f32.mrb[0].mxu0
    %v380 = vadd.f32 %v97, %v379
    %v381 = vpop.f32.mrb[0].mxu0
    %v382 = vpop.f32.mrb[0].mxu0
    %v383 = vadd.f32 %v97, %v382
    %v384 = vpop.f32.mrb[0].mxu0
    %385 = vmatprep.mubr.bf16.mxu0 0
    %386 = vmatmul.mubr.bf16.gmra.mrb[0].mxu0 %v242
    %v387 = vpop.f32.mrb[0].mxu0
    %v388 = vadd.f32 %v97, %v387
    %v389 = vpop.f32.mrb[0].mxu0
    %v390 = vpop.f32.mrb[0].mxu0
    %v391 = vadd.f32 %v97, %v390
    %v392 = vpop.f32.mrb[0].mxu0
    %393 = vmatprep.mubr.bf16.mxu0 0
    %394 = vmatmul.mubr.bf16.gmra.mrb[0].mxu0 %v245
    %v395 = vpop.f32.mrb[0].mxu0
    %v396 = vadd.f32 %v97, %v395
    %v397 = vpop.f32.mrb[0].mxu0
    %v398 = vpop.f32.mrb[0].mxu0
    %v399 = vadd.f32 %v97, %v398
    %v400 = vpop.f32.mrb[0].mxu0
    %401 = vmatprep.mubr.bf16.mxu0 0
    %402 = vmatmul.mubr.bf16.gmra.mrb[0].mxu0 %v248
    %v403 = vpop.f32.mrb[0].mxu0
    %v404 = vadd.f32 %v97, %v403
    %v405 = vpop.f32.mrb[0].mxu0
    %v406 = vpop.f32.mrb[0].mxu0
    %v407 = vadd.f32 %v97, %v406
    %v408 = vpop.f32.mrb[0].mxu0
    %409 = vmatprep.mubr.bf16.mxu0 0
    %410 = vmatmul.mubr.bf16.gmra.mrb[0].mxu0 %v251
    %v411 = vpop.f32.mrb[0].mxu0
    %v412 = vadd.f32 %v97, %v411
    %v413 = vpop.f32.mrb[0].mxu0
    %v414 = vpop.f32.mrb[0].mxu0
    %v415 = vpop.f32.mrb[0].mxu0
    %416 = vdwg.mxu0
    %v417 = vmax.f32 %v292, 0.0
    %v418 = vmax.f32 %v295, 0.0
    %v419 = vmax.f32 %v300, 0.0
    %v420 = vmax.f32 %v303, 0.0
    %v421 = vmax.f32 %v308, 0.0
    %v422 = vmax.f32 %v311, 0.0
    %v423 = vmax.f32 %v316, 0.0
    %v424 = vmax.f32 %v319, 0.0
    %v425 = vmax.f32 %v324, 0.0
    %v426 = vmax.f32 %v327, 0.0
    %v427 = vmax.f32 %v332, 0.0
    %v428 = vmax.f32 %v335, 0.0
    %v429 = vmax.f32 %v340, 0.0
    %v430 = vmax.f32 %v343, 0.0
    %v431 = vmax.f32 %v348, 0.0
    %v432 = vmax.f32 %v351, 0.0
    %v433 = vmax.f32 %v356, 0.0
    %v434 = vmax.f32 %v359, 0.0
    %v435 = vmax.f32 %v364, 0.0
    %v436 = vmax.f32 %v367, 0.0
    %v437 = vmax.f32 %v372, 0.0
    %v438 = vmax.f32 %v375, 0.0
    %v439 = vmax.f32 %v380, 0.0
    %v440 = vmax.f32 %v383, 0.0
    %v441 = vmax.f32 %v388, 0.0
    %v442 = vmax.f32 %v391, 0.0
    %v443 = vmax.f32 %v396, 0.0
    %v444 = vmax.f32 %v399, 0.0
    %v445 = vmax.f32 %v404, 0.0
    %v446 = vmax.f32 %v407, 0.0
    %v447 = vmax.f32 %v412, 0.0
    %v448 = vld [vmem:[%s3] sm:$0xff]
    %v449 = vld [vmem:[%s3 + $0x8] sm:$0xff]
    %v450 = vld [vmem:[%s3 + $0x10] sm:$0xff]
    %v451 = vld [vmem:[%s3 + $0x18] sm:$0xff]
    %v452 = vld [vmem:[%s3 + $0x20] sm:$0xff]
    %v453 = vld [vmem:[%s3 + $0x28] sm:$0xff]
    %v454 = vld [vmem:[%s3 + $0x30] sm:$0xff]
    %v455 = vld [vmem:[%s3 + $0x38] sm:$0xff]
    %v456 = vld [vmem:[%s3 + $0x40] sm:$0xff]
    %v457 = vld [vmem:[%s3 + $0x48] sm:$0xff]
    %v458 = vld [vmem:[%s3 + $0x50] sm:$0xff]
    %v459 = vld [vmem:[%s3 + $0x58] sm:$0xff]
    %v460 = vld [vmem:[%s3 + $0x60] sm:$0xff]
    %v461 = vld [vmem:[%s3 + $0x68] sm:$0xff]
    %v462 = vld [vmem:[%s3 + $0x70] sm:$0xff]
    %v463 = vld [vmem:[%s3 + $0x78] sm:$0xff]
    %v464 = vld [vmem:[%s3 + $0x80] sm:$0xff]
    %v465 = vld [vmem:[%s3 + $0x88] sm:$0xff]
    %v466 = vld [vmem:[%s3 + $0x90] sm:$0xff]
    %v467 = vld [vmem:[%s3 + $0x98] sm:$0xff]
    %v468 = vld [vmem:[%s3 + $0xa0] sm:$0xff]
    %v469 = vld [vmem:[%s3 + $0xa8] sm:$0xff]
    %v470 = vld [vmem:[%s3 + $0xb0] sm:$0xff]
    %v471 = vld [vmem:[%s3 + $0xb8] sm:$0xff]
    %v472 = vld [vmem:[%s3 + $0xc0] sm:$0xff]
    %v473 = vld [vmem:[%s3 + $0xc8] sm:$0xff]
    %v474 = vld [vmem:[%s3 + $0xd0] sm:$0xff]
    %v475 = vld [vmem:[%s3 + $0xd8] sm:$0xff]
    %v476 = vld [vmem:[%s3 + $0xe0] sm:$0xff]
    %v477 = vld [vmem:[%s3 + $0xe8] sm:$0xff]
    %v478 = vld [vmem:[%s3 + $0xf0] sm:$0xff]
    %v479 = vld [vmem:[%s3 + $0xf8] sm:$0xff]
    %v480 = vld [vmem:[%s3 + $0x100] sm:$0xff]
    %v481 = vld [vmem:[%s3 + $0x108] sm:$0xff]
    %v482 = vld [vmem:[%s3 + $0x110] sm:$0xff]
    %v483 = vld [vmem:[%s3 + $0x118] sm:$0xff]
    %v484 = vld [vmem:[%s3 + $0x120] sm:$0xff]
    %v485 = vld [vmem:[%s3 + $0x128] sm:$0xff]
    %v486 = vld [vmem:[%s3 + $0x130] sm:$0xff]
    %v487 = vld [vmem:[%s3 + $0x138] sm:$0xff]
    %v488 = vld [vmem:[%s3 + $0x140] sm:$0xff]
    %v489 = vld [vmem:[%s3 + $0x148] sm:$0xff]
    %v490 = vld [vmem:[%s3 + $0x150] sm:$0xff]
    %v491 = vld [vmem:[%s3 + $0x158] sm:$0xff]
    %v492 = vld [vmem:[%s3 + $0x160] sm:$0xff]
    %v493 = vld [vmem:[%s3 + $0x168] sm:$0xff]
    %v494 = vld [vmem:[%s3 + $0x170] sm:$0xff]
    %v495 = vld [vmem:[%s3 + $0x178] sm:$0xff]
    %v496 = vld [vmem:[%s3 + $0x180] sm:$0xff]
    %v497 = vld [vmem:[%s3 + $0x188] sm:$0xff]
    %v498 = vld [vmem:[%s3 + $0x190] sm:$0xff]
    %v499 = vld [vmem:[%s3 + $0x198] sm:$0xff]
    %v500 = vld [vmem:[%s3 + $0x1a0] sm:$0xff]
    %v501 = vld [vmem:[%s3 + $0x1a8] sm:$0xff]
    %v502 = vld [vmem:[%s3 + $0x1b0] sm:$0xff]
    %v503 = vld [vmem:[%s3 + $0x1b8] sm:$0xff]
    %v504 = vld [vmem:[%s3 + $0x1c0] sm:$0x11]
    %v505 = vunpack.c.l.bf16 %v448
    %v506 = vunpack.c.h.bf16 %v448
    %v507 = vunpack.c.l.bf16 %v449
    %v508 = vunpack.c.h.bf16 %v449
    %v509 = vunpack.c.l.bf16 %v450
    %v510 = vunpack.c.h.bf16 %v450
    %v511 = vunpack.c.l.bf16 %v451
    %v512 = vunpack.c.h.bf16 %v451
    %v513 = vunpack.c.l.bf16 %v452
    %v514 = vunpack.c.h.bf16 %v452
    %v515 = vunpack.c.l.bf16 %v453
    %v516 = vunpack.c.h.bf16 %v453
    %v517 = vunpack.c.l.bf16 %v454
    %v518 = vunpack.c.h.bf16 %v454
    %v519 = vunpack.c.l.bf16 %v455
    %v520 = vunpack.c.h.bf16 %v455
    %v521 = vunpack.c.l.bf16 %v456
    %v522 = vunpack.c.h.bf16 %v456
    %v523 = vunpack.c.l.bf16 %v457
    %v524 = vunpack.c.h.bf16 %v457
    %v525 = vunpack.c.l.bf16 %v458
    %v526 = vunpack.c.h.bf16 %v458
    %v527 = vunpack.c.l.bf16 %v459
    %v528 = vunpack.c.h.bf16 %v459
    %v529 = vunpack.c.l.bf16 %v460
    %v530 = vunpack.c.h.bf16 %v460
    %v531 = vunpack.c.l.bf16 %v461
    %v532 = vunpack.c.h.bf16 %v461
    %v533 = vunpack.c.l.bf16 %v462
    %v534 = vunpack.c.h.bf16 %v462
    %v535 = vunpack.c.l.bf16 %v463
    %v536 = vunpack.c.h.bf16 %v463
    %v537 = vunpack.c.l.bf16 %v464
    %v538 = vunpack.c.h.bf16 %v464
    %v539 = vunpack.c.l.bf16 %v465
    %v540 = vunpack.c.h.bf16 %v465
    %v541 = vunpack.c.l.bf16 %v466
    %v542 = vunpack.c.h.bf16 %v466
    %v543 = vunpack.c.l.bf16 %v467
    %v544 = vunpack.c.h.bf16 %v467
    %v545 = vunpack.c.l.bf16 %v468
    %v546 = vunpack.c.h.bf16 %v468
    %v547 = vunpack.c.l.bf16 %v469
    %v548 = vunpack.c.h.bf16 %v469
    %v549 = vunpack.c.l.bf16 %v470
    %v550 = vunpack.c.h.bf16 %v470
    %v551 = vunpack.c.l.bf16 %v471
    %v552 = vunpack.c.h.bf16 %v471
    %v553 = vunpack.c.l.bf16 %v472
    %v554 = vunpack.c.h.bf16 %v472
    %v555 = vunpack.c.l.bf16 %v473
    %v556 = vunpack.c.h.bf16 %v473
    %v557 = vunpack.c.l.bf16 %v474
    %v558 = vunpack.c.h.bf16 %v474
    %v559 = vunpack.c.l.bf16 %v475
    %v560 = vunpack.c.h.bf16 %v475
    %v561 = vunpack.c.l.bf16 %v476
    %v562 = vunpack.c.h.bf16 %v476
    %v563 = vunpack.c.l.bf16 %v477
    %v564 = vunpack.c.h.bf16 %v477
    %v565 = vunpack.c.l.bf16 %v478
    %v566 = vunpack.c.h.bf16 %v478
    %v567 = vunpack.c.l.bf16 %v479
    %v568 = vunpack.c.h.bf16 %v479
    %v569 = vunpack.c.l.bf16 %v480
    %v570 = vunpack.c.h.bf16 %v480
    %v571 = vunpack.c.l.bf16 %v481
    %v572 = vunpack.c.h.bf16 %v481
    %v573 = vunpack.c.l.bf16 %v482
    %v574 = vunpack.c.h.bf16 %v482
    %v575 = vunpack.c.l.bf16 %v483
    %v576 = vunpack.c.h.bf16 %v483
    %v577 = vunpack.c.l.bf16 %v484
    %v578 = vunpack.c.h.bf16 %v484
    %v579 = vunpack.c.l.bf16 %v485
    %v580 = vunpack.c.h.bf16 %v485
    %v581 = vunpack.c.l.bf16 %v486
    %v582 = vunpack.c.h.bf16 %v486
    %v583 = vunpack.c.l.bf16 %v487
    %v584 = vunpack.c.h.bf16 %v487
    %v585 = vunpack.c.l.bf16 %v488
    %v586 = vunpack.c.h.bf16 %v488
    %v587 = vunpack.c.l.bf16 %v489
    %v588 = vunpack.c.h.bf16 %v489
    %v589 = vunpack.c.l.bf16 %v490
    %v590 = vunpack.c.h.bf16 %v490
    %v591 = vunpack.c.l.bf16 %v491
    %v592 = vunpack.c.h.bf16 %v491
    %v593 = vunpack.c.l.bf16 %v492
    %v594 = vunpack.c.h.bf16 %v492
    %v595 = vunpack.c.l.bf16 %v493
    %v596 = vunpack.c.h.bf16 %v493
    %v597 = vunpack.c.l.bf16 %v494
    %v598 = vunpack.c.h.bf16 %v494
    %v599 = vunpack.c.l.bf16 %v495
    %v600 = vunpack.c.h.bf16 %v495
    %v601 = vunpack.c.l.bf16 %v496
    %v602 = vunpack.c.h.bf16 %v496
    %v603 = vunpack.c.l.bf16 %v497
    %v604 = vunpack.c.h.bf16 %v497
    %v605 = vunpack.c.l.bf16 %v498
    %v606 = vunpack.c.h.bf16 %v498
    %v607 = vunpack.c.l.bf16 %v499
    %v608 = vunpack.c.h.bf16 %v499
    %v609 = vunpack.c.l.bf16 %v500
    %v610 = vunpack.c.h.bf16 %v500
    %v611 = vunpack.c.l.bf16 %v501
    %v612 = vunpack.c.h.bf16 %v501
    %v613 = vunpack.c.l.bf16 %v502
    %v614 = vunpack.c.h.bf16 %v502
    %v615 = vunpack.c.l.bf16 %v503
    %v616 = vunpack.c.h.bf16 %v503
    %v617 = vunpack.c.l.bf16 %v504
    %v618 = vunpack.c.h.bf16 %v504
    %vm619 = vcmask 932864
    %v621 = vsel %vm619, %v506, 0
    %v624 = vsel %vm619, %v508, 0
    %v627 = vsel %vm619, %v510, 0
    %v630 = vsel %vm619, %v512, 0
    %v633 = vsel %vm619, %v514, 0
    %v636 = vsel %vm619, %v516, 0
    %v639 = vsel %vm619, %v518, 0
    %v642 = vsel %vm619, %v520, 0
    %v645 = vsel %vm619, %v522, 0
    %v648 = vsel %vm619, %v524, 0
    %v651 = vsel %vm619, %v526, 0
    %v654 = vsel %vm619, %v528, 0
    %v657 = vsel %vm619, %v530, 0
    %v660 = vsel %vm619, %v532, 0
    %v663 = vsel %vm619, %v534, 0
    %v666 = vsel %vm619, %v536, 0
    %v669 = vsel %vm619, %v538, 0
    %v672 = vsel %vm619, %v540, 0
    %v675 = vsel %vm619, %v542, 0
    %v678 = vsel %vm619, %v544, 0
    %v681 = vsel %vm619, %v546, 0
    %v684 = vsel %vm619, %v548, 0
    %v687 = vsel %vm619, %v550, 0
    %v690 = vsel %vm619, %v552, 0
    %v693 = vsel %vm619, %v554, 0
    %v696 = vsel %vm619, %v556, 0
    %v699 = vsel %vm619, %v558, 0
    %v702 = vsel %vm619, %v560, 0
    %v705 = vsel %vm619, %v562, 0
    %v708 = vsel %vm619, %v564, 0
    %v711 = vsel %vm619, %v566, 0
    %v714 = vsel %vm619, %v568, 0
    %v717 = vsel %vm619, %v570, 0
    %v720 = vsel %vm619, %v572, 0
    %v723 = vsel %vm619, %v574, 0
    %v726 = vsel %vm619, %v576, 0
    %v729 = vsel %vm619, %v578, 0
    %v732 = vsel %vm619, %v580, 0
    %v735 = vsel %vm619, %v582, 0
    %v738 = vsel %vm619, %v584, 0
    %v741 = vsel %vm619, %v586, 0
    %v744 = vsel %vm619, %v588, 0
    %v747 = vsel %vm619, %v590, 0
    %v750 = vsel %vm619, %v592, 0
    %v753 = vsel %vm619, %v594, 0
    %v756 = vsel %vm619, %v596, 0
    %v759 = vsel %vm619, %v598, 0
    %v762 = vsel %vm619, %v600, 0
    %v765 = vsel %vm619, %v602, 0
    %v768 = vsel %vm619, %v604, 0
    %v771 = vsel %vm619, %v606, 0
    %v774 = vsel %vm619, %v608, 0
    %v777 = vsel %vm619, %v610, 0
    %v780 = vsel %vm619, %v612, 0
    %v783 = vsel %vm619, %v614, 0
    %v786 = vsel %vm619, %v616, 0
    %v789 = vsel %vm619, %v618, 0
    %vm791 = vcmask 1041408
    %v793 = vsel %vm791, %v447, 0
    %795 = vmatprep.subr.mxu0 0.0
    %796 = vmatpush1.msra.mxu0 %v417
    %797 = vmatprep.subr.mxu0 0.0
    %798 = vmatpush1.msra.mxu0 %v418
    %799 = vmatprep.subr.mxu0 0.0
    %800 = vmatpush1.msra.mxu0 %v419
    %801 = vmatprep.subr.mxu0 0.0
    %802 = vmatpush1.msra.mxu0 %v420
    %803 = vmatprep.subr.mxu0 0.0
    %804 = vmatpush1.msra.mxu0 %v421
    %805 = vmatprep.subr.mxu0 0.0
    %806 = vmatpush1.msra.mxu0 %v422
    %807 = vmatprep.subr.mxu0 0.0
    %808 = vmatpush1.msra.mxu0 %v423
    %809 = vmatprep.subr.mxu0 0.0
    %810 = vmatpush1.msra.mxu0 %v424
    %811 = vmatprep.subr.mxu0 0.0
    %812 = vmatpush1.msra.mxu0 %v425
    %813 = vmatprep.subr.mxu0 0.0
    %814 = vmatpush1.msra.mxu0 %v426
    %815 = vmatprep.subr.mxu0 0.0
    %816 = vmatpush1.msra.mxu0 %v427
    %817 = vmatprep.subr.mxu0 0.0
    %818 = vmatpush1.msra.mxu0 %v428
    %819 = vmatprep.subr.mxu0 0.0
    %820 = vmatpush1.msra.mxu0 %v429
    %821 = vmatprep.subr.mxu0 0.0
    %822 = vmatpush1.msra.mxu0 %v430
    %823 = vmatprep.subr.mxu0 0.0
    %824 = vmatpush1.msra.mxu0 %v431
    %825 = vmatprep.subr.mxu0 0.0
    %826 = vmatpush1.msra.mxu0 %v432
    %827 = vmatprep.subr.mxu0 0.0
    %828 = vmatpush1.msra.mxu0 %v433
    %829 = vmatprep.subr.mxu0 0.0
    %830 = vmatpush1.msra.mxu0 %v434
    %831 = vmatprep.subr.mxu0 0.0
    %832 = vmatpush1.msra.mxu0 %v435
    %833 = vmatprep.subr.mxu0 0.0
    %834 = vmatpush1.msra.mxu0 %v436
    %835 = vmatprep.subr.mxu0 0.0
    %836 = vmatpush1.msra.mxu0 %v437
    %837 = vmatprep.subr.mxu0 0.0
    %838 = vmatpush1.msra.mxu0 %v438
    %839 = vmatprep.subr.mxu0 0.0
    %840 = vmatpush1.msra.mxu0 %v439
    %841 = vmatprep.subr.mxu0 0.0
    %842 = vmatpush1.msra.mxu0 %v440
    %843 = vmatprep.subr.mxu0 0.0
    %844 = vmatpush1.msra.mxu0 %v441
    %845 = vmatprep.subr.mxu0 0.0
    %846 = vmatpush1.msra.mxu0 %v442
    %847 = vmatprep.subr.mxu0 0.0
    %848 = vmatpush1.msra.mxu0 %v443
    %849 = vmatprep.subr.mxu0 0.0
    %850 = vmatpush1.msra.mxu0 %v444
    %851 = vmatprep.subr.mxu0 0.0
    %852 = vmatpush1.msra.mxu0 %v445
    %853 = vmatprep.subr.mxu0 0.0
    %854 = vmatpush1.msra.mxu0 %v446
    %855 = vmatprep.subr.mxu0 0.0
    %856 = vmatpush1.msra.mxu0 %v793
    %857 = vmatprep.subr.mxu0 0.0
    %858 = vmatpush1.msra.mxu0 0.0
    %859 = vmatprep.mubr.f32.mxu0 %v621
    %860 = vmatmul.mubr.f32.gmra.mrb[0].mxu0 %v505
    %v861 = vpop.f32.mrb[0].mxu0
    %v862 = vadd.f32 0.0, %v861
    %v863 = vpop.f32.mrb[0].mxu0
    %864 = vmatprep.mubr.f32.mxu0 %v624
    %865 = vmatmul.mubr.f32.gmra.mrb[0].mxu0 %v507
    %v866 = vpop.f32.mrb[0].mxu0
    %v867 = vadd.f32 0.0, %v866
    %v868 = vpop.f32.mrb[0].mxu0
    %869 = vmatprep.mubr.f32.mxu0 %v627
    %870 = vmatmul.mubr.f32.gmra.mrb[0].mxu0 %v509
    %v871 = vpop.f32.mrb[0].mxu0
    %v872 = vadd.f32 0.0, %v871
    %v873 = vpop.f32.mrb[0].mxu0
    %874 = vmatprep.mubr.f32.mxu0 %v630
    %875 = vmatmul.mubr.f32.gmra.mrb[0].mxu0 %v511
    %v876 = vpop.f32.mrb[0].mxu0
    %v877 = vadd.f32 0.0, %v876
    %v878 = vpop.f32.mrb[0].mxu0
    %879 = vmatprep.mubr.f32.mxu0 %v633
    %880 = vmatmul.mubr.f32.gmra.mrb[0].mxu0 %v513
    %v881 = vpop.f32.mrb[0].mxu0
    %v882 = vadd.f32 0.0, %v881
    %v883 = vpop.f32.mrb[0].mxu0
    %884 = vmatprep.mubr.f32.mxu0 %v636
    %885 = vmatmul.mubr.f32.gmra.mrb[0].mxu0 %v515
    %v886 = vpop.f32.mrb[0].mxu0
    %v887 = vadd.f32 0.0, %v886
    %v888 = vpop.f32.mrb[0].mxu0
    %889 = vmatprep.mubr.f32.mxu0 %v639
    %890 = vmatmul.mubr.f32.gmra.mrb[0].mxu0 %v517
    %v891 = vpop.f32.mrb[0].mxu0
    %v892 = vadd.f32 0.0, %v891
    %v893 = vpop.f32.mrb[0].mxu0
    %894 = vmatprep.mubr.f32.mxu0 %v642
    %895 = vmatmul.mubr.f32.gmra.mrb[0].mxu0 %v519
    %v896 = vpop.f32.mrb[0].mxu0
    %v897 = vadd.f32 0.0, %v896
    %v898 = vpop.f32.mrb[0].mxu0
    %899 = vmatprep.mubr.f32.mxu0 %v645
    %900 = vmatmul.mubr.f32.gmra.mrb[0].mxu0 %v521
    %v901 = vpop.f32.mrb[0].mxu0
    %v902 = vadd.f32 0.0, %v901
    %v903 = vpop.f32.mrb[0].mxu0
    %904 = vmatprep.mubr.f32.mxu0 %v648
    %905 = vmatmul.mubr.f32.gmra.mrb[0].mxu0 %v523
    %v906 = vpop.f32.mrb[0].mxu0
    %v907 = vadd.f32 0.0, %v906
    %v908 = vpop.f32.mrb[0].mxu0
    %909 = vmatprep.mubr.f32.mxu0 %v651
    %910 = vmatmul.mubr.f32.gmra.mrb[0].mxu0 %v525
    %v911 = vpop.f32.mrb[0].mxu0
    %v912 = vadd.f32 0.0, %v911
    %v913 = vpop.f32.mrb[0].mxu0
    %914 = vmatprep.mubr.f32.mxu0 %v654
    %915 = vmatmul.mubr.f32.gmra.mrb[0].mxu0 %v527
    %v916 = vpop.f32.mrb[0].mxu0
    %v917 = vadd.f32 0.0, %v916
    %v918 = vpop.f32.mrb[0].mxu0
    %919 = vmatprep.mubr.f32.mxu0 %v657
    %920 = vmatmul.mubr.f32.gmra.mrb[0].mxu0 %v529
    %v921 = vpop.f32.mrb[0].mxu0
    %v922 = vadd.f32 0.0, %v921
    %v923 = vpop.f32.mrb[0].mxu0
    %924 = vmatprep.mubr.f32.mxu0 %v660
    %925 = vmatmul.mubr.f32.gmra.mrb[0].mxu0 %v531
    %v926 = vpop.f32.mrb[0].mxu0
    %v927 = vadd.f32 0.0, %v926
    %v928 = vpop.f32.mrb[0].mxu0
    %929 = vmatprep.mubr.f32.mxu0 %v663
    %930 = vmatmul.mubr.f32.gmra.mrb[0].mxu0 %v533
    %v931 = vpop.f32.mrb[0].mxu0
    %v932 = vadd.f32 0.0, %v931
    %v933 = vpop.f32.mrb[0].mxu0
    %934 = vmatprep.mubr.f32.mxu0 %v666
    %935 = vmatmul.mubr.f32.gmra.mrb[0].mxu0 %v535
    %v936 = vpop.f32.mrb[0].mxu0
    %v937 = vadd.f32 0.0, %v936
    %v938 = vpop.f32.mrb[0].mxu0
    %939 = vmatprep.mubr.f32.mxu0 %v669
    %940 = vmatmul.mubr.f32.gmra.mrb[0].mxu0 %v537
    %v941 = vpop.f32.mrb[0].mxu0
    %v942 = vadd.f32 0.0, %v941
    %v943 = vpop.f32.mrb[0].mxu0
    %944 = vmatprep.mubr.f32.mxu0 %v672
    %945 = vmatmul.mubr.f32.gmra.mrb[0].mxu0 %v539
    %v946 = vpop.f32.mrb[0].mxu0
    %v947 = vadd.f32 0.0, %v946
    %v948 = vpop.f32.mrb[0].mxu0
    %949 = vmatprep.mubr.f32.mxu0 %v675
    %950 = vmatmul.mubr.f32.gmra.mrb[0].mxu0 %v541
    %v951 = vpop.f32.mrb[0].mxu0
    %v952 = vadd.f32 0.0, %v951
    %v953 = vpop.f32.mrb[0].mxu0
    %954 = vmatprep.mubr.f32.mxu0 %v678
    %955 = vmatmul.mubr.f32.gmra.mrb[0].mxu0 %v543
    %v956 = vpop.f32.mrb[0].mxu0
    %v957 = vadd.f32 0.0, %v956
    %v958 = vpop.f32.mrb[0].mxu0
    %959 = vmatprep.mubr.f32.mxu0 %v681
    %960 = vmatmul.mubr.f32.gmra.mrb[0].mxu0 %v545
    %v961 = vpop.f32.mrb[0].mxu0
    %v962 = vadd.f32 0.0, %v961
    %v963 = vpop.f32.mrb[0].mxu0
    %964 = vmatprep.mubr.f32.mxu0 %v684
    %965 = vmatmul.mubr.f32.gmra.mrb[0].mxu0 %v547
    %v966 = vpop.f32.mrb[0].mxu0
    %v967 = vadd.f32 0.0, %v966
    %v968 = vpop.f32.mrb[0].mxu0
    %969 = vmatprep.mubr.f32.mxu0 %v687
    %970 = vmatmul.mubr.f32.gmra.mrb[0].mxu0 %v549
    %v971 = vpop.f32.mrb[0].mxu0
    %v972 = vadd.f32 0.0, %v971
    %v973 = vpop.f32.mrb[0].mxu0
    %974 = vmatprep.mubr.f32.mxu0 %v690
    %975 = vmatmul.mubr.f32.gmra.mrb[0].mxu0 %v551
    %v976 = vpop.f32.mrb[0].mxu0
    %v977 = vadd.f32 0.0, %v976
    %v978 = vpop.f32.mrb[0].mxu0
    %979 = vmatprep.mubr.f32.mxu0 %v693
    %980 = vmatmul.mubr.f32.gmra.mrb[0].mxu0 %v553
    %v981 = vpop.f32.mrb[0].mxu0
    %v982 = vadd.f32 0.0, %v981
    %v983 = vpop.f32.mrb[0].mxu0
    %984 = vmatprep.mubr.f32.mxu0 %v696
    %985 = vmatmul.mubr.f32.gmra.mrb[0].mxu0 %v555
    %v986 = vpop.f32.mrb[0].mxu0
    %v987 = vadd.f32 0.0, %v986
    %v988 = vpop.f32.mrb[0].mxu0
    %989 = vmatprep.mubr.f32.mxu0 %v699
    %990 = vmatmul.mubr.f32.gmra.mrb[0].mxu0 %v557
    %v991 = vpop.f32.mrb[0].mxu0
    %v992 = vadd.f32 0.0, %v991
    %v993 = vpop.f32.mrb[0].mxu0
    %994 = vmatprep.mubr.f32.mxu0 %v702
    %995 = vmatmul.mubr.f32.gmra.mrb[0].mxu0 %v559
    %v996 = vpop.f32.mrb[0].mxu0
    %v997 = vadd.f32 0.0, %v996
    %v998 = vpop.f32.mrb[0].mxu0
    %999 = vmatprep.mubr.f32.mxu0 %v705
    %1000 = vmatmul.mubr.f32.gmra.mrb[0].mxu0 %v561
    %v1001 = vpop.f32.mrb[0].mxu0
    %v1002 = vadd.f32 0.0, %v1001
    %v1003 = vpop.f32.mrb[0].mxu0
    %1004 = vmatprep.mubr.f32.mxu0 %v708
    %1005 = vmatmul.mubr.f32.gmra.mrb[0].mxu0 %v563
    %v1006 = vpop.f32.mrb[0].mxu0
    %v1007 = vadd.f32 0.0, %v1006
    %v1008 = vpop.f32.mrb[0].mxu0
    %1009 = vmatprep.mubr.f32.mxu0 %v711
    %1010 = vmatmul.mubr.f32.gmra.mrb[0].mxu0 %v565
    %v1011 = vpop.f32.mrb[0].mxu0
    %v1012 = vadd.f32 0.0, %v1011
    %v1013 = vpop.f32.mrb[0].mxu0
    %1014 = vmatprep.mubr.f32.mxu0 %v714
    %1015 = vmatmul.mubr.f32.gmra.mrb[0].mxu0 %v567
    %v1016 = vpop.f32.mrb[0].mxu0
    %v1017 = vadd.f32 0.0, %v1016
    %v1018 = vpop.f32.mrb[0].mxu0
    %1019 = vmatprep.mubr.f32.mxu0 %v717
    %1020 = vmatmul.mubr.f32.gmra.mrb[0].mxu0 %v569
    %v1021 = vpop.f32.mrb[0].mxu0
    %v1022 = vadd.f32 0.0, %v1021
    %v1023 = vpop.f32.mrb[0].mxu0
    %1024 = vmatprep.mubr.f32.mxu0 %v720
    %1025 = vmatmul.mubr.f32.gmra.mrb[0].mxu0 %v571
    %v1026 = vpop.f32.mrb[0].mxu0
    %v1027 = vadd.f32 0.0, %v1026
    %v1028 = vpop.f32.mrb[0].mxu0
    %1029 = vmatprep.mubr.f32.mxu0 %v723
    %1030 = vmatmul.mubr.f32.gmra.mrb[0].mxu0 %v573
    %v1031 = vpop.f32.mrb[0].mxu0
    %v1032 = vadd.f32 0.0, %v1031
    %v1033 = vpop.f32.mrb[0].mxu0
    %1034 = vmatprep.mubr.f32.mxu0 %v726
    %1035 = vmatmul.mubr.f32.gmra.mrb[0].mxu0 %v575
    %v1036 = vpop.f32.mrb[0].mxu0
    %v1037 = vadd.f32 0.0, %v1036
    %v1038 = vpop.f32.mrb[0].mxu0
    %1039 = vmatprep.mubr.f32.mxu0 %v729
    %1040 = vmatmul.mubr.f32.gmra.mrb[0].mxu0 %v577
    %v1041 = vpop.f32.mrb[0].mxu0
    %v1042 = vadd.f32 0.0, %v1041
    %v1043 = vpop.f32.mrb[0].mxu0
    %1044 = vmatprep.mubr.f32.mxu0 %v732
    %1045 = vmatmul.mubr.f32.gmra.mrb[0].mxu0 %v579
    %v1046 = vpop.f32.mrb[0].mxu0
    %v1047 = vadd.f32 0.0, %v1046
    %v1048 = vpop.f32.mrb[0].mxu0
    %1049 = vmatprep.mubr.f32.mxu0 %v735
    %1050 = vmatmul.mubr.f32.gmra.mrb[0].mxu0 %v581
    %v1051 = vpop.f32.mrb[0].mxu0
    %v1052 = vadd.f32 0.0, %v1051
    %v1053 = vpop.f32.mrb[0].mxu0
    %1054 = vmatprep.mubr.f32.mxu0 %v738
    %1055 = vmatmul.mubr.f32.gmra.mrb[0].mxu0 %v583
    %v1056 = vpop.f32.mrb[0].mxu0
    %v1057 = vadd.f32 0.0, %v1056
    %v1058 = vpop.f32.mrb[0].mxu0
    %1059 = vmatprep.mubr.f32.mxu0 %v741
    %1060 = vmatmul.mubr.f32.gmra.mrb[0].mxu0 %v585
    %v1061 = vpop.f32.mrb[0].mxu0
    %v1062 = vadd.f32 0.0, %v1061
    %v1063 = vpop.f32.mrb[0].mxu0
    %1064 = vmatprep.mubr.f32.mxu0 %v744
    %1065 = vmatmul.mubr.f32.gmra.mrb[0].mxu0 %v587
    %v1066 = vpop.f32.mrb[0].mxu0
    %v1067 = vadd.f32 0.0, %v1066
    %v1068 = vpop.f32.mrb[0].mxu0
    %1069 = vmatprep.mubr.f32.mxu0 %v747
    %1070 = vmatmul.mubr.f32.gmra.mrb[0].mxu0 %v589
    %v1071 = vpop.f32.mrb[0].mxu0
    %v1072 = vadd.f32 0.0, %v1071
    %v1073 = vpop.f32.mrb[0].mxu0
    %1074 = vmatprep.mubr.f32.mxu0 %v750
    %1075 = vmatmul.mubr.f32.gmra.mrb[0].mxu0 %v591
    %v1076 = vpop.f32.mrb[0].mxu0
    %v1077 = vadd.f32 0.0, %v1076
    %v1078 = vpop.f32.mrb[0].mxu0
    %1079 = vmatprep.mubr.f32.mxu0 %v753
    %1080 = vmatmul.mubr.f32.gmra.mrb[0].mxu0 %v593
    %v1081 = vpop.f32.mrb[0].mxu0
    %v1082 = vadd.f32 0.0, %v1081
    %v1083 = vpop.f32.mrb[0].mxu0
    %1084 = vmatprep.mubr.f32.mxu0 %v756
    %1085 = vmatmul.mubr.f32.gmra.mrb[0].mxu0 %v595
    %v1086 = vpop.f32.mrb[0].mxu0
    %v1087 = vadd.f32 0.0, %v1086
    %v1088 = vpop.f32.mrb[0].mxu0
    %1089 = vmatprep.mubr.f32.mxu0 %v759
    %1090 = vmatmul.mubr.f32.gmra.mrb[0].mxu0 %v597
    %v1091 = vpop.f32.mrb[0].mxu0
    %v1092 = vadd.f32 0.0, %v1091
    %v1093 = vpop.f32.mrb[0].mxu0
    %1094 = vmatprep.mubr.f32.mxu0 %v762
    %1095 = vmatmul.mubr.f32.gmra.mrb[0].mxu0 %v599
    %v1096 = vpop.f32.mrb[0].mxu0
    %v1097 = vadd.f32 0.0, %v1096
    %v1098 = vpop.f32.mrb[0].mxu0
    %1099 = vmatprep.mubr.f32.mxu0 %v765
    %1100 = vmatmul.mubr.f32.gmra.mrb[0].mxu0 %v601
    %v1101 = vpop.f32.mrb[0].mxu0
    %v1102 = vadd.f32 0.0, %v1101
    %v1103 = vpop.f32.mrb[0].mxu0
    %1104 = vmatprep.mubr.f32.mxu0 %v768
    %1105 = vmatmul.mubr.f32.gmra.mrb[0].mxu0 %v603
    %v1106 = vpop.f32.mrb[0].mxu0
    %v1107 = vadd.f32 0.0, %v1106
    %v1108 = vpop.f32.mrb[0].mxu0
    %1109 = vmatprep.mubr.f32.mxu0 %v771
    %1110 = vmatmul.mubr.f32.gmra.mrb[0].mxu0 %v605
    %v1111 = vpop.f32.mrb[0].mxu0
    %v1112 = vadd.f32 0.0, %v1111
    %v1113 = vpop.f32.mrb[0].mxu0
    %1114 = vmatprep.mubr.f32.mxu0 %v774
    %1115 = vmatmul.mubr.f32.gmra.mrb[0].mxu0 %v607
    %v1116 = vpop.f32.mrb[0].mxu0
    %v1117 = vadd.f32 0.0, %v1116
    %v1118 = vpop.f32.mrb[0].mxu0
    %1119 = vmatprep.mubr.f32.mxu0 %v777
    %1120 = vmatmul.mubr.f32.gmra.mrb[0].mxu0 %v609
    %v1121 = vpop.f32.mrb[0].mxu0
    %v1122 = vadd.f32 0.0, %v1121
    %v1123 = vpop.f32.mrb[0].mxu0
    %1124 = vmatprep.mubr.f32.mxu0 %v780
    %1125 = vmatmul.mubr.f32.gmra.mrb[0].mxu0 %v611
    %v1126 = vpop.f32.mrb[0].mxu0
    %v1127 = vadd.f32 0.0, %v1126
    %v1128 = vpop.f32.mrb[0].mxu0
    %1129 = vmatprep.mubr.f32.mxu0 %v783
    %1130 = vmatmul.mubr.f32.gmra.mrb[0].mxu0 %v613
    %v1131 = vpop.f32.mrb[0].mxu0
    %v1132 = vadd.f32 0.0, %v1131
    %v1133 = vpop.f32.mrb[0].mxu0
    %1134 = vmatprep.mubr.f32.mxu0 %v786
    %1135 = vmatmul.mubr.f32.gmra.mrb[0].mxu0 %v615
    %v1136 = vpop.f32.mrb[0].mxu0
    %v1137 = vadd.f32 0.0, %v1136
    %v1138 = vpop.f32.mrb[0].mxu0
    %1139 = vmatprep.mubr.f32.mxu0 %v789
    %1140 = vmatmul.mubr.f32.gmra.mrb[0].mxu0 %v617
    %v1141 = vpop.f32.mrb[0].mxu0
    %v1142 = vadd.f32 0.0, %v1141
    %v1143 = vpop.f32.mrb[0].mxu0
    %1144 = vdwg.mxu0
    %v1145 = vld [vmem:[%s5] sm:$0x1]
    %v1147 = vlaneseq
    %v1148 = vshrl.u32 %v1147, 7
    %v1149 = vsub.s32 0, %v1148
    %v1150 = vrot.slane %v1145, %v1149
    %v1152 = vadd.f32 %v1150, 0.0
    %v1153 = vld [vmem:[%s4] sm:$0xff]
    %v1154 = vld [vmem:[%s4 + $0x8] sm:$0xff]
    %vm1155 = vcmask 130048
    %v1157 = vsel %vm1155, %v862, 0
    %v1160 = vsel %vm1155, %v867, 0
    %v1163 = vsel %vm1155, %v872, 0
    %v1166 = vsel %vm1155, %v877, 0
    %v1169 = vsel %vm1155, %v882, 0
    %v1172 = vsel %vm1155, %v887, 0
    %v1175 = vsel %vm1155, %v892, 0
    %1177 = vmatprep.subr.mxu0 0.0
    %1178 = vmatpush1.msra.mxu0 %v1153
    %1179 = vmatprep.subr.mxu0 0.0
    %1180 = vmatpush1.msra.mxu0 %v1154
    %1181 = vmatprep.subr.mxu0 0.0
    %1182 = vmatpush1.msra.mxu0 0.0
    %1183 = vmatprep.subr.mxu0 0.0
    %1184 = vmatpush1.msra.mxu0 0.0
    %1185 = vmatprep.subr.mxu0 0.0
    %1186 = vmatpush1.msra.mxu0 0.0
    %1187 = vmatprep.subr.mxu0 0.0
    %1188 = vmatpush1.msra.mxu0 0.0
    %1189 = vmatprep.subr.mxu0 0.0
    %1190 = vmatpush1.msra.mxu0 0.0
    %1191 = vmatprep.subr.mxu0 0.0
    %1192 = vmatpush1.msra.mxu0 0.0
    %1193 = vmatprep.subr.mxu0 0.0
    %1194 = vmatpush1.msra.mxu0 0.0
    %1195 = vmatprep.subr.mxu0 0.0
    %1196 = vmatpush1.msra.mxu0 0.0
    %1197 = vmatprep.subr.mxu0 0.0
    %1198 = vmatpush1.msra.mxu0 0.0
    %1199 = vmatprep.subr.mxu0 0.0
    %1200 = vmatpush1.msra.mxu0 0.0
    %1201 = vmatprep.subr.mxu0 0.0
    %1202 = vmatpush1.msra.mxu0 0.0
    %1203 = vmatprep.subr.mxu0 0.0
    %1204 = vmatpush1.msra.mxu0 0.0
    %1205 = vmatprep.subr.mxu0 0.0
    %1206 = vmatpush1.msra.mxu0 0.0
    %1207 = vmatprep.subr.mxu0 0.0
    %1208 = vmatpush1.msra.mxu0 0.0
    %1209 = vmatprep.subr.mxu0 0.0
    %1210 = vmatpush1.msra.mxu0 0.0
    %1211 = vmatprep.subr.mxu0 0.0
    %1212 = vmatpush1.msra.mxu0 0.0
    %1213 = vmatprep.subr.mxu0 0.0
    %1214 = vmatpush1.msra.mxu0 0.0
    %1215 = vmatprep.subr.mxu0 0.0
    %1216 = vmatpush1.msra.mxu0 0.0
    %1217 = vmatprep.subr.mxu0 0.0
    %1218 = vmatpush1.msra.mxu0 0.0
    %1219 = vmatprep.subr.mxu0 0.0
    %1220 = vmatpush1.msra.mxu0 0.0
    %1221 = vmatprep.subr.mxu0 0.0
    %1222 = vmatpush1.msra.mxu0 0.0
    %1223 = vmatprep.subr.mxu0 0.0
    %1224 = vmatpush1.msra.mxu0 0.0
    %1225 = vmatprep.subr.mxu0 0.0
    %1226 = vmatpush1.msra.mxu0 0.0
    %1227 = vmatprep.subr.mxu0 0.0
    %1228 = vmatpush1.msra.mxu0 0.0
    %1229 = vmatprep.subr.mxu0 0.0
    %1230 = vmatpush1.msra.mxu0 0.0
    %1231 = vmatprep.subr.mxu0 0.0
    %1232 = vmatpush1.msra.mxu0 0.0
    %1233 = vmatprep.subr.mxu0 0.0
    %1234 = vmatpush1.msra.mxu0 0.0
    %1235 = vmatprep.subr.mxu0 0.0
    %1236 = vmatpush1.msra.mxu0 0.0
    %1237 = vmatprep.subr.mxu0 0.0
    %1238 = vmatpush1.msra.mxu0 0.0
    %1239 = vmatprep.subr.mxu0 0.0
    %1240 = vmatpush1.msra.mxu0 0.0
    %1241 = vmatprep.mubr.f32.mxu0 0.0
    %1242 = vmatmul.mubr.f32.gmra.mrb[0].mxu0 %v1157
    %v1243 = vpop.f32.mrb[0].mxu0
    %v1244 = vadd.f32 0.0, %v1243
    %v1245 = vpop.f32.mrb[0].mxu0
    %1246 = vmatprep.mubr.f32.mxu0 0.0
    %1247 = vmatmul.mubr.f32.gmra.mrb[0].mxu0 %v1160
    %v1248 = vpop.f32.mrb[0].mxu0
    %v1249 = vadd.f32 0.0, %v1248
    %v1250 = vpop.f32.mrb[0].mxu0
    %1251 = vmatprep.mubr.f32.mxu0 0.0
    %1252 = vmatmul.mubr.f32.gmra.mrb[0].mxu0 %v1163
    %v1253 = vpop.f32.mrb[0].mxu0
    %v1254 = vadd.f32 0.0, %v1253
    %v1255 = vpop.f32.mrb[0].mxu0
    %1256 = vmatprep.mubr.f32.mxu0 0.0
    %1257 = vmatmul.mubr.f32.gmra.mrb[0].mxu0 %v1166
    %v1258 = vpop.f32.mrb[0].mxu0
    %v1259 = vadd.f32 0.0, %v1258
    %v1260 = vpop.f32.mrb[0].mxu0
    %1261 = vmatprep.mubr.f32.mxu0 0.0
    %1262 = vmatmul.mubr.f32.gmra.mrb[0].mxu0 %v1169
    %v1263 = vpop.f32.mrb[0].mxu0
    %v1264 = vadd.f32 0.0, %v1263
    %v1265 = vpop.f32.mrb[0].mxu0
    %1266 = vmatprep.mubr.f32.mxu0 0.0
    %1267 = vmatmul.mubr.f32.gmra.mrb[0].mxu0 %v1172
    %v1268 = vpop.f32.mrb[0].mxu0
    %v1269 = vadd.f32 0.0, %v1268
    %v1270 = vpop.f32.mrb[0].mxu0
    %1271 = vmatprep.mubr.f32.mxu0 0.0
    %1272 = vmatmul.mubr.f32.gmra.mrb[0].mxu0 %v1175
    %v1273 = vpop.f32.mrb[0].mxu0
    %v1274 = vadd.f32 0.0, %v1273
    %v1275 = vpop.f32.mrb[0].mxu0
    %1276 = vdwg.mxu0
    %v1277 = vadd.f32 %v1152, %v1244
    %v1278 = vadd.f32 %v1152, %v1249
    %v1279 = vadd.f32 %v1152, %v1254
    %v1280 = vadd.f32 %v1152, %v1259
    %v1281 = vadd.f32 %v1152, %v1264
    %v1282 = vadd.f32 %v1152, %v1269
    %v1283 = vadd.f32 %v1152, %v1274
    %v1284 = vld [vmem:[%s4 + $0x10] sm:$0xff]
    %v1285 = vld [vmem:[%s4 + $0x18] sm:$0xff]
    %vm1292 = vcmask 1045504
    %v1293 = vrot.slane %v892, 2
    %v1294 = vrot.slane %v897, 2
    %v1295 = vsel %vm1292, %v1293, %v1294
    %v1296 = vrot.slane %v902, 2
    %v1297 = vsel %vm1292, %v1294, %v1296
    %v1298 = vrot.slane %v907, 2
    %v1299 = vsel %vm1292, %v1296, %v1298
    %v1300 = vrot.slane %v912, 2
    %v1301 = vsel %vm1292, %v1298, %v1300
    %v1302 = vrot.slane %v917, 2
    %v1303 = vsel %vm1292, %v1300, %v1302
    %v1304 = vrot.slane %v922, 2
    %v1305 = vsel %vm1292, %v1302, %v1304
    %v1306 = vsel %vm1155, %v1295, 0
    %v1308 = vsel %vm1155, %v1297, 0
    %v1310 = vsel %vm1155, %v1299, 0
    %v1312 = vsel %vm1155, %v1301, 0
    %v1314 = vsel %vm1155, %v1303, 0
    %v1316 = vsel %vm1155, %v1305, 0
    %v1318 = vsel %vm1155, %v1304, 0
    %1320 = vmatprep.subr.mxu0 0.0
    %1321 = vmatpush1.msra.mxu0 %v1284
    %1322 = vmatprep.subr.mxu0 0.0
    %1323 = vmatpush1.msra.mxu0 %v1285
    %1324 = vmatprep.subr.mxu0 0.0
    %1325 = vmatpush1.msra.mxu0 0.0
    %1326 = vmatprep.subr.mxu0 0.0
    %1327 = vmatpush1.msra.mxu0 0.0
    %1328 = vmatprep.subr.mxu0 0.0
    %1329 = vmatpush1.msra.mxu0 0.0
    %1330 = vmatprep.subr.mxu0 0.0
    %1331 = vmatpush1.msra.mxu0 0.0
    %1332 = vmatprep.subr.mxu0 0.0
    %1333 = vmatpush1.msra.mxu0 0.0
    %1334 = vmatprep.subr.mxu0 0.0
    %1335 = vmatpush1.msra.mxu0 0.0
    %1336 = vmatprep.subr.mxu0 0.0
    %1337 = vmatpush1.msra.mxu0 0.0
    %1338 = vmatprep.subr.mxu0 0.0
    %1339 = vmatpush1.msra.mxu0 0.0
    %1340 = vmatprep.subr.mxu0 0.0
    %1341 = vmatpush1.msra.mxu0 0.0
    %1342 = vmatprep.subr.mxu0 0.0
    %1343 = vmatpush1.msra.mxu0 0.0
    %1344 = vmatprep.subr.mxu0 0.0
    %1345 = vmatpush1.msra.mxu0 0.0
    %1346 = vmatprep.subr.mxu0 0.0
    %1347 = vmatpush1.msra.mxu0 0.0
    %1348 = vmatprep.subr.mxu0 0.0
    %1349 = vmatpush1.msra.mxu0 0.0
    %1350 = vmatprep.subr.mxu0 0.0
    %1351 = vmatpush1.msra.mxu0 0.0
    %1352 = vmatprep.subr.mxu0 0.0
    %1353 = vmatpush1.msra.mxu0 0.0
    %1354 = vmatprep.subr.mxu0 0.0
    %1355 = vmatpush1.msra.mxu0 0.0
    %1356 = vmatprep.subr.mxu0 0.0
    %1357 = vmatpush1.msra.mxu0 0.0
    %1358 = vmatprep.subr.mxu0 0.0
    %1359 = vmatpush1.msra.mxu0 0.0
    %1360 = vmatprep.subr.mxu0 0.0
    %1361 = vmatpush1.msra.mxu0 0.0
    %1362 = vmatprep.subr.mxu0 0.0
    %1363 = vmatpush1.msra.mxu0 0.0
    %1364 = vmatprep.subr.mxu0 0.0
    %1365 = vmatpush1.msra.mxu0 0.0
    %1366 = vmatprep.subr.mxu0 0.0
    %1367 = vmatpush1.msra.mxu0 0.0
    %1368 = vmatprep.subr.mxu0 0.0
    %1369 = vmatpush1.msra.mxu0 0.0
    %1370 = vmatprep.subr.mxu0 0.0
    %1371 = vmatpush1.msra.mxu0 0.0
    %1372 = vmatprep.subr.mxu0 0.0
    %1373 = vmatpush1.msra.mxu0 0.0
    %1374 = vmatprep.subr.mxu0 0.0
    %1375 = vmatpush1.msra.mxu0 0.0
    %1376 = vmatprep.subr.mxu0 0.0
    %1377 = vmatpush1.msra.mxu0 0.0
    %1378 = vmatprep.subr.mxu0 0.0
    %1379 = vmatpush1.msra.mxu0 0.0
    %1380 = vmatprep.subr.mxu0 0.0
    %1381 = vmatpush1.msra.mxu0 0.0
    %1382 = vmatprep.subr.mxu0 0.0
    %1383 = vmatpush1.msra.mxu0 0.0
    %1384 = vmatprep.mubr.f32.mxu0 0.0
    %1385 = vmatmul.mubr.f32.gmra.mrb[0].mxu0 %v1306
    %v1386 = vpop.f32.mrb[0].mxu0
    %v1387 = vadd.f32 0.0, %v1386
    %v1388 = vpop.f32.mrb[0].mxu0
    %1389 = vmatprep.mubr.f32.mxu0 0.0
    %1390 = vmatmul.mubr.f32.gmra.mrb[0].mxu0 %v1308
    %v1391 = vpop.f32.mrb[0].mxu0
    %v1392 = vadd.f32 0.0, %v1391
    %v1393 = vpop.f32.mrb[0].mxu0
    %1394 = vmatprep.mubr.f32.mxu0 0.0
    %1395 = vmatmul.mubr.f32.gmra.mrb[0].mxu0 %v1310
    %v1396 = vpop.f32.mrb[0].mxu0
    %v1397 = vadd.f32 0.0, %v1396
    %v1398 = vpop.f32.mrb[0].mxu0
    %1399 = vmatprep.mubr.f32.mxu0 0.0
    %1400 = vmatmul.mubr.f32.gmra.mrb[0].mxu0 %v1312
    %v1401 = vpop.f32.mrb[0].mxu0
    %v1402 = vadd.f32 0.0, %v1401
    %v1403 = vpop.f32.mrb[0].mxu0
    %1404 = vmatprep.mubr.f32.mxu0 0.0
    %1405 = vmatmul.mubr.f32.gmra.mrb[0].mxu0 %v1314
    %v1406 = vpop.f32.mrb[0].mxu0
    %v1407 = vadd.f32 0.0, %v1406
    %v1408 = vpop.f32.mrb[0].mxu0
    %1409 = vmatprep.mubr.f32.mxu0 0.0
    %1410 = vmatmul.mubr.f32.gmra.mrb[0].mxu0 %v1316
    %v1411 = vpop.f32.mrb[0].mxu0
    %v1412 = vadd.f32 0.0, %v1411
    %v1413 = vpop.f32.mrb[0].mxu0
    %1414 = vmatprep.mubr.f32.mxu0 0.0
    %1415 = vmatmul.mubr.f32.gmra.mrb[0].mxu0 %v1318
    %v1416 = vpop.f32.mrb[0].mxu0
    %v1417 = vadd.f32 0.0, %v1416
    %v1418 = vpop.f32.mrb[0].mxu0
    %1419 = vdwg.mxu0
    %v1420 = vadd.f32 %v1277, %v1387
    %v1421 = vadd.f32 %v1278, %v1392
    %v1422 = vadd.f32 %v1279, %v1397
    %v1423 = vadd.f32 %v1280, %v1402
    %v1424 = vadd.f32 %v1281, %v1407
    %v1425 = vadd.f32 %v1282, %v1412
    %v1426 = vadd.f32 %v1283, %v1417
    %v1427 = vld [vmem:[%s4 + $0x20] sm:$0xff]
    %v1428 = vld [vmem:[%s4 + $0x28] sm:$0xff]
    %v1435 = vrot.slane %v922, 4
    %v1436 = vrot.slane %v927, 4
    %v1437 = vsel %vm253, %v1435, %v1436
    %v1438 = vrot.slane %v932, 4
    %v1439 = vsel %vm253, %v1436, %v1438
    %v1440 = vrot.slane %v937, 4
    %v1441 = vsel %vm253, %v1438, %v1440
    %v1442 = vrot.slane %v942, 4
    %v1443 = vsel %vm253, %v1440, %v1442
    %v1444 = vrot.slane %v947, 4
    %v1445 = vsel %vm253, %v1442, %v1444
    %v1446 = vrot.slane %v952, 4
    %v1447 = vsel %vm253, %v1444, %v1446
    %v1448 = vsel %vm1155, %v1437, 0
    %v1450 = vsel %vm1155, %v1439, 0
    %v1452 = vsel %vm1155, %v1441, 0
    %v1454 = vsel %vm1155, %v1443, 0
    %v1456 = vsel %vm1155, %v1445, 0
    %v1458 = vsel %vm1155, %v1447, 0
    %v1460 = vsel %vm1155, %v1446, 0
    %1462 = vmatprep.subr.mxu0 0.0
    %1463 = vmatpush1.msra.mxu0 %v1427
    %1464 = vmatprep.subr.mxu0 0.0
    %1465 = vmatpush1.msra.mxu0 %v1428
    %1466 = vmatprep.subr.mxu0 0.0
    %1467 = vmatpush1.msra.mxu0 0.0
    %1468 = vmatprep.subr.mxu0 0.0
    %1469 = vmatpush1.msra.mxu0 0.0
    %1470 = vmatprep.subr.mxu0 0.0
    %1471 = vmatpush1.msra.mxu0 0.0
    %1472 = vmatprep.subr.mxu0 0.0
    %1473 = vmatpush1.msra.mxu0 0.0
    %1474 = vmatprep.subr.mxu0 0.0
    %1475 = vmatpush1.msra.mxu0 0.0
    %1476 = vmatprep.subr.mxu0 0.0
    %1477 = vmatpush1.msra.mxu0 0.0
    %1478 = vmatprep.subr.mxu0 0.0
    %1479 = vmatpush1.msra.mxu0 0.0
    %1480 = vmatprep.subr.mxu0 0.0
    %1481 = vmatpush1.msra.mxu0 0.0
    %1482 = vmatprep.subr.mxu0 0.0
    %1483 = vmatpush1.msra.mxu0 0.0
    %1484 = vmatprep.subr.mxu0 0.0
    %1485 = vmatpush1.msra.mxu0 0.0
    %1486 = vmatprep.subr.mxu0 0.0
    %1487 = vmatpush1.msra.mxu0 0.0
    %1488 = vmatprep.subr.mxu0 0.0
    %1489 = vmatpush1.msra.mxu0 0.0
    %1490 = vmatprep.subr.mxu0 0.0
    %1491 = vmatpush1.msra.mxu0 0.0
    %1492 = vmatprep.subr.mxu0 0.0
    %1493 = vmatpush1.msra.mxu0 0.0
    %1494 = vmatprep.subr.mxu0 0.0
    %1495 = vmatpush1.msra.mxu0 0.0
    %1496 = vmatprep.subr.mxu0 0.0
    %1497 = vmatpush1.msra.mxu0 0.0
    %1498 = vmatprep.subr.mxu0 0.0
    %1499 = vmatpush1.msra.mxu0 0.0
    %1500 = vmatprep.subr.mxu0 0.0
    %1501 = vmatpush1.msra.mxu0 0.0
    %1502 = vmatprep.subr.mxu0 0.0
    %1503 = vmatpush1.msra.mxu0 0.0
    %1504 = vmatprep.subr.mxu0 0.0
    %1505 = vmatpush1.msra.mxu0 0.0
    %1506 = vmatprep.subr.mxu0 0.0
    %1507 = vmatpush1.msra.mxu0 0.0
    %1508 = vmatprep.subr.mxu0 0.0
    %1509 = vmatpush1.msra.mxu0 0.0
    %1510 = vmatprep.subr.mxu0 0.0
    %1511 = vmatpush1.msra.mxu0 0.0
    %1512 = vmatprep.subr.mxu0 0.0
    %1513 = vmatpush1.msra.mxu0 0.0
    %1514 = vmatprep.subr.mxu0 0.0
    %1515 = vmatpush1.msra.mxu0 0.0
    %1516 = vmatprep.subr.mxu0 0.0
    %1517 = vmatpush1.msra.mxu0 0.0
    %1518 = vmatprep.subr.mxu0 0.0
    %1519 = vmatpush1.msra.mxu0 0.0
    %1520 = vmatprep.subr.mxu0 0.0
    %1521 = vmatpush1.msra.mxu0 0.0
    %1522 = vmatprep.subr.mxu0 0.0
    %1523 = vmatpush1.msra.mxu0 0.0
    %1524 = vmatprep.subr.mxu0 0.0
    %1525 = vmatpush1.msra.mxu0 0.0
    %1526 = vmatprep.mubr.f32.mxu0 0.0
    %1527 = vmatmul.mubr.f32.gmra.mrb[0].mxu0 %v1448
    %v1528 = vpop.f32.mrb[0].mxu0
    %v1529 = vadd.f32 0.0, %v1528
    %v1530 = vpop.f32.mrb[0].mxu0
    %1531 = vmatprep.mubr.f32.mxu0 0.0
    %1532 = vmatmul.mubr.f32.gmra.mrb[0].mxu0 %v1450
    %v1533 = vpop.f32.mrb[0].mxu0
    %v1534 = vadd.f32 0.0, %v1533
    %v1535 = vpop.f32.mrb[0].mxu0
    %1536 = vmatprep.mubr.f32.mxu0 0.0
    %1537 = vmatmul.mubr.f32.gmra.mrb[0].mxu0 %v1452
    %v1538 = vpop.f32.mrb[0].mxu0
    %v1539 = vadd.f32 0.0, %v1538
    %v1540 = vpop.f32.mrb[0].mxu0
    %1541 = vmatprep.mubr.f32.mxu0 0.0
    %1542 = vmatmul.mubr.f32.gmra.mrb[0].mxu0 %v1454
    %v1543 = vpop.f32.mrb[0].mxu0
    %v1544 = vadd.f32 0.0, %v1543
    %v1545 = vpop.f32.mrb[0].mxu0
    %1546 = vmatprep.mubr.f32.mxu0 0.0
    %1547 = vmatmul.mubr.f32.gmra.mrb[0].mxu0 %v1456
    %v1548 = vpop.f32.mrb[0].mxu0
    %v1549 = vadd.f32 0.0, %v1548
    %v1550 = vpop.f32.mrb[0].mxu0
    %1551 = vmatprep.mubr.f32.mxu0 0.0
    %1552 = vmatmul.mubr.f32.gmra.mrb[0].mxu0 %v1458
    %v1553 = vpop.f32.mrb[0].mxu0
    %v1554 = vadd.f32 0.0, %v1553
    %v1555 = vpop.f32.mrb[0].mxu0
    %1556 = vmatprep.mubr.f32.mxu0 0.0
    %1557 = vmatmul.mubr.f32.gmra.mrb[0].mxu0 %v1460
    %v1558 = vpop.f32.mrb[0].mxu0
    %v1559 = vadd.f32 0.0, %v1558
    %v1560 = vpop.f32.mrb[0].mxu0
    %1561 = vdwg.mxu0
    %v1562 = vadd.f32 %v1420, %v1529
    %v1563 = vadd.f32 %v1421, %v1534
    %v1564 = vadd.f32 %v1422, %v1539
    %v1565 = vadd.f32 %v1423, %v1544
    %v1566 = vadd.f32 %v1424, %v1549
    %v1567 = vadd.f32 %v1425, %v1554
    %v1568 = vadd.f32 %v1426, %v1559
    %v1569 = vld [vmem:[%s4 + $0x30] sm:$0xff]
    %v1570 = vld [vmem:[%s4 + $0x38] sm:$0xff]
    %v1577 = vrot.slane %v952, 6
    %v1578 = vrot.slane %v957, 6
    %v1579 = vsel %vm791, %v1577, %v1578
    %v1580 = vrot.slane %v962, 6
    %v1581 = vsel %vm791, %v1578, %v1580
    %v1582 = vrot.slane %v967, 6
    %v1583 = vsel %vm791, %v1580, %v1582
    %v1584 = vrot.slane %v972, 6
    %v1585 = vsel %vm791, %v1582, %v1584
    %v1586 = vrot.slane %v977, 6
    %v1587 = vsel %vm791, %v1584, %v1586
    %v1588 = vrot.slane %v982, 6
    %v1589 = vsel %vm791, %v1586, %v1588
    %v1590 = vsel %vm1155, %v1579, 0
    %v1592 = vsel %vm1155, %v1581, 0
    %v1594 = vsel %vm1155, %v1583, 0
    %v1596 = vsel %vm1155, %v1585, 0
    %v1598 = vsel %vm1155, %v1587, 0
    %v1600 = vsel %vm1155, %v1589, 0
    %v1602 = vsel %vm1155, %v1588, 0
    %1604 = vmatprep.subr.mxu0 0.0
    %1605 = vmatpush1.msra.mxu0 %v1569
    %1606 = vmatprep.subr.mxu0 0.0
    %1607 = vmatpush1.msra.mxu0 %v1570
    %1608 = vmatprep.subr.mxu0 0.0
    %1609 = vmatpush1.msra.mxu0 0.0
    %1610 = vmatprep.subr.mxu0 0.0
    %1611 = vmatpush1.msra.mxu0 0.0
    %1612 = vmatprep.subr.mxu0 0.0
    %1613 = vmatpush1.msra.mxu0 0.0
    %1614 = vmatprep.subr.mxu0 0.0
    %1615 = vmatpush1.msra.mxu0 0.0
    %1616 = vmatprep.subr.mxu0 0.0
    %1617 = vmatpush1.msra.mxu0 0.0
    %1618 = vmatprep.subr.mxu0 0.0
    %1619 = vmatpush1.msra.mxu0 0.0
    %1620 = vmatprep.subr.mxu0 0.0
    %1621 = vmatpush1.msra.mxu0 0.0
    %1622 = vmatprep.subr.mxu0 0.0
    %1623 = vmatpush1.msra.mxu0 0.0
    %1624 = vmatprep.subr.mxu0 0.0
    %1625 = vmatpush1.msra.mxu0 0.0
    %1626 = vmatprep.subr.mxu0 0.0
    %1627 = vmatpush1.msra.mxu0 0.0
    %1628 = vmatprep.subr.mxu0 0.0
    %1629 = vmatpush1.msra.mxu0 0.0
    %1630 = vmatprep.subr.mxu0 0.0
    %1631 = vmatpush1.msra.mxu0 0.0
    %1632 = vmatprep.subr.mxu0 0.0
    %1633 = vmatpush1.msra.mxu0 0.0
    %1634 = vmatprep.subr.mxu0 0.0
    %1635 = vmatpush1.msra.mxu0 0.0
    %1636 = vmatprep.subr.mxu0 0.0
    %1637 = vmatpush1.msra.mxu0 0.0
    %1638 = vmatprep.subr.mxu0 0.0
    %1639 = vmatpush1.msra.mxu0 0.0
    %1640 = vmatprep.subr.mxu0 0.0
    %1641 = vmatpush1.msra.mxu0 0.0
    %1642 = vmatprep.subr.mxu0 0.0
    %1643 = vmatpush1.msra.mxu0 0.0
    %1644 = vmatprep.subr.mxu0 0.0
    %1645 = vmatpush1.msra.mxu0 0.0
    %1646 = vmatprep.subr.mxu0 0.0
    %1647 = vmatpush1.msra.mxu0 0.0
    %1648 = vmatprep.subr.mxu0 0.0
    %1649 = vmatpush1.msra.mxu0 0.0
    %1650 = vmatprep.subr.mxu0 0.0
    %1651 = vmatpush1.msra.mxu0 0.0
    %1652 = vmatprep.subr.mxu0 0.0
    %1653 = vmatpush1.msra.mxu0 0.0
    %1654 = vmatprep.subr.mxu0 0.0
    %1655 = vmatpush1.msra.mxu0 0.0
    %1656 = vmatprep.subr.mxu0 0.0
    %1657 = vmatpush1.msra.mxu0 0.0
    %1658 = vmatprep.subr.mxu0 0.0
    %1659 = vmatpush1.msra.mxu0 0.0
    %1660 = vmatprep.subr.mxu0 0.0
    %1661 = vmatpush1.msra.mxu0 0.0
    %1662 = vmatprep.subr.mxu0 0.0
    %1663 = vmatpush1.msra.mxu0 0.0
    %1664 = vmatprep.subr.mxu0 0.0
    %1665 = vmatpush1.msra.mxu0 0.0
    %1666 = vmatprep.subr.mxu0 0.0
    %1667 = vmatpush1.msra.mxu0 0.0
    %1668 = vmatprep.mubr.f32.mxu0 0.0
    %1669 = vmatmul.mubr.f32.gmra.mrb[0].mxu0 %v1590
    %v1670 = vpop.f32.mrb[0].mxu0
    %v1671 = vadd.f32 0.0, %v1670
    %v1672 = vpop.f32.mrb[0].mxu0
    %1673 = vmatprep.mubr.f32.mxu0 0.0
    %1674 = vmatmul.mubr.f32.gmra.mrb[0].mxu0 %v1592
    %v1675 = vpop.f32.mrb[0].mxu0
    %v1676 = vadd.f32 0.0, %v1675
    %v1677 = vpop.f32.mrb[0].mxu0
    %1678 = vmatprep.mubr.f32.mxu0 0.0
    %1679 = vmatmul.mubr.f32.gmra.mrb[0].mxu0 %v1594
    %v1680 = vpop.f32.mrb[0].mxu0
    %v1681 = vadd.f32 0.0, %v1680
    %v1682 = vpop.f32.mrb[0].mxu0
    %1683 = vmatprep.mubr.f32.mxu0 0.0
    %1684 = vmatmul.mubr.f32.gmra.mrb[0].mxu0 %v1596
    %v1685 = vpop.f32.mrb[0].mxu0
    %v1686 = vadd.f32 0.0, %v1685
    %v1687 = vpop.f32.mrb[0].mxu0
    %1688 = vmatprep.mubr.f32.mxu0 0.0
    %1689 = vmatmul.mubr.f32.gmra.mrb[0].mxu0 %v1598
    %v1690 = vpop.f32.mrb[0].mxu0
    %v1691 = vadd.f32 0.0, %v1690
    %v1692 = vpop.f32.mrb[0].mxu0
    %1693 = vmatprep.mubr.f32.mxu0 0.0
    %1694 = vmatmul.mubr.f32.gmra.mrb[0].mxu0 %v1600
    %v1695 = vpop.f32.mrb[0].mxu0
    %v1696 = vadd.f32 0.0, %v1695
    %v1697 = vpop.f32.mrb[0].mxu0
    %1698 = vmatprep.mubr.f32.mxu0 0.0
    %1699 = vmatmul.mubr.f32.gmra.mrb[0].mxu0 %v1602
    %v1700 = vpop.f32.mrb[0].mxu0
    %v1701 = vadd.f32 0.0, %v1700
    %v1702 = vpop.f32.mrb[0].mxu0
    %1703 = vdwg.mxu0
    %v1704 = vadd.f32 %v1562, %v1671
    %v1705 = vadd.f32 %v1563, %v1676
    %v1706 = vadd.f32 %v1564, %v1681
    %v1707 = vadd.f32 %v1565, %v1686
    %v1708 = vadd.f32 %v1566, %v1691
    %v1709 = vadd.f32 %v1567, %v1696
    %v1710 = vadd.f32 %v1568, %v1701
    %v1711 = vld [vmem:[%s4 + $0x40] sm:$0xff]
    %v1712 = vld [vmem:[%s4 + $0x48] sm:$0xff]
    %v1714 = vsel %vm1155, %v987, 0
    %v1717 = vsel %vm1155, %v992, 0
    %v1720 = vsel %vm1155, %v997, 0
    %v1723 = vsel %vm1155, %v1002, 0
    %v1726 = vsel %vm1155, %v1007, 0
    %v1729 = vsel %vm1155, %v1012, 0
    %v1732 = vsel %vm1155, %v1017, 0
    %1734 = vmatprep.subr.mxu0 0.0
    %1735 = vmatpush1.msra.mxu0 %v1711
    %1736 = vmatprep.subr.mxu0 0.0
    %1737 = vmatpush1.msra.mxu0 %v1712
    %1738 = vmatprep.subr.mxu0 0.0
    %1739 = vmatpush1.msra.mxu0 0.0
    %1740 = vmatprep.subr.mxu0 0.0
    %1741 = vmatpush1.msra.mxu0 0.0
    %1742 = vmatprep.subr.mxu0 0.0
    %1743 = vmatpush1.msra.mxu0 0.0
    %1744 = vmatprep.subr.mxu0 0.0
    %1745 = vmatpush1.msra.mxu0 0.0
    %1746 = vmatprep.subr.mxu0 0.0
    %1747 = vmatpush1.msra.mxu0 0.0
    %1748 = vmatprep.subr.mxu0 0.0
    %1749 = vmatpush1.msra.mxu0 0.0
    %1750 = vmatprep.subr.mxu0 0.0
    %1751 = vmatpush1.msra.mxu0 0.0
    %1752 = vmatprep.subr.mxu0 0.0
    %1753 = vmatpush1.msra.mxu0 0.0
    %1754 = vmatprep.subr.mxu0 0.0
    %1755 = vmatpush1.msra.mxu0 0.0
    %1756 = vmatprep.subr.mxu0 0.0
    %1757 = vmatpush1.msra.mxu0 0.0
    %1758 = vmatprep.subr.mxu0 0.0
    %1759 = vmatpush1.msra.mxu0 0.0
    %1760 = vmatprep.subr.mxu0 0.0
    %1761 = vmatpush1.msra.mxu0 0.0
    %1762 = vmatprep.subr.mxu0 0.0
    %1763 = vmatpush1.msra.mxu0 0.0
    %1764 = vmatprep.subr.mxu0 0.0
    %1765 = vmatpush1.msra.mxu0 0.0
    %1766 = vmatprep.subr.mxu0 0.0
    %1767 = vmatpush1.msra.mxu0 0.0
    %1768 = vmatprep.subr.mxu0 0.0
    %1769 = vmatpush1.msra.mxu0 0.0
    %1770 = vmatprep.subr.mxu0 0.0
    %1771 = vmatpush1.msra.mxu0 0.0
    %1772 = vmatprep.subr.mxu0 0.0
    %1773 = vmatpush1.msra.mxu0 0.0
    %1774 = vmatprep.subr.mxu0 0.0
    %1775 = vmatpush1.msra.mxu0 0.0
    %1776 = vmatprep.subr.mxu0 0.0
    %1777 = vmatpush1.msra.mxu0 0.0
    %1778 = vmatprep.subr.mxu0 0.0
    %1779 = vmatpush1.msra.mxu0 0.0
    %1780 = vmatprep.subr.mxu0 0.0
    %1781 = vmatpush1.msra.mxu0 0.0
    %1782 = vmatprep.subr.mxu0 0.0
    %1783 = vmatpush1.msra.mxu0 0.0
    %1784 = vmatprep.subr.mxu0 0.0
    %1785 = vmatpush1.msra.mxu0 0.0
    %1786 = vmatprep.subr.mxu0 0.0
    %1787 = vmatpush1.msra.mxu0 0.0
    %1788 = vmatprep.subr.mxu0 0.0
    %1789 = vmatpush1.msra.mxu0 0.0
    %1790 = vmatprep.subr.mxu0 0.0
    %1791 = vmatpush1.msra.mxu0 0.0
    %1792 = vmatprep.subr.mxu0 0.0
    %1793 = vmatpush1.msra.mxu0 0.0
    %1794 = vmatprep.subr.mxu0 0.0
    %1795 = vmatpush1.msra.mxu0 0.0
    %1796 = vmatprep.subr.mxu0 0.0
    %1797 = vmatpush1.msra.mxu0 0.0
    %1798 = vmatprep.mubr.f32.mxu0 0.0
    %1799 = vmatmul.mubr.f32.gmra.mrb[0].mxu0 %v1714
    %v1800 = vpop.f32.mrb[0].mxu0
    %v1801 = vadd.f32 0.0, %v1800
    %v1802 = vpop.f32.mrb[0].mxu0
    %1803 = vmatprep.mubr.f32.mxu0 0.0
    %1804 = vmatmul.mubr.f32.gmra.mrb[0].mxu0 %v1717
    %v1805 = vpop.f32.mrb[0].mxu0
    %v1806 = vadd.f32 0.0, %v1805
    %v1807 = vpop.f32.mrb[0].mxu0
    %1808 = vmatprep.mubr.f32.mxu0 0.0
    %1809 = vmatmul.mubr.f32.gmra.mrb[0].mxu0 %v1720
    %v1810 = vpop.f32.mrb[0].mxu0
    %v1811 = vadd.f32 0.0, %v1810
    %v1812 = vpop.f32.mrb[0].mxu0
    %1813 = vmatprep.mubr.f32.mxu0 0.0
    %1814 = vmatmul.mubr.f32.gmra.mrb[0].mxu0 %v1723
    %v1815 = vpop.f32.mrb[0].mxu0
    %v1816 = vadd.f32 0.0, %v1815
    %v1817 = vpop.f32.mrb[0].mxu0
    %1818 = vmatprep.mubr.f32.mxu0 0.0
    %1819 = vmatmul.mubr.f32.gmra.mrb[0].mxu0 %v1726
    %v1820 = vpop.f32.mrb[0].mxu0
    %v1821 = vadd.f32 0.0, %v1820
    %v1822 = vpop.f32.mrb[0].mxu0
    %1823 = vmatprep.mubr.f32.mxu0 0.0
    %1824 = vmatmul.mubr.f32.gmra.mrb[0].mxu0 %v1729
    %v1825 = vpop.f32.mrb[0].mxu0
    %v1826 = vadd.f32 0.0, %v1825
    %v1827 = vpop.f32.mrb[0].mxu0
    %1828 = vmatprep.mubr.f32.mxu0 0.0
    %1829 = vmatmul.mubr.f32.gmra.mrb[0].mxu0 %v1732
    %v1830 = vpop.f32.mrb[0].mxu0
    %v1831 = vadd.f32 0.0, %v1830
    %v1832 = vpop.f32.mrb[0].mxu0
    %1833 = vdwg.mxu0
    %v1834 = vadd.f32 %v1704, %v1801
    %v1835 = vadd.f32 %v1705, %v1806
    %v1836 = vadd.f32 %v1706, %v1811
    %v1837 = vadd.f32 %v1707, %v1816
    %v1838 = vadd.f32 %v1708, %v1821
    %v1839 = vadd.f32 %v1709, %v1826
    %v1840 = vadd.f32 %v1710, %v1831
    %v1841 = vld [vmem:[%s4 + $0x50] sm:$0xff]
    %v1842 = vld [vmem:[%s4 + $0x58] sm:$0xff]
    %v1849 = vrot.slane %v1017, 2
    %v1850 = vrot.slane %v1022, 2
    %v1851 = vsel %vm1292, %v1849, %v1850
    %v1852 = vrot.slane %v1027, 2
    %v1853 = vsel %vm1292, %v1850, %v1852
    %v1854 = vrot.slane %v1032, 2
    %v1855 = vsel %vm1292, %v1852, %v1854
    %v1856 = vrot.slane %v1037, 2
    %v1857 = vsel %vm1292, %v1854, %v1856
    %v1858 = vrot.slane %v1042, 2
    %v1859 = vsel %vm1292, %v1856, %v1858
    %v1860 = vrot.slane %v1047, 2
    %v1861 = vsel %vm1292, %v1858, %v1860
    %v1862 = vsel %vm1155, %v1851, 0
    %v1864 = vsel %vm1155, %v1853, 0
    %v1866 = vsel %vm1155, %v1855, 0
    %v1868 = vsel %vm1155, %v1857, 0
    %v1870 = vsel %vm1155, %v1859, 0
    %v1872 = vsel %vm1155, %v1861, 0
    %v1874 = vsel %vm1155, %v1860, 0
    %1876 = vmatprep.subr.mxu0 0.0
    %1877 = vmatpush1.msra.mxu0 %v1841
    %1878 = vmatprep.subr.mxu0 0.0
    %1879 = vmatpush1.msra.mxu0 %v1842
    %1880 = vmatprep.subr.mxu0 0.0
    %1881 = vmatpush1.msra.mxu0 0.0
    %1882 = vmatprep.subr.mxu0 0.0
    %1883 = vmatpush1.msra.mxu0 0.0
    %1884 = vmatprep.subr.mxu0 0.0
    %1885 = vmatpush1.msra.mxu0 0.0
    %1886 = vmatprep.subr.mxu0 0.0
    %1887 = vmatpush1.msra.mxu0 0.0
    %1888 = vmatprep.subr.mxu0 0.0
    %1889 = vmatpush1.msra.mxu0 0.0
    %1890 = vmatprep.subr.mxu0 0.0
    %1891 = vmatpush1.msra.mxu0 0.0
    %1892 = vmatprep.subr.mxu0 0.0
    %1893 = vmatpush1.msra.mxu0 0.0
    %1894 = vmatprep.subr.mxu0 0.0
    %1895 = vmatpush1.msra.mxu0 0.0
    %1896 = vmatprep.subr.mxu0 0.0
    %1897 = vmatpush1.msra.mxu0 0.0
    %1898 = vmatprep.subr.mxu0 0.0
    %1899 = vmatpush1.msra.mxu0 0.0
    %1900 = vmatprep.subr.mxu0 0.0
    %1901 = vmatpush1.msra.mxu0 0.0
    %1902 = vmatprep.subr.mxu0 0.0
    %1903 = vmatpush1.msra.mxu0 0.0
    %1904 = vmatprep.subr.mxu0 0.0
    %1905 = vmatpush1.msra.mxu0 0.0
    %1906 = vmatprep.subr.mxu0 0.0
    %1907 = vmatpush1.msra.mxu0 0.0
    %1908 = vmatprep.subr.mxu0 0.0
    %1909 = vmatpush1.msra.mxu0 0.0
    %1910 = vmatprep.subr.mxu0 0.0
    %1911 = vmatpush1.msra.mxu0 0.0
    %1912 = vmatprep.subr.mxu0 0.0
    %1913 = vmatpush1.msra.mxu0 0.0
    %1914 = vmatprep.subr.mxu0 0.0
    %1915 = vmatpush1.msra.mxu0 0.0
    %1916 = vmatprep.subr.mxu0 0.0
    %1917 = vmatpush1.msra.mxu0 0.0
    %1918 = vmatprep.subr.mxu0 0.0
    %1919 = vmatpush1.msra.mxu0 0.0
    %1920 = vmatprep.subr.mxu0 0.0
    %1921 = vmatpush1.msra.mxu0 0.0
    %1922 = vmatprep.subr.mxu0 0.0
    %1923 = vmatpush1.msra.mxu0 0.0
    %1924 = vmatprep.subr.mxu0 0.0
    %1925 = vmatpush1.msra.mxu0 0.0
    %1926 = vmatprep.subr.mxu0 0.0
    %1927 = vmatpush1.msra.mxu0 0.0
    %1928 = vmatprep.subr.mxu0 0.0
    %1929 = vmatpush1.msra.mxu0 0.0
    %1930 = vmatprep.subr.mxu0 0.0
    %1931 = vmatpush1.msra.mxu0 0.0
    %1932 = vmatprep.subr.mxu0 0.0
    %1933 = vmatpush1.msra.mxu0 0.0
    %1934 = vmatprep.subr.mxu0 0.0
    %1935 = vmatpush1.msra.mxu0 0.0
    %1936 = vmatprep.subr.mxu0 0.0
    %1937 = vmatpush1.msra.mxu0 0.0
    %1938 = vmatprep.subr.mxu0 0.0
    %1939 = vmatpush1.msra.mxu0 0.0
    %1940 = vmatprep.mubr.f32.mxu0 0.0
    %1941 = vmatmul.mubr.f32.gmra.mrb[0].mxu0 %v1862
    %v1942 = vpop.f32.mrb[0].mxu0
    %v1943 = vadd.f32 0.0, %v1942
    %v1944 = vpop.f32.mrb[0].mxu0
    %1945 = vmatprep.mubr.f32.mxu0 0.0
    %1946 = vmatmul.mubr.f32.gmra.mrb[0].mxu0 %v1864
    %v1947 = vpop.f32.mrb[0].mxu0
    %v1948 = vadd.f32 0.0, %v1947
    %v1949 = vpop.f32.mrb[0].mxu0
    %1950 = vmatprep.mubr.f32.mxu0 0.0
    %1951 = vmatmul.mubr.f32.gmra.mrb[0].mxu0 %v1866
    %v1952 = vpop.f32.mrb[0].mxu0
    %v1953 = vadd.f32 0.0, %v1952
    %v1954 = vpop.f32.mrb[0].mxu0
    %1955 = vmatprep.mubr.f32.mxu0 0.0
    %1956 = vmatmul.mubr.f32.gmra.mrb[0].mxu0 %v1868
    %v1957 = vpop.f32.mrb[0].mxu0
    %v1958 = vadd.f32 0.0, %v1957
    %v1959 = vpop.f32.mrb[0].mxu0
    %1960 = vmatprep.mubr.f32.mxu0 0.0
    %1961 = vmatmul.mubr.f32.gmra.mrb[0].mxu0 %v1870
    %v1962 = vpop.f32.mrb[0].mxu0
    %v1963 = vadd.f32 0.0, %v1962
    %v1964 = vpop.f32.mrb[0].mxu0
    %1965 = vmatprep.mubr.f32.mxu0 0.0
    %1966 = vmatmul.mubr.f32.gmra.mrb[0].mxu0 %v1872
    %v1967 = vpop.f32.mrb[0].mxu0
    %v1968 = vadd.f32 0.0, %v1967
    %v1969 = vpop.f32.mrb[0].mxu0
    %1970 = vmatprep.mubr.f32.mxu0 0.0
    %1971 = vmatmul.mubr.f32.gmra.mrb[0].mxu0 %v1874
    %v1972 = vpop.f32.mrb[0].mxu0
    %v1973 = vadd.f32 0.0, %v1972
    %v1974 = vpop.f32.mrb[0].mxu0
    %1975 = vdwg.mxu0
    %v1976 = vadd.f32 %v1834, %v1943
    %v1977 = vadd.f32 %v1835, %v1948
    %v1978 = vadd.f32 %v1836, %v1953
    %v1979 = vadd.f32 %v1837, %v1958
    %v1980 = vadd.f32 %v1838, %v1963
    %v1981 = vadd.f32 %v1839, %v1968
    %v1982 = vadd.f32 %v1840, %v1973
    %v1983 = vld [vmem:[%s4 + $0x60] sm:$0xff]
    %v1984 = vld [vmem:[%s4 + $0x68] sm:$0xff]
    %v1991 = vrot.slane %v1047, 4
    %v1992 = vrot.slane %v1052, 4
    %v1993 = vsel %vm253, %v1991, %v1992
    %v1994 = vrot.slane %v1057, 4
    %v1995 = vsel %vm253, %v1992, %v1994
    %v1996 = vrot.slane %v1062, 4
    %v1997 = vsel %vm253, %v1994, %v1996
    %v1998 = vrot.slane %v1067, 4
    %v1999 = vsel %vm253, %v1996, %v1998
    %v2000 = vrot.slane %v1072, 4
    %v2001 = vsel %vm253, %v1998, %v2000
    %v2002 = vrot.slane %v1077, 4
    %v2003 = vsel %vm253, %v2000, %v2002
    %v2004 = vsel %vm1155, %v1993, 0
    %v2006 = vsel %vm1155, %v1995, 0
    %v2008 = vsel %vm1155, %v1997, 0
    %v2010 = vsel %vm1155, %v1999, 0
    %v2012 = vsel %vm1155, %v2001, 0
    %v2014 = vsel %vm1155, %v2003, 0
    %v2016 = vsel %vm1155, %v2002, 0
    %2018 = vmatprep.subr.mxu0 0.0
    %2019 = vmatpush1.msra.mxu0 %v1983
    %2020 = vmatprep.subr.mxu0 0.0
    %2021 = vmatpush1.msra.mxu0 %v1984
    %2022 = vmatprep.subr.mxu0 0.0
    %2023 = vmatpush1.msra.mxu0 0.0
    %2024 = vmatprep.subr.mxu0 0.0
    %2025 = vmatpush1.msra.mxu0 0.0
    %2026 = vmatprep.subr.mxu0 0.0
    %2027 = vmatpush1.msra.mxu0 0.0
    %2028 = vmatprep.subr.mxu0 0.0
    %2029 = vmatpush1.msra.mxu0 0.0
    %2030 = vmatprep.subr.mxu0 0.0
    %2031 = vmatpush1.msra.mxu0 0.0
    %2032 = vmatprep.subr.mxu0 0.0
    %2033 = vmatpush1.msra.mxu0 0.0
    %2034 = vmatprep.subr.mxu0 0.0
    %2035 = vmatpush1.msra.mxu0 0.0
    %2036 = vmatprep.subr.mxu0 0.0
    %2037 = vmatpush1.msra.mxu0 0.0
    %2038 = vmatprep.subr.mxu0 0.0
    %2039 = vmatpush1.msra.mxu0 0.0
    %2040 = vmatprep.subr.mxu0 0.0
    %2041 = vmatpush1.msra.mxu0 0.0
    %2042 = vmatprep.subr.mxu0 0.0
    %2043 = vmatpush1.msra.mxu0 0.0
    %2044 = vmatprep.subr.mxu0 0.0
    %2045 = vmatpush1.msra.mxu0 0.0
    %2046 = vmatprep.subr.mxu0 0.0
    %2047 = vmatpush1.msra.mxu0 0.0
    %2048 = vmatprep.subr.mxu0 0.0
    %2049 = vmatpush1.msra.mxu0 0.0
    %2050 = vmatprep.subr.mxu0 0.0
    %2051 = vmatpush1.msra.mxu0 0.0
    %2052 = vmatprep.subr.mxu0 0.0
    %2053 = vmatpush1.msra.mxu0 0.0
    %2054 = vmatprep.subr.mxu0 0.0
    %2055 = vmatpush1.msra.mxu0 0.0
    %2056 = vmatprep.subr.mxu0 0.0
    %2057 = vmatpush1.msra.mxu0 0.0
    %2058 = vmatprep.subr.mxu0 0.0
    %2059 = vmatpush1.msra.mxu0 0.0
    %2060 = vmatprep.subr.mxu0 0.0
    %2061 = vmatpush1.msra.mxu0 0.0
    %2062 = vmatprep.subr.mxu0 0.0
    %2063 = vmatpush1.msra.mxu0 0.0
    %2064 = vmatprep.subr.mxu0 0.0
    %2065 = vmatpush1.msra.mxu0 0.0
    %2066 = vmatprep.subr.mxu0 0.0
    %2067 = vmatpush1.msra.mxu0 0.0
    %2068 = vmatprep.subr.mxu0 0.0
    %2069 = vmatpush1.msra.mxu0 0.0
    %2070 = vmatprep.subr.mxu0 0.0
    %2071 = vmatpush1.msra.mxu0 0.0
    %2072 = vmatprep.subr.mxu0 0.0
    %2073 = vmatpush1.msra.mxu0 0.0
    %2074 = vmatprep.subr.mxu0 0.0
    %2075 = vmatpush1.msra.mxu0 0.0
    %2076 = vmatprep.subr.mxu0 0.0
    %2077 = vmatpush1.msra.mxu0 0.0
    %2078 = vmatprep.subr.mxu0 0.0
    %2079 = vmatpush1.msra.mxu0 0.0
    %2080 = vmatprep.subr.mxu0 0.0
    %2081 = vmatpush1.msra.mxu0 0.0
    %2082 = vmatprep.mubr.f32.mxu0 0.0
    %2083 = vmatmul.mubr.f32.gmra.mrb[0].mxu0 %v2004
    %v2084 = vpop.f32.mrb[0].mxu0
    %v2085 = vadd.f32 0.0, %v2084
    %v2086 = vpop.f32.mrb[0].mxu0
    %2087 = vmatprep.mubr.f32.mxu0 0.0
    %2088 = vmatmul.mubr.f32.gmra.mrb[0].mxu0 %v2006
    %v2089 = vpop.f32.mrb[0].mxu0
    %v2090 = vadd.f32 0.0, %v2089
    %v2091 = vpop.f32.mrb[0].mxu0
    %2092 = vmatprep.mubr.f32.mxu0 0.0
    %2093 = vmatmul.mubr.f32.gmra.mrb[0].mxu0 %v2008
    %v2094 = vpop.f32.mrb[0].mxu0
    %v2095 = vadd.f32 0.0, %v2094
    %v2096 = vpop.f32.mrb[0].mxu0
    %2097 = vmatprep.mubr.f32.mxu0 0.0
    %2098 = vmatmul.mubr.f32.gmra.mrb[0].mxu0 %v2010
    %v2099 = vpop.f32.mrb[0].mxu0
    %v2100 = vadd.f32 0.0, %v2099
    %v2101 = vpop.f32.mrb[0].mxu0
    %2102 = vmatprep.mubr.f32.mxu0 0.0
    %2103 = vmatmul.mubr.f32.gmra.mrb[0].mxu0 %v2012
    %v2104 = vpop.f32.mrb[0].mxu0
    %v2105 = vadd.f32 0.0, %v2104
    %v2106 = vpop.f32.mrb[0].mxu0
    %2107 = vmatprep.mubr.f32.mxu0 0.0
    %2108 = vmatmul.mubr.f32.gmra.mrb[0].mxu0 %v2014
    %v2109 = vpop.f32.mrb[0].mxu0
    %v2110 = vadd.f32 0.0, %v2109
    %v2111 = vpop.f32.mrb[0].mxu0
    %2112 = vmatprep.mubr.f32.mxu0 0.0
    %2113 = vmatmul.mubr.f32.gmra.mrb[0].mxu0 %v2016
    %v2114 = vpop.f32.mrb[0].mxu0
    %v2115 = vadd.f32 0.0, %v2114
    %v2116 = vpop.f32.mrb[0].mxu0
    %2117 = vdwg.mxu0
    %v2118 = vadd.f32 %v1976, %v2085
    %v2119 = vadd.f32 %v1977, %v2090
    %v2120 = vadd.f32 %v1978, %v2095
    %v2121 = vadd.f32 %v1979, %v2100
    %v2122 = vadd.f32 %v1980, %v2105
    %v2123 = vadd.f32 %v1981, %v2110
    %v2124 = vadd.f32 %v1982, %v2115
    %v2125 = vld [vmem:[%s4 + $0x70] sm:$0xff]
    %v2126 = vld [vmem:[%s4 + $0x78] sm:$0xff]
    %v2133 = vrot.slane %v1077, 6
    %v2134 = vrot.slane %v1082, 6
    %v2135 = vsel %vm791, %v2133, %v2134
    %v2136 = vrot.slane %v1087, 6
    %v2137 = vsel %vm791, %v2134, %v2136
    %v2138 = vrot.slane %v1092, 6
    %v2139 = vsel %vm791, %v2136, %v2138
    %v2140 = vrot.slane %v1097, 6
    %v2141 = vsel %vm791, %v2138, %v2140
    %v2142 = vrot.slane %v1102, 6
    %v2143 = vsel %vm791, %v2140, %v2142
    %v2144 = vrot.slane %v1107, 6
    %v2145 = vsel %vm791, %v2142, %v2144
    %v2146 = vsel %vm1155, %v2135, 0
    %v2148 = vsel %vm1155, %v2137, 0
    %v2150 = vsel %vm1155, %v2139, 0
    %v2152 = vsel %vm1155, %v2141, 0
    %v2154 = vsel %vm1155, %v2143, 0
    %v2156 = vsel %vm1155, %v2145, 0
    %v2158 = vsel %vm1155, %v2144, 0
    %2160 = vmatprep.subr.mxu0 0.0
    %2161 = vmatpush1.msra.mxu0 %v2125
    %2162 = vmatprep.subr.mxu0 0.0
    %2163 = vmatpush1.msra.mxu0 %v2126
    %2164 = vmatprep.subr.mxu0 0.0
    %2165 = vmatpush1.msra.mxu0 0.0
    %2166 = vmatprep.subr.mxu0 0.0
    %2167 = vmatpush1.msra.mxu0 0.0
    %2168 = vmatprep.subr.mxu0 0.0
    %2169 = vmatpush1.msra.mxu0 0.0
    %2170 = vmatprep.subr.mxu0 0.0
    %2171 = vmatpush1.msra.mxu0 0.0
    %2172 = vmatprep.subr.mxu0 0.0
    %2173 = vmatpush1.msra.mxu0 0.0
    %2174 = vmatprep.subr.mxu0 0.0
    %2175 = vmatpush1.msra.mxu0 0.0
    %2176 = vmatprep.subr.mxu0 0.0
    %2177 = vmatpush1.msra.mxu0 0.0
    %2178 = vmatprep.subr.mxu0 0.0
    %2179 = vmatpush1.msra.mxu0 0.0
    %2180 = vmatprep.subr.mxu0 0.0
    %2181 = vmatpush1.msra.mxu0 0.0
    %2182 = vmatprep.subr.mxu0 0.0
    %2183 = vmatpush1.msra.mxu0 0.0
    %2184 = vmatprep.subr.mxu0 0.0
    %2185 = vmatpush1.msra.mxu0 0.0
    %2186 = vmatprep.subr.mxu0 0.0
    %2187 = vmatpush1.msra.mxu0 0.0
    %2188 = vmatprep.subr.mxu0 0.0
    %2189 = vmatpush1.msra.mxu0 0.0
    %2190 = vmatprep.subr.mxu0 0.0
    %2191 = vmatpush1.msra.mxu0 0.0
    %2192 = vmatprep.subr.mxu0 0.0
    %2193 = vmatpush1.msra.mxu0 0.0
    %2194 = vmatprep.subr.mxu0 0.0
    %2195 = vmatpush1.msra.mxu0 0.0
    %2196 = vmatprep.subr.mxu0 0.0
    %2197 = vmatpush1.msra.mxu0 0.0
    %2198 = vmatprep.subr.mxu0 0.0
    %2199 = vmatpush1.msra.mxu0 0.0
    %2200 = vmatprep.subr.mxu0 0.0
    %2201 = vmatpush1.msra.mxu0 0.0
    %2202 = vmatprep.subr.mxu0 0.0
    %2203 = vmatpush1.msra.mxu0 0.0
    %2204 = vmatprep.subr.mxu0 0.0
    %2205 = vmatpush1.msra.mxu0 0.0
    %2206 = vmatprep.subr.mxu0 0.0
    %2207 = vmatpush1.msra.mxu0 0.0
    %2208 = vmatprep.subr.mxu0 0.0
    %2209 = vmatpush1.msra.mxu0 0.0
    %2210 = vmatprep.subr.mxu0 0.0
    %2211 = vmatpush1.msra.mxu0 0.0
    %2212 = vmatprep.subr.mxu0 0.0
    %2213 = vmatpush1.msra.mxu0 0.0
    %2214 = vmatprep.subr.mxu0 0.0
    %2215 = vmatpush1.msra.mxu0 0.0
    %2216 = vmatprep.subr.mxu0 0.0
    %2217 = vmatpush1.msra.mxu0 0.0
    %2218 = vmatprep.subr.mxu0 0.0
    %2219 = vmatpush1.msra.mxu0 0.0
    %2220 = vmatprep.subr.mxu0 0.0
    %2221 = vmatpush1.msra.mxu0 0.0
    %2222 = vmatprep.subr.mxu0 0.0
    %2223 = vmatpush1.msra.mxu0 0.0
    %2224 = vmatprep.mubr.f32.mxu0 0.0
    %2225 = vmatmul.mubr.f32.gmra.mrb[0].mxu0 %v2146
    %v2226 = vpop.f32.mrb[0].mxu0
    %v2227 = vadd.f32 0.0, %v2226
    %v2228 = vpop.f32.mrb[0].mxu0
    %2229 = vmatprep.mubr.f32.mxu0 0.0
    %2230 = vmatmul.mubr.f32.gmra.mrb[0].mxu0 %v2148
    %v2231 = vpop.f32.mrb[0].mxu0
    %v2232 = vadd.f32 0.0, %v2231
    %v2233 = vpop.f32.mrb[0].mxu0
    %2234 = vmatprep.mubr.f32.mxu0 0.0
    %2235 = vmatmul.mubr.f32.gmra.mrb[0].mxu0 %v2150
    %v2236 = vpop.f32.mrb[0].mxu0
    %v2237 = vadd.f32 0.0, %v2236
    %v2238 = vpop.f32.mrb[0].mxu0
    %2239 = vmatprep.mubr.f32.mxu0 0.0
    %2240 = vmatmul.mubr.f32.gmra.mrb[0].mxu0 %v2152
    %v2241 = vpop.f32.mrb[0].mxu0
    %v2242 = vadd.f32 0.0, %v2241
    %v2243 = vpop.f32.mrb[0].mxu0
    %2244 = vmatprep.mubr.f32.mxu0 0.0
    %2245 = vmatmul.mubr.f32.gmra.mrb[0].mxu0 %v2154
    %v2246 = vpop.f32.mrb[0].mxu0
    %v2247 = vadd.f32 0.0, %v2246
    %v2248 = vpop.f32.mrb[0].mxu0
    %2249 = vmatprep.mubr.f32.mxu0 0.0
    %2250 = vmatmul.mubr.f32.gmra.mrb[0].mxu0 %v2156
    %v2251 = vpop.f32.mrb[0].mxu0
    %v2252 = vadd.f32 0.0, %v2251
    %v2253 = vpop.f32.mrb[0].mxu0
    %2254 = vmatprep.mubr.f32.mxu0 0.0
    %2255 = vmatmul.mubr.f32.gmra.mrb[0].mxu0 %v2158
    %v2256 = vpop.f32.mrb[0].mxu0
    %v2257 = vadd.f32 0.0, %v2256
    %v2258 = vpop.f32.mrb[0].mxu0
    %2259 = vdwg.mxu0
    %v2260 = vadd.f32 %v2118, %v2227
    %v2261 = vadd.f32 %v2119, %v2232
    %v2262 = vadd.f32 %v2120, %v2237
    %v2263 = vadd.f32 %v2121, %v2242
    %v2264 = vadd.f32 %v2122, %v2247
    %v2265 = vadd.f32 %v2123, %v2252
    %v2266 = vadd.f32 %v2124, %v2257
    %v2267 = vld [vmem:[%s4 + $0x80] sm:$0xff]
    %v2268 = vld [vmem:[%s4 + $0x88] sm:$0xff]
    %v2270 = vsel %vm1155, %v1112, 0
    %v2273 = vsel %vm1155, %v1117, 0
    %v2276 = vsel %vm1155, %v1122, 0
    %v2279 = vsel %vm1155, %v1127, 0
    %v2282 = vsel %vm1155, %v1132, 0
    %v2285 = vsel %vm1155, %v1137, 0
    %v2288 = vsel %vm1155, %v1142, 0
    %2290 = vmatprep.subr.mxu0 0.0
    %2291 = vmatpush1.msra.mxu0 %v2267
    %2292 = vmatprep.subr.mxu0 0.0
    %2293 = vmatpush1.msra.mxu0 %v2268
    %2294 = vmatprep.subr.mxu0 0.0
    %2295 = vmatpush1.msra.mxu0 0.0
    %2296 = vmatprep.subr.mxu0 0.0
    %2297 = vmatpush1.msra.mxu0 0.0
    %2298 = vmatprep.subr.mxu0 0.0
    %2299 = vmatpush1.msra.mxu0 0.0
    %2300 = vmatprep.subr.mxu0 0.0
    %2301 = vmatpush1.msra.mxu0 0.0
    %2302 = vmatprep.subr.mxu0 0.0
    %2303 = vmatpush1.msra.mxu0 0.0
    %2304 = vmatprep.subr.mxu0 0.0
    %2305 = vmatpush1.msra.mxu0 0.0
    %2306 = vmatprep.subr.mxu0 0.0
    %2307 = vmatpush1.msra.mxu0 0.0
    %2308 = vmatprep.subr.mxu0 0.0
    %2309 = vmatpush1.msra.mxu0 0.0
    %2310 = vmatprep.subr.mxu0 0.0
    %2311 = vmatpush1.msra.mxu0 0.0
    %2312 = vmatprep.subr.mxu0 0.0
    %2313 = vmatpush1.msra.mxu0 0.0
    %2314 = vmatprep.subr.mxu0 0.0
    %2315 = vmatpush1.msra.mxu0 0.0
    %2316 = vmatprep.subr.mxu0 0.0
    %2317 = vmatpush1.msra.mxu0 0.0
    %2318 = vmatprep.subr.mxu0 0.0
    %2319 = vmatpush1.msra.mxu0 0.0
    %2320 = vmatprep.subr.mxu0 0.0
    %2321 = vmatpush1.msra.mxu0 0.0
    %2322 = vmatprep.subr.mxu0 0.0
    %2323 = vmatpush1.msra.mxu0 0.0
    %2324 = vmatprep.subr.mxu0 0.0
    %2325 = vmatpush1.msra.mxu0 0.0
    %2326 = vmatprep.subr.mxu0 0.0
    %2327 = vmatpush1.msra.mxu0 0.0
    %2328 = vmatprep.subr.mxu0 0.0
    %2329 = vmatpush1.msra.mxu0 0.0
    %2330 = vmatprep.subr.mxu0 0.0
    %2331 = vmatpush1.msra.mxu0 0.0
    %2332 = vmatprep.subr.mxu0 0.0
    %2333 = vmatpush1.msra.mxu0 0.0
    %2334 = vmatprep.subr.mxu0 0.0
    %2335 = vmatpush1.msra.mxu0 0.0
    %2336 = vmatprep.subr.mxu0 0.0
    %2337 = vmatpush1.msra.mxu0 0.0
    %2338 = vmatprep.subr.mxu0 0.0
    %2339 = vmatpush1.msra.mxu0 0.0
    %2340 = vmatprep.subr.mxu0 0.0
    %2341 = vmatpush1.msra.mxu0 0.0
    %2342 = vmatprep.subr.mxu0 0.0
    %2343 = vmatpush1.msra.mxu0 0.0
    %2344 = vmatprep.subr.mxu0 0.0
    %2345 = vmatpush1.msra.mxu0 0.0
    %2346 = vmatprep.subr.mxu0 0.0
    %2347 = vmatpush1.msra.mxu0 0.0
    %2348 = vmatprep.subr.mxu0 0.0
    %2349 = vmatpush1.msra.mxu0 0.0
    %2350 = vmatprep.subr.mxu0 0.0
    %2351 = vmatpush1.msra.mxu0 0.0
    %2352 = vmatprep.subr.mxu0 0.0
    %2353 = vmatpush1.msra.mxu0 0.0
    %2354 = vmatprep.mubr.f32.mxu0 0.0
    %2355 = vmatmul.mubr.f32.gmra.mrb[0].mxu0 %v2270
    %v2356 = vpop.f32.mrb[0].mxu0
    %v2357 = vadd.f32 0.0, %v2356
    %v2358 = vpop.f32.mrb[0].mxu0
    %2359 = vmatprep.mubr.f32.mxu0 0.0
    %2360 = vmatmul.mubr.f32.gmra.mrb[0].mxu0 %v2273
    %v2361 = vpop.f32.mrb[0].mxu0
    %v2362 = vadd.f32 0.0, %v2361
    %v2363 = vpop.f32.mrb[0].mxu0
    %2364 = vmatprep.mubr.f32.mxu0 0.0
    %2365 = vmatmul.mubr.f32.gmra.mrb[0].mxu0 %v2276
    %v2366 = vpop.f32.mrb[0].mxu0
    %v2367 = vadd.f32 0.0, %v2366
    %v2368 = vpop.f32.mrb[0].mxu0
    %2369 = vmatprep.mubr.f32.mxu0 0.0
    %2370 = vmatmul.mubr.f32.gmra.mrb[0].mxu0 %v2279
    %v2371 = vpop.f32.mrb[0].mxu0
    %v2372 = vadd.f32 0.0, %v2371
    %v2373 = vpop.f32.mrb[0].mxu0
    %2374 = vmatprep.mubr.f32.mxu0 0.0
    %2375 = vmatmul.mubr.f32.gmra.mrb[0].mxu0 %v2282
    %v2376 = vpop.f32.mrb[0].mxu0
    %v2377 = vadd.f32 0.0, %v2376
    %v2378 = vpop.f32.mrb[0].mxu0
    %2379 = vmatprep.mubr.f32.mxu0 0.0
    %2380 = vmatmul.mubr.f32.gmra.mrb[0].mxu0 %v2285
    %v2381 = vpop.f32.mrb[0].mxu0
    %v2382 = vadd.f32 0.0, %v2381
    %v2383 = vpop.f32.mrb[0].mxu0
    %2384 = vmatprep.mubr.f32.mxu0 0.0
    %2385 = vmatmul.mubr.f32.gmra.mrb[0].mxu0 %v2288
    %v2386 = vpop.f32.mrb[0].mxu0
    %v2387 = vadd.f32 0.0, %v2386
    %v2388 = vpop.f32.mrb[0].mxu0
    %2389 = vdwg.mxu0
    %v2390 = vadd.f32 %v2260, %v2357
    %v2391 = vadd.f32 %v2261, %v2362
    %v2392 = vadd.f32 %v2262, %v2367
    %v2393 = vadd.f32 %v2263, %v2372
    %v2394 = vadd.f32 %v2264, %v2377
    %v2395 = vadd.f32 %v2265, %v2382
    %v2396 = vadd.f32 %v2266, %v2387
    %v2397 = vmax.f32 %v2390, 0.0
    %v2398 = vmax.f32 %v2391, 0.0
    %v2399 = vmax.f32 %v2392, 0.0
    %v2400 = vmax.f32 %v2393, 0.0
    %v2401 = vmax.f32 %v2394, 0.0
    %v2402 = vmax.f32 %v2395, 0.0
    %v2403 = vmax.f32 %v2396, 0.0
    %v2404 = vld [vmem:[%s6] sm:$0xf]
    %v2405 = vld [vmem:[%s6 + $0x4] sm:$0xf]
    %v2406 = vld [vmem:[%s6 + $0x8] sm:$0xf]
    %v2407 = vld [vmem:[%s6 + $0xc] sm:$0xf]
    %v2408 = vunpack.c.l.bf16 %v2404
    %v2409 = vunpack.c.l.bf16 %v2405
    %v2410 = vunpack.c.l.bf16 %v2406
    %v2411 = vunpack.c.l.bf16 %v2407
    %vm2412 = vcmask 408576
    %v2414 = vsel %vm2412, %v2408, 0
    %v2417 = vsel %vm2412, %v2409, 0
    %v2420 = vsel %vm2412, %v2410, 0
    %v2423 = vsel %vm2412, %v2411, 0
    %v2426 = vsel %vm791, %v2403, 0
    %2428 = vmatprep.subr.mxu0 0.0
    %2429 = vmatpush1.msra.mxu0 %v2397
    %2430 = vmatprep.subr.mxu0 0.0
    %2431 = vmatpush1.msra.mxu0 %v2398
    %2432 = vmatprep.subr.mxu0 0.0
    %2433 = vmatpush1.msra.mxu0 %v2399
    %2434 = vmatprep.subr.mxu0 0.0
    %2435 = vmatpush1.msra.mxu0 %v2400
    %2436 = vmatprep.subr.mxu0 0.0
    %2437 = vmatpush1.msra.mxu0 %v2401
    %2438 = vmatprep.subr.mxu0 0.0
    %2439 = vmatpush1.msra.mxu0 %v2402
    %2440 = vmatprep.subr.mxu0 0.0
    %2441 = vmatpush1.msra.mxu0 %v2426
    %2442 = vmatprep.subr.mxu0 0.0
    %2443 = vmatpush1.msra.mxu0 0.0
    %2444 = vmatprep.subr.mxu0 0.0
    %2445 = vmatpush1.msra.mxu0 0.0
    %2446 = vmatprep.subr.mxu0 0.0
    %2447 = vmatpush1.msra.mxu0 0.0
    %2448 = vmatprep.subr.mxu0 0.0
    %2449 = vmatpush1.msra.mxu0 0.0
    %2450 = vmatprep.subr.mxu0 0.0
    %2451 = vmatpush1.msra.mxu0 0.0
    %2452 = vmatprep.subr.mxu0 0.0
    %2453 = vmatpush1.msra.mxu0 0.0
    %2454 = vmatprep.subr.mxu0 0.0
    %2455 = vmatpush1.msra.mxu0 0.0
    %2456 = vmatprep.subr.mxu0 0.0
    %2457 = vmatpush1.msra.mxu0 0.0
    %2458 = vmatprep.subr.mxu0 0.0
    %2459 = vmatpush1.msra.mxu0 0.0
    %2460 = vmatprep.subr.mxu0 0.0
    %2461 = vmatpush1.msra.mxu0 0.0
    %2462 = vmatprep.subr.mxu0 0.0
    %2463 = vmatpush1.msra.mxu0 0.0
    %2464 = vmatprep.subr.mxu0 0.0
    %2465 = vmatpush1.msra.mxu0 0.0
    %2466 = vmatprep.subr.mxu0 0.0
    %2467 = vmatpush1.msra.mxu0 0.0
    %2468 = vmatprep.subr.mxu0 0.0
    %2469 = vmatpush1.msra.mxu0 0.0
    %2470 = vmatprep.subr.mxu0 0.0
    %2471 = vmatpush1.msra.mxu0 0.0
    %2472 = vmatprep.subr.mxu0 0.0
    %2473 = vmatpush1.msra.mxu0 0.0
    %2474 = vmatprep.subr.mxu0 0.0
    %2475 = vmatpush1.msra.mxu0 0.0
    %2476 = vmatprep.subr.mxu0 0.0
    %2477 = vmatpush1.msra.mxu0 0.0
    %2478 = vmatprep.subr.mxu0 0.0
    %2479 = vmatpush1.msra.mxu0 0.0
    %2480 = vmatprep.subr.mxu0 0.0
    %2481 = vmatpush1.msra.mxu0 0.0
    %2482 = vmatprep.subr.mxu0 0.0
    %2483 = vmatpush1.msra.mxu0 0.0
    %2484 = vmatprep.subr.mxu0 0.0
    %2485 = vmatpush1.msra.mxu0 0.0
    %2486 = vmatprep.subr.mxu0 0.0
    %2487 = vmatpush1.msra.mxu0 0.0
    %2488 = vmatprep.subr.mxu0 0.0
    %2489 = vmatpush1.msra.mxu0 0.0
    %2490 = vmatprep.subr.mxu0 0.0
    %2491 = vmatpush1.msra.mxu0 0.0
    %2492 = vmatprep.mubr.f32.mxu0 0.0
    %2493 = vmatmul.mubr.f32.gmra.mrb[0].mxu0 %v2414
    %v2494 = vpop.f32.mrb[0].mxu0
    %v2495 = vadd.f32 0.0, %v2494
    %v2496 = vpop.f32.mrb[0].mxu0
    %2497 = vmatprep.mubr.f32.mxu0 0.0
    %2498 = vmatmul.mubr.f32.gmra.mrb[0].mxu0 %v2417
    %v2499 = vpop.f32.mrb[0].mxu0
    %v2500 = vadd.f32 0.0, %v2499
    %v2501 = vpop.f32.mrb[0].mxu0
    %2502 = vmatprep.mubr.f32.mxu0 0.0
    %2503 = vmatmul.mubr.f32.gmra.mrb[0].mxu0 %v2420
    %v2504 = vpop.f32.mrb[0].mxu0
    %v2505 = vadd.f32 0.0, %v2504
    %v2506 = vpop.f32.mrb[0].mxu0
    %2507 = vmatprep.mubr.f32.mxu0 0.0
    %2508 = vmatmul.mubr.f32.gmra.mrb[0].mxu0 %v2423
    %v2509 = vpop.f32.mrb[0].mxu0
    %v2510 = vadd.f32 0.0, %v2509
    %v2511 = vpop.f32.mrb[0].mxu0
    %2512 = vdwg.mxu0
    %v2513 = vld [vmem:[%s8] sm:$0x1]
    %v2515 = vlaneseq
    %v2516 = vshrl.u32 %v2515, 7
    %v2517 = vsub.s32 0, %v2516
    %v2518 = vrot.slane %v2513, %v2517
    %v2520 = vadd.f32 %v2518, 0.0
    %v2521 = vld [vmem:[%s7] sm:$0xff]
    %v2522 = vld [vmem:[%s7 + $0x8] sm:$0xff]
    %v2523 = vld [vmem:[%s7 + $0x10] sm:$0xff]
    %v2524 = vld [vmem:[%s7 + $0x18] sm:$0xff]
    %vm2525 = vcmask 261120
    %v2527 = vsel %vm2525, %v2495, 0
    %2529 = vmatprep.subr.mxu0 0.0
    %2530 = vmatpush1.msra.mxu0 %v2521
    %2531 = vmatprep.subr.mxu0 0.0
    %2532 = vmatpush1.msra.mxu0 %v2522
    %2533 = vmatprep.subr.mxu0 0.0
    %2534 = vmatpush1.msra.mxu0 %v2523
    %2535 = vmatprep.subr.mxu0 0.0
    %2536 = vmatpush1.msra.mxu0 %v2524
    %2537 = vmatprep.subr.mxu0 0.0
    %2538 = vmatpush1.msra.mxu0 0.0
    %2539 = vmatprep.subr.mxu0 0.0
    %2540 = vmatpush1.msra.mxu0 0.0
    %2541 = vmatprep.subr.mxu0 0.0
    %2542 = vmatpush1.msra.mxu0 0.0
    %2543 = vmatprep.subr.mxu0 0.0
    %2544 = vmatpush1.msra.mxu0 0.0
    %2545 = vmatprep.subr.mxu0 0.0
    %2546 = vmatpush1.msra.mxu0 0.0
    %2547 = vmatprep.subr.mxu0 0.0
    %2548 = vmatpush1.msra.mxu0 0.0
    %2549 = vmatprep.subr.mxu0 0.0
    %2550 = vmatpush1.msra.mxu0 0.0
    %2551 = vmatprep.subr.mxu0 0.0
    %2552 = vmatpush1.msra.mxu0 0.0
    %2553 = vmatprep.subr.mxu0 0.0
    %2554 = vmatpush1.msra.mxu0 0.0
    %2555 = vmatprep.subr.mxu0 0.0
    %2556 = vmatpush1.msra.mxu0 0.0
    %2557 = vmatprep.subr.mxu0 0.0
    %2558 = vmatpush1.msra.mxu0 0.0
    %2559 = vmatprep.subr.mxu0 0.0
    %2560 = vmatpush1.msra.mxu0 0.0
    %2561 = vmatprep.subr.mxu0 0.0
    %2562 = vmatpush1.msra.mxu0 0.0
    %2563 = vmatprep.subr.mxu0 0.0
    %2564 = vmatpush1.msra.mxu0 0.0
    %2565 = vmatprep.subr.mxu0 0.0
    %2566 = vmatpush1.msra.mxu0 0.0
    %2567 = vmatprep.subr.mxu0 0.0
    %2568 = vmatpush1.msra.mxu0 0.0
    %2569 = vmatprep.subr.mxu0 0.0
    %2570 = vmatpush1.msra.mxu0 0.0
    %2571 = vmatprep.subr.mxu0 0.0
    %2572 = vmatpush1.msra.mxu0 0.0
    %2573 = vmatprep.subr.mxu0 0.0
    %2574 = vmatpush1.msra.mxu0 0.0
    %2575 = vmatprep.subr.mxu0 0.0
    %2576 = vmatpush1.msra.mxu0 0.0
    %2577 = vmatprep.subr.mxu0 0.0
    %2578 = vmatpush1.msra.mxu0 0.0
    %2579 = vmatprep.subr.mxu0 0.0
    %2580 = vmatpush1.msra.mxu0 0.0
    %2581 = vmatprep.subr.mxu0 0.0
    %2582 = vmatpush1.msra.mxu0 0.0
    %2583 = vmatprep.subr.mxu0 0.0
    %2584 = vmatpush1.msra.mxu0 0.0
    %2585 = vmatprep.subr.mxu0 0.0
    %2586 = vmatpush1.msra.mxu0 0.0
    %2587 = vmatprep.subr.mxu0 0.0
    %2588 = vmatpush1.msra.mxu0 0.0
    %2589 = vmatprep.subr.mxu0 0.0
    %2590 = vmatpush1.msra.mxu0 0.0
    %2591 = vmatprep.subr.mxu0 0.0
    %2592 = vmatpush1.msra.mxu0 0.0
    %2593 = vmatprep.mubr.f32.mxu0 0.0
    %2594 = vmatmul.mubr.f32.gmra.mrb[0].mxu0 %v2527
    %v2595 = vpop.f32.mrb[0].mxu0
    %v2596 = vadd.f32 0.0, %v2595
    %v2597 = vpop.f32.mrb[0].mxu0
    %2598 = vdwg.mxu0
    %v2599 = vadd.f32 %v2520, %v2596
    %v2600 = vld [vmem:[%s7 + $0x20] sm:$0xff]
    %v2601 = vld [vmem:[%s7 + $0x28] sm:$0xff]
    %v2602 = vld [vmem:[%s7 + $0x30] sm:$0xff]
    %v2603 = vld [vmem:[%s7 + $0x38] sm:$0xff]
    %v2604 = vrot.slane %v2495, 2
    %v2605 = vsel %vm2525, %v2604, 0
    %2607 = vmatprep.subr.mxu0 0.0
    %2608 = vmatpush1.msra.mxu0 %v2600
    %2609 = vmatprep.subr.mxu0 0.0
    %2610 = vmatpush1.msra.mxu0 %v2601
    %2611 = vmatprep.subr.mxu0 0.0
    %2612 = vmatpush1.msra.mxu0 %v2602
    %2613 = vmatprep.subr.mxu0 0.0
    %2614 = vmatpush1.msra.mxu0 %v2603
    %2615 = vmatprep.subr.mxu0 0.0
    %2616 = vmatpush1.msra.mxu0 0.0
    %2617 = vmatprep.subr.mxu0 0.0
    %2618 = vmatpush1.msra.mxu0 0.0
    %2619 = vmatprep.subr.mxu0 0.0
    %2620 = vmatpush1.msra.mxu0 0.0
    %2621 = vmatprep.subr.mxu0 0.0
    %2622 = vmatpush1.msra.mxu0 0.0
    %2623 = vmatprep.subr.mxu0 0.0
    %2624 = vmatpush1.msra.mxu0 0.0
    %2625 = vmatprep.subr.mxu0 0.0
    %2626 = vmatpush1.msra.mxu0 0.0
    %2627 = vmatprep.subr.mxu0 0.0
    %2628 = vmatpush1.msra.mxu0 0.0
    %2629 = vmatprep.subr.mxu0 0.0
    %2630 = vmatpush1.msra.mxu0 0.0
    %2631 = vmatprep.subr.mxu0 0.0
    %2632 = vmatpush1.msra.mxu0 0.0
    %2633 = vmatprep.subr.mxu0 0.0
    %2634 = vmatpush1.msra.mxu0 0.0
    %2635 = vmatprep.subr.mxu0 0.0
    %2636 = vmatpush1.msra.mxu0 0.0
    %2637 = vmatprep.subr.mxu0 0.0
    %2638 = vmatpush1.msra.mxu0 0.0
    %2639 = vmatprep.subr.mxu0 0.0
    %2640 = vmatpush1.msra.mxu0 0.0
    %2641 = vmatprep.subr.mxu0 0.0
    %2642 = vmatpush1.msra.mxu0 0.0
    %2643 = vmatprep.subr.mxu0 0.0
    %2644 = vmatpush1.msra.mxu0 0.0
    %2645 = vmatprep.subr.mxu0 0.0
    %2646 = vmatpush1.msra.mxu0 0.0
    %2647 = vmatprep.subr.mxu0 0.0
    %2648 = vmatpush1.msra.mxu0 0.0
    %2649 = vmatprep.subr.mxu0 0.0
    %2650 = vmatpush1.msra.mxu0 0.0
    %2651 = vmatprep.subr.mxu0 0.0
    %2652 = vmatpush1.msra.mxu0 0.0
    %2653 = vmatprep.subr.mxu0 0.0
    %2654 = vmatpush1.msra.mxu0 0.0
    %2655 = vmatprep.subr.mxu0 0.0
    %2656 = vmatpush1.msra.mxu0 0.0
    %2657 = vmatprep.subr.mxu0 0.0
    %2658 = vmatpush1.msra.mxu0 0.0
    %2659 = vmatprep.subr.mxu0 0.0
    %2660 = vmatpush1.msra.mxu0 0.0
    %2661 = vmatprep.subr.mxu0 0.0
    %2662 = vmatpush1.msra.mxu0 0.0
    %2663 = vmatprep.subr.mxu0 0.0
    %2664 = vmatpush1.msra.mxu0 0.0
    %2665 = vmatprep.subr.mxu0 0.0
    %2666 = vmatpush1.msra.mxu0 0.0
    %2667 = vmatprep.subr.mxu0 0.0
    %2668 = vmatpush1.msra.mxu0 0.0
    %2669 = vmatprep.subr.mxu0 0.0
    %2670 = vmatpush1.msra.mxu0 0.0
    %2671 = vmatprep.mubr.f32.mxu0 0.0
    %2672 = vmatmul.mubr.f32.gmra.mrb[0].mxu0 %v2605
    %v2673 = vpop.f32.mrb[0].mxu0
    %v2674 = vadd.f32 0.0, %v2673
    %v2675 = vpop.f32.mrb[0].mxu0
    %2676 = vdwg.mxu0
    %v2677 = vadd.f32 %v2599, %v2674
    %v2678 = vld [vmem:[%s7 + $0x40] sm:$0xff]
    %v2679 = vld [vmem:[%s7 + $0x48] sm:$0xff]
    %v2680 = vld [vmem:[%s7 + $0x50] sm:$0xff]
    %v2681 = vld [vmem:[%s7 + $0x58] sm:$0xff]
    %v2682 = vrot.slane %v2495, 4
    %v2683 = vsel %vm2525, %v2682, 0
    %2685 = vmatprep.subr.mxu0 0.0
    %2686 = vmatpush1.msra.mxu0 %v2678
    %2687 = vmatprep.subr.mxu0 0.0
    %2688 = vmatpush1.msra.mxu0 %v2679
    %2689 = vmatprep.subr.mxu0 0.0
    %2690 = vmatpush1.msra.mxu0 %v2680
    %2691 = vmatprep.subr.mxu0 0.0
    %2692 = vmatpush1.msra.mxu0 %v2681
    %2693 = vmatprep.subr.mxu0 0.0
    %2694 = vmatpush1.msra.mxu0 0.0
    %2695 = vmatprep.subr.mxu0 0.0
    %2696 = vmatpush1.msra.mxu0 0.0
    %2697 = vmatprep.subr.mxu0 0.0
    %2698 = vmatpush1.msra.mxu0 0.0
    %2699 = vmatprep.subr.mxu0 0.0
    %2700 = vmatpush1.msra.mxu0 0.0
    %2701 = vmatprep.subr.mxu0 0.0
    %2702 = vmatpush1.msra.mxu0 0.0
    %2703 = vmatprep.subr.mxu0 0.0
    %2704 = vmatpush1.msra.mxu0 0.0
    %2705 = vmatprep.subr.mxu0 0.0
    %2706 = vmatpush1.msra.mxu0 0.0
    %2707 = vmatprep.subr.mxu0 0.0
    %2708 = vmatpush1.msra.mxu0 0.0
    %2709 = vmatprep.subr.mxu0 0.0
    %2710 = vmatpush1.msra.mxu0 0.0
    %2711 = vmatprep.subr.mxu0 0.0
    %2712 = vmatpush1.msra.mxu0 0.0
    %2713 = vmatprep.subr.mxu0 0.0
    %2714 = vmatpush1.msra.mxu0 0.0
    %2715 = vmatprep.subr.mxu0 0.0
    %2716 = vmatpush1.msra.mxu0 0.0
    %2717 = vmatprep.subr.mxu0 0.0
    %2718 = vmatpush1.msra.mxu0 0.0
    %2719 = vmatprep.subr.mxu0 0.0
    %2720 = vmatpush1.msra.mxu0 0.0
    %2721 = vmatprep.subr.mxu0 0.0
    %2722 = vmatpush1.msra.mxu0 0.0
    %2723 = vmatprep.subr.mxu0 0.0
    %2724 = vmatpush1.msra.mxu0 0.0
    %2725 = vmatprep.subr.mxu0 0.0
    %2726 = vmatpush1.msra.mxu0 0.0
    %2727 = vmatprep.subr.mxu0 0.0
    %2728 = vmatpush1.msra.mxu0 0.0
    %2729 = vmatprep.subr.mxu0 0.0
    %2730 = vmatpush1.msra.mxu0 0.0
    %2731 = vmatprep.subr.mxu0 0.0
    %2732 = vmatpush1.msra.mxu0 0.0
    %2733 = vmatprep.subr.mxu0 0.0
    %2734 = vmatpush1.msra.mxu0 0.0
    %2735 = vmatprep.subr.mxu0 0.0
    %2736 = vmatpush1.msra.mxu0 0.0
    %2737 = vmatprep.subr.mxu0 0.0
    %2738 = vmatpush1.msra.mxu0 0.0
    %2739 = vmatprep.subr.mxu0 0.0
    %2740 = vmatpush1.msra.mxu0 0.0
    %2741 = vmatprep.subr.mxu0 0.0
    %2742 = vmatpush1.msra.mxu0 0.0
    %2743 = vmatprep.subr.mxu0 0.0
    %2744 = vmatpush1.msra.mxu0 0.0
    %2745 = vmatprep.subr.mxu0 0.0
    %2746 = vmatpush1.msra.mxu0 0.0
    %2747 = vmatprep.subr.mxu0 0.0
    %2748 = vmatpush1.msra.mxu0 0.0
    %2749 = vmatprep.mubr.f32.mxu0 0.0
    %2750 = vmatmul.mubr.f32.gmra.mrb[0].mxu0 %v2683
    %v2751 = vpop.f32.mrb[0].mxu0
    %v2752 = vadd.f32 0.0, %v2751
    %v2753 = vpop.f32.mrb[0].mxu0
    %2754 = vdwg.mxu0
    %v2755 = vadd.f32 %v2677, %v2752
    %v2756 = vld [vmem:[%s7 + $0x60] sm:$0xff]
    %v2757 = vld [vmem:[%s7 + $0x68] sm:$0xff]
    %v2758 = vld [vmem:[%s7 + $0x70] sm:$0xff]
    %v2759 = vld [vmem:[%s7 + $0x78] sm:$0xff]
    %v2760 = vrot.slane %v2495, 6
    %v2761 = vsel %vm2525, %v2760, 0
    %2763 = vmatprep.subr.mxu0 0.0
    %2764 = vmatpush1.msra.mxu0 %v2756
    %2765 = vmatprep.subr.mxu0 0.0
    %2766 = vmatpush1.msra.mxu0 %v2757
    %2767 = vmatprep.subr.mxu0 0.0
    %2768 = vmatpush1.msra.mxu0 %v2758
    %2769 = vmatprep.subr.mxu0 0.0
    %2770 = vmatpush1.msra.mxu0 %v2759
    %2771 = vmatprep.subr.mxu0 0.0
    %2772 = vmatpush1.msra.mxu0 0.0
    %2773 = vmatprep.subr.mxu0 0.0
    %2774 = vmatpush1.msra.mxu0 0.0
    %2775 = vmatprep.subr.mxu0 0.0
    %2776 = vmatpush1.msra.mxu0 0.0
    %2777 = vmatprep.subr.mxu0 0.0
    %2778 = vmatpush1.msra.mxu0 0.0
    %2779 = vmatprep.subr.mxu0 0.0
    %2780 = vmatpush1.msra.mxu0 0.0
    %2781 = vmatprep.subr.mxu0 0.0
    %2782 = vmatpush1.msra.mxu0 0.0
    %2783 = vmatprep.subr.mxu0 0.0
    %2784 = vmatpush1.msra.mxu0 0.0
    %2785 = vmatprep.subr.mxu0 0.0
    %2786 = vmatpush1.msra.mxu0 0.0
    %2787 = vmatprep.subr.mxu0 0.0
    %2788 = vmatpush1.msra.mxu0 0.0
    %2789 = vmatprep.subr.mxu0 0.0
    %2790 = vmatpush1.msra.mxu0 0.0
    %2791 = vmatprep.subr.mxu0 0.0
    %2792 = vmatpush1.msra.mxu0 0.0
    %2793 = vmatprep.subr.mxu0 0.0
    %2794 = vmatpush1.msra.mxu0 0.0
    %2795 = vmatprep.subr.mxu0 0.0
    %2796 = vmatpush1.msra.mxu0 0.0
    %2797 = vmatprep.subr.mxu0 0.0
    %2798 = vmatpush1.msra.mxu0 0.0
    %2799 = vmatprep.subr.mxu0 0.0
    %2800 = vmatpush1.msra.mxu0 0.0
    %2801 = vmatprep.subr.mxu0 0.0
    %2802 = vmatpush1.msra.mxu0 0.0
    %2803 = vmatprep.subr.mxu0 0.0
    %2804 = vmatpush1.msra.mxu0 0.0
    %2805 = vmatprep.subr.mxu0 0.0
    %2806 = vmatpush1.msra.mxu0 0.0
    %2807 = vmatprep.subr.mxu0 0.0
    %2808 = vmatpush1.msra.mxu0 0.0
    %2809 = vmatprep.subr.mxu0 0.0
    %2810 = vmatpush1.msra.mxu0 0.0
    %2811 = vmatprep.subr.mxu0 0.0
    %2812 = vmatpush1.msra.mxu0 0.0
    %2813 = vmatprep.subr.mxu0 0.0
    %2814 = vmatpush1.msra.mxu0 0.0
    %2815 = vmatprep.subr.mxu0 0.0
    %2816 = vmatpush1.msra.mxu0 0.0
    %2817 = vmatprep.subr.mxu0 0.0
    %2818 = vmatpush1.msra.mxu0 0.0
    %2819 = vmatprep.subr.mxu0 0.0
    %2820 = vmatpush1.msra.mxu0 0.0
    %2821 = vmatprep.subr.mxu0 0.0
    %2822 = vmatpush1.msra.mxu0 0.0
    %2823 = vmatprep.subr.mxu0 0.0
    %2824 = vmatpush1.msra.mxu0 0.0
    %2825 = vmatprep.subr.mxu0 0.0
    %2826 = vmatpush1.msra.mxu0 0.0
    %2827 = vmatprep.mubr.f32.mxu0 0.0
    %2828 = vmatmul.mubr.f32.gmra.mrb[0].mxu0 %v2761
    %v2829 = vpop.f32.mrb[0].mxu0
    %v2830 = vadd.f32 0.0, %v2829
    %v2831 = vpop.f32.mrb[0].mxu0
    %2832 = vdwg.mxu0
    %v2833 = vadd.f32 %v2755, %v2830
    %v2834 = vld [vmem:[%s7 + $0x80] sm:$0xff]
    %v2835 = vld [vmem:[%s7 + $0x88] sm:$0xff]
    %v2836 = vld [vmem:[%s7 + $0x90] sm:$0xff]
    %v2837 = vld [vmem:[%s7 + $0x98] sm:$0xff]
    %v2839 = vsel %vm2525, %v2500, 0
    %2841 = vmatprep.subr.mxu0 0.0
    %2842 = vmatpush1.msra.mxu0 %v2834
    %2843 = vmatprep.subr.mxu0 0.0
    %2844 = vmatpush1.msra.mxu0 %v2835
    %2845 = vmatprep.subr.mxu0 0.0
    %2846 = vmatpush1.msra.mxu0 %v2836
    %2847 = vmatprep.subr.mxu0 0.0
    %2848 = vmatpush1.msra.mxu0 %v2837
    %2849 = vmatprep.subr.mxu0 0.0
    %2850 = vmatpush1.msra.mxu0 0.0
    %2851 = vmatprep.subr.mxu0 0.0
    %2852 = vmatpush1.msra.mxu0 0.0
    %2853 = vmatprep.subr.mxu0 0.0
    %2854 = vmatpush1.msra.mxu0 0.0
    %2855 = vmatprep.subr.mxu0 0.0
    %2856 = vmatpush1.msra.mxu0 0.0
    %2857 = vmatprep.subr.mxu0 0.0
    %2858 = vmatpush1.msra.mxu0 0.0
    %2859 = vmatprep.subr.mxu0 0.0
    %2860 = vmatpush1.msra.mxu0 0.0
    %2861 = vmatprep.subr.mxu0 0.0
    %2862 = vmatpush1.msra.mxu0 0.0
    %2863 = vmatprep.subr.mxu0 0.0
    %2864 = vmatpush1.msra.mxu0 0.0
    %2865 = vmatprep.subr.mxu0 0.0
    %2866 = vmatpush1.msra.mxu0 0.0
    %2867 = vmatprep.subr.mxu0 0.0
    %2868 = vmatpush1.msra.mxu0 0.0
    %2869 = vmatprep.subr.mxu0 0.0
    %2870 = vmatpush1.msra.mxu0 0.0
    %2871 = vmatprep.subr.mxu0 0.0
    %2872 = vmatpush1.msra.mxu0 0.0
    %2873 = vmatprep.subr.mxu0 0.0
    %2874 = vmatpush1.msra.mxu0 0.0
    %2875 = vmatprep.subr.mxu0 0.0
    %2876 = vmatpush1.msra.mxu0 0.0
    %2877 = vmatprep.subr.mxu0 0.0
    %2878 = vmatpush1.msra.mxu0 0.0
    %2879 = vmatprep.subr.mxu0 0.0
    %2880 = vmatpush1.msra.mxu0 0.0
    %2881 = vmatprep.subr.mxu0 0.0
    %2882 = vmatpush1.msra.mxu0 0.0
    %2883 = vmatprep.subr.mxu0 0.0
    %2884 = vmatpush1.msra.mxu0 0.0
    %2885 = vmatprep.subr.mxu0 0.0
    %2886 = vmatpush1.msra.mxu0 0.0
    %2887 = vmatprep.subr.mxu0 0.0
    %2888 = vmatpush1.msra.mxu0 0.0
    %2889 = vmatprep.subr.mxu0 0.0
    %2890 = vmatpush1.msra.mxu0 0.0
    %2891 = vmatprep.subr.mxu0 0.0
    %2892 = vmatpush1.msra.mxu0 0.0
    %2893 = vmatprep.subr.mxu0 0.0
    %2894 = vmatpush1.msra.mxu0 0.0
    %2895 = vmatprep.subr.mxu0 0.0
    %2896 = vmatpush1.msra.mxu0 0.0
    %2897 = vmatprep.subr.mxu0 0.0
    %2898 = vmatpush1.msra.mxu0 0.0
    %2899 = vmatprep.subr.mxu0 0.0
    %2900 = vmatpush1.msra.mxu0 0.0
    %2901 = vmatprep.subr.mxu0 0.0
    %2902 = vmatpush1.msra.mxu0 0.0
    %2903 = vmatprep.subr.mxu0 0.0
    %2904 = vmatpush1.msra.mxu0 0.0
    %2905 = vmatprep.mubr.f32.mxu0 0.0
    %2906 = vmatmul.mubr.f32.gmra.mrb[0].mxu0 %v2839
    %v2907 = vpop.f32.mrb[0].mxu0
    %v2908 = vadd.f32 0.0, %v2907
    %v2909 = vpop.f32.mrb[0].mxu0
    %2910 = vdwg.mxu0
    %v2911 = vadd.f32 %v2833, %v2908
    %v2912 = vld [vmem:[%s7 + $0xa0] sm:$0xff]
    %v2913 = vld [vmem:[%s7 + $0xa8] sm:$0xff]
    %v2914 = vld [vmem:[%s7 + $0xb0] sm:$0xff]
    %v2915 = vld [vmem:[%s7 + $0xb8] sm:$0xff]
    %v2916 = vrot.slane %v2500, 2
    %v2917 = vsel %vm2525, %v2916, 0
    %2919 = vmatprep.subr.mxu0 0.0
    %2920 = vmatpush1.msra.mxu0 %v2912
    %2921 = vmatprep.subr.mxu0 0.0
    %2922 = vmatpush1.msra.mxu0 %v2913
    %2923 = vmatprep.subr.mxu0 0.0
    %2924 = vmatpush1.msra.mxu0 %v2914
    %2925 = vmatprep.subr.mxu0 0.0
    %2926 = vmatpush1.msra.mxu0 %v2915
    %2927 = vmatprep.subr.mxu0 0.0
    %2928 = vmatpush1.msra.mxu0 0.0
    %2929 = vmatprep.subr.mxu0 0.0
    %2930 = vmatpush1.msra.mxu0 0.0
    %2931 = vmatprep.subr.mxu0 0.0
    %2932 = vmatpush1.msra.mxu0 0.0
    %2933 = vmatprep.subr.mxu0 0.0
    %2934 = vmatpush1.msra.mxu0 0.0
    %2935 = vmatprep.subr.mxu0 0.0
    %2936 = vmatpush1.msra.mxu0 0.0
    %2937 = vmatprep.subr.mxu0 0.0
    %2938 = vmatpush1.msra.mxu0 0.0
    %2939 = vmatprep.subr.mxu0 0.0
    %2940 = vmatpush1.msra.mxu0 0.0
    %2941 = vmatprep.subr.mxu0 0.0
    %2942 = vmatpush1.msra.mxu0 0.0
    %2943 = vmatprep.subr.mxu0 0.0
    %2944 = vmatpush1.msra.mxu0 0.0
    %2945 = vmatprep.subr.mxu0 0.0
    %2946 = vmatpush1.msra.mxu0 0.0
    %2947 = vmatprep.subr.mxu0 0.0
    %2948 = vmatpush1.msra.mxu0 0.0
    %2949 = vmatprep.subr.mxu0 0.0
    %2950 = vmatpush1.msra.mxu0 0.0
    %2951 = vmatprep.subr.mxu0 0.0
    %2952 = vmatpush1.msra.mxu0 0.0
    %2953 = vmatprep.subr.mxu0 0.0
    %2954 = vmatpush1.msra.mxu0 0.0
    %2955 = vmatprep.subr.mxu0 0.0
    %2956 = vmatpush1.msra.mxu0 0.0
    %2957 = vmatprep.subr.mxu0 0.0
    %2958 = vmatpush1.msra.mxu0 0.0
    %2959 = vmatprep.subr.mxu0 0.0
    %2960 = vmatpush1.msra.mxu0 0.0
    %2961 = vmatprep.subr.mxu0 0.0
    %2962 = vmatpush1.msra.mxu0 0.0
    %2963 = vmatprep.subr.mxu0 0.0
    %2964 = vmatpush1.msra.mxu0 0.0
    %2965 = vmatprep.subr.mxu0 0.0
    %2966 = vmatpush1.msra.mxu0 0.0
    %2967 = vmatprep.subr.mxu0 0.0
    %2968 = vmatpush1.msra.mxu0 0.0
    %2969 = vmatprep.subr.mxu0 0.0
    %2970 = vmatpush1.msra.mxu0 0.0
    %2971 = vmatprep.subr.mxu0 0.0
    %2972 = vmatpush1.msra.mxu0 0.0
    %2973 = vmatprep.subr.mxu0 0.0
    %2974 = vmatpush1.msra.mxu0 0.0
    %2975 = vmatprep.subr.mxu0 0.0
    %2976 = vmatpush1.msra.mxu0 0.0
    %2977 = vmatprep.subr.mxu0 0.0
    %2978 = vmatpush1.msra.mxu0 0.0
    %2979 = vmatprep.subr.mxu0 0.0
    %2980 = vmatpush1.msra.mxu0 0.0
    %2981 = vmatprep.subr.mxu0 0.0
    %2982 = vmatpush1.msra.mxu0 0.0
    %2983 = vmatprep.mubr.f32.mxu0 0.0
    %2984 = vmatmul.mubr.f32.gmra.mrb[0].mxu0 %v2917
    %v2985 = vpop.f32.mrb[0].mxu0
    %v2986 = vadd.f32 0.0, %v2985
    %v2987 = vpop.f32.mrb[0].mxu0
    %2988 = vdwg.mxu0
    %v2989 = vadd.f32 %v2911, %v2986
    %v2990 = vld [vmem:[%s7 + $0xc0] sm:$0xff]
    %v2991 = vld [vmem:[%s7 + $0xc8] sm:$0xff]
    %v2992 = vld [vmem:[%s7 + $0xd0] sm:$0xff]
    %v2993 = vld [vmem:[%s7 + $0xd8] sm:$0xff]
    %v2994 = vrot.slane %v2500, 4
    %v2995 = vsel %vm2525, %v2994, 0
    %2997 = vmatprep.subr.mxu0 0.0
    %2998 = vmatpush1.msra.mxu0 %v2990
    %2999 = vmatprep.subr.mxu0 0.0
    %3000 = vmatpush1.msra.mxu0 %v2991
    %3001 = vmatprep.subr.mxu0 0.0
    %3002 = vmatpush1.msra.mxu0 %v2992
    %3003 = vmatprep.subr.mxu0 0.0
    %3004 = vmatpush1.msra.mxu0 %v2993
    %3005 = vmatprep.subr.mxu0 0.0
    %3006 = vmatpush1.msra.mxu0 0.0
    %3007 = vmatprep.subr.mxu0 0.0
    %3008 = vmatpush1.msra.mxu0 0.0
    %3009 = vmatprep.subr.mxu0 0.0
    %3010 = vmatpush1.msra.mxu0 0.0
    %3011 = vmatprep.subr.mxu0 0.0
    %3012 = vmatpush1.msra.mxu0 0.0
    %3013 = vmatprep.subr.mxu0 0.0
    %3014 = vmatpush1.msra.mxu0 0.0
    %3015 = vmatprep.subr.mxu0 0.0
    %3016 = vmatpush1.msra.mxu0 0.0
    %3017 = vmatprep.subr.mxu0 0.0
    %3018 = vmatpush1.msra.mxu0 0.0
    %3019 = vmatprep.subr.mxu0 0.0
    %3020 = vmatpush1.msra.mxu0 0.0
    %3021 = vmatprep.subr.mxu0 0.0
    %3022 = vmatpush1.msra.mxu0 0.0
    %3023 = vmatprep.subr.mxu0 0.0
    %3024 = vmatpush1.msra.mxu0 0.0
    %3025 = vmatprep.subr.mxu0 0.0
    %3026 = vmatpush1.msra.mxu0 0.0
    %3027 = vmatprep.subr.mxu0 0.0
    %3028 = vmatpush1.msra.mxu0 0.0
    %3029 = vmatprep.subr.mxu0 0.0
    %3030 = vmatpush1.msra.mxu0 0.0
    %3031 = vmatprep.subr.mxu0 0.0
    %3032 = vmatpush1.msra.mxu0 0.0
    %3033 = vmatprep.subr.mxu0 0.0
    %3034 = vmatpush1.msra.mxu0 0.0
    %3035 = vmatprep.subr.mxu0 0.0
    %3036 = vmatpush1.msra.mxu0 0.0
    %3037 = vmatprep.subr.mxu0 0.0
    %3038 = vmatpush1.msra.mxu0 0.0
    %3039 = vmatprep.subr.mxu0 0.0
    %3040 = vmatpush1.msra.mxu0 0.0
    %3041 = vmatprep.subr.mxu0 0.0
    %3042 = vmatpush1.msra.mxu0 0.0
    %3043 = vmatprep.subr.mxu0 0.0
    %3044 = vmatpush1.msra.mxu0 0.0
    %3045 = vmatprep.subr.mxu0 0.0
    %3046 = vmatpush1.msra.mxu0 0.0
    %3047 = vmatprep.subr.mxu0 0.0
    %3048 = vmatpush1.msra.mxu0 0.0
    %3049 = vmatprep.subr.mxu0 0.0
    %3050 = vmatpush1.msra.mxu0 0.0
    %3051 = vmatprep.subr.mxu0 0.0
    %3052 = vmatpush1.msra.mxu0 0.0
    %3053 = vmatprep.subr.mxu0 0.0
    %3054 = vmatpush1.msra.mxu0 0.0
    %3055 = vmatprep.subr.mxu0 0.0
    %3056 = vmatpush1.msra.mxu0 0.0
    %3057 = vmatprep.subr.mxu0 0.0
    %3058 = vmatpush1.msra.mxu0 0.0
    %3059 = vmatprep.subr.mxu0 0.0
    %3060 = vmatpush1.msra.mxu0 0.0
    %3061 = vmatprep.mubr.f32.mxu0 0.0
    %3062 = vmatmul.mubr.f32.gmra.mrb[0].mxu0 %v2995
    %v3063 = vpop.f32.mrb[0].mxu0
    %v3064 = vadd.f32 0.0, %v3063
    %v3065 = vpop.f32.mrb[0].mxu0
    %3066 = vdwg.mxu0
    %v3067 = vadd.f32 %v2989, %v3064
    %v3068 = vld [vmem:[%s7 + $0xe0] sm:$0xff]
    %v3069 = vld [vmem:[%s7 + $0xe8] sm:$0xff]
    %v3070 = vld [vmem:[%s7 + $0xf0] sm:$0xff]
    %v3071 = vld [vmem:[%s7 + $0xf8] sm:$0xff]
    %v3072 = vrot.slane %v2500, 6
    %v3073 = vsel %vm2525, %v3072, 0
    %3075 = vmatprep.subr.mxu0 0.0
    %3076 = vmatpush1.msra.mxu0 %v3068
    %3077 = vmatprep.subr.mxu0 0.0
    %3078 = vmatpush1.msra.mxu0 %v3069
    %3079 = vmatprep.subr.mxu0 0.0
    %3080 = vmatpush1.msra.mxu0 %v3070
    %3081 = vmatprep.subr.mxu0 0.0
    %3082 = vmatpush1.msra.mxu0 %v3071
    %3083 = vmatprep.subr.mxu0 0.0
    %3084 = vmatpush1.msra.mxu0 0.0
    %3085 = vmatprep.subr.mxu0 0.0
    %3086 = vmatpush1.msra.mxu0 0.0
    %3087 = vmatprep.subr.mxu0 0.0
    %3088 = vmatpush1.msra.mxu0 0.0
    %3089 = vmatprep.subr.mxu0 0.0
    %3090 = vmatpush1.msra.mxu0 0.0
    %3091 = vmatprep.subr.mxu0 0.0
    %3092 = vmatpush1.msra.mxu0 0.0
    %3093 = vmatprep.subr.mxu0 0.0
    %3094 = vmatpush1.msra.mxu0 0.0
    %3095 = vmatprep.subr.mxu0 0.0
    %3096 = vmatpush1.msra.mxu0 0.0
    %3097 = vmatprep.subr.mxu0 0.0
    %3098 = vmatpush1.msra.mxu0 0.0
    %3099 = vmatprep.subr.mxu0 0.0
    %3100 = vmatpush1.msra.mxu0 0.0
    %3101 = vmatprep.subr.mxu0 0.0
    %3102 = vmatpush1.msra.mxu0 0.0
    %3103 = vmatprep.subr.mxu0 0.0
    %3104 = vmatpush1.msra.mxu0 0.0
    %3105 = vmatprep.subr.mxu0 0.0
    %3106 = vmatpush1.msra.mxu0 0.0
    %3107 = vmatprep.subr.mxu0 0.0
    %3108 = vmatpush1.msra.mxu0 0.0
    %3109 = vmatprep.subr.mxu0 0.0
    %3110 = vmatpush1.msra.mxu0 0.0
    %3111 = vmatprep.subr.mxu0 0.0
    %3112 = vmatpush1.msra.mxu0 0.0
    %3113 = vmatprep.subr.mxu0 0.0
    %3114 = vmatpush1.msra.mxu0 0.0
    %3115 = vmatprep.subr.mxu0 0.0
    %3116 = vmatpush1.msra.mxu0 0.0
    %3117 = vmatprep.subr.mxu0 0.0
    %3118 = vmatpush1.msra.mxu0 0.0
    %3119 = vmatprep.subr.mxu0 0.0
    %3120 = vmatpush1.msra.mxu0 0.0
    %3121 = vmatprep.subr.mxu0 0.0
    %3122 = vmatpush1.msra.mxu0 0.0
    %3123 = vmatprep.subr.mxu0 0.0
    %3124 = vmatpush1.msra.mxu0 0.0
    %3125 = vmatprep.subr.mxu0 0.0
    %3126 = vmatpush1.msra.mxu0 0.0
    %3127 = vmatprep.subr.mxu0 0.0
    %3128 = vmatpush1.msra.mxu0 0.0
    %3129 = vmatprep.subr.mxu0 0.0
    %3130 = vmatpush1.msra.mxu0 0.0
    %3131 = vmatprep.subr.mxu0 0.0
    %3132 = vmatpush1.msra.mxu0 0.0
    %3133 = vmatprep.subr.mxu0 0.0
    %3134 = vmatpush1.msra.mxu0 0.0
    %3135 = vmatprep.subr.mxu0 0.0
    %3136 = vmatpush1.msra.mxu0 0.0
    %3137 = vmatprep.subr.mxu0 0.0
    %3138 = vmatpush1.msra.mxu0 0.0
    %3139 = vmatprep.mubr.f32.mxu0 0.0
    %3140 = vmatmul.mubr.f32.gmra.mrb[0].mxu0 %v3073
    %v3141 = vpop.f32.mrb[0].mxu0
    %v3142 = vadd.f32 0.0, %v3141
    %v3143 = vpop.f32.mrb[0].mxu0
    %3144 = vdwg.mxu0
    %v3145 = vadd.f32 %v3067, %v3142
    %v3146 = vld [vmem:[%s7 + $0x100] sm:$0xff]
    %v3147 = vld [vmem:[%s7 + $0x108] sm:$0xff]
    %v3148 = vld [vmem:[%s7 + $0x110] sm:$0xff]
    %v3149 = vld [vmem:[%s7 + $0x118] sm:$0xff]
    %v3151 = vsel %vm2525, %v2505, 0
    %3153 = vmatprep.subr.mxu0 0.0
    %3154 = vmatpush1.msra.mxu0 %v3146
    %3155 = vmatprep.subr.mxu0 0.0
    %3156 = vmatpush1.msra.mxu0 %v3147
    %3157 = vmatprep.subr.mxu0 0.0
    %3158 = vmatpush1.msra.mxu0 %v3148
    %3159 = vmatprep.subr.mxu0 0.0
    %3160 = vmatpush1.msra.mxu0 %v3149
    %3161 = vmatprep.subr.mxu0 0.0
    %3162 = vmatpush1.msra.mxu0 0.0
    %3163 = vmatprep.subr.mxu0 0.0
    %3164 = vmatpush1.msra.mxu0 0.0
    %3165 = vmatprep.subr.mxu0 0.0
    %3166 = vmatpush1.msra.mxu0 0.0
    %3167 = vmatprep.subr.mxu0 0.0
    %3168 = vmatpush1.msra.mxu0 0.0
    %3169 = vmatprep.subr.mxu0 0.0
    %3170 = vmatpush1.msra.mxu0 0.0
    %3171 = vmatprep.subr.mxu0 0.0
    %3172 = vmatpush1.msra.mxu0 0.0
    %3173 = vmatprep.subr.mxu0 0.0
    %3174 = vmatpush1.msra.mxu0 0.0
    %3175 = vmatprep.subr.mxu0 0.0
    %3176 = vmatpush1.msra.mxu0 0.0
    %3177 = vmatprep.subr.mxu0 0.0
    %3178 = vmatpush1.msra.mxu0 0.0
    %3179 = vmatprep.subr.mxu0 0.0
    %3180 = vmatpush1.msra.mxu0 0.0
    %3181 = vmatprep.subr.mxu0 0.0
    %3182 = vmatpush1.msra.mxu0 0.0
    %3183 = vmatprep.subr.mxu0 0.0
    %3184 = vmatpush1.msra.mxu0 0.0
    %3185 = vmatprep.subr.mxu0 0.0
    %3186 = vmatpush1.msra.mxu0 0.0
    %3187 = vmatprep.subr.mxu0 0.0
    %3188 = vmatpush1.msra.mxu0 0.0
    %3189 = vmatprep.subr.mxu0 0.0
    %3190 = vmatpush1.msra.mxu0 0.0
    %3191 = vmatprep.subr.mxu0 0.0
    %3192 = vmatpush1.msra.mxu0 0.0
    %3193 = vmatprep.subr.mxu0 0.0
    %3194 = vmatpush1.msra.mxu0 0.0
    %3195 = vmatprep.subr.mxu0 0.0
    %3196 = vmatpush1.msra.mxu0 0.0
    %3197 = vmatprep.subr.mxu0 0.0
    %3198 = vmatpush1.msra.mxu0 0.0
    %3199 = vmatprep.subr.mxu0 0.0
    %3200 = vmatpush1.msra.mxu0 0.0
    %3201 = vmatprep.subr.mxu0 0.0
    %3202 = vmatpush1.msra.mxu0 0.0
    %3203 = vmatprep.subr.mxu0 0.0
    %3204 = vmatpush1.msra.mxu0 0.0
    %3205 = vmatprep.subr.mxu0 0.0
    %3206 = vmatpush1.msra.mxu0 0.0
    %3207 = vmatprep.subr.mxu0 0.0
    %3208 = vmatpush1.msra.mxu0 0.0
    %3209 = vmatprep.subr.mxu0 0.0
    %3210 = vmatpush1.msra.mxu0 0.0
    %3211 = vmatprep.subr.mxu0 0.0
    %3212 = vmatpush1.msra.mxu0 0.0
    %3213 = vmatprep.subr.mxu0 0.0
    %3214 = vmatpush1.msra.mxu0 0.0
    %3215 = vmatprep.subr.mxu0 0.0
    %3216 = vmatpush1.msra.mxu0 0.0
    %3217 = vmatprep.mubr.f32.mxu0 0.0
    %3218 = vmatmul.mubr.f32.gmra.mrb[0].mxu0 %v3151
    %v3219 = vpop.f32.mrb[0].mxu0
    %v3220 = vadd.f32 0.0, %v3219
    %v3221 = vpop.f32.mrb[0].mxu0
    %3222 = vdwg.mxu0
    %v3223 = vadd.f32 %v3145, %v3220
    %v3224 = vld [vmem:[%s7 + $0x120] sm:$0xff]
    %v3225 = vld [vmem:[%s7 + $0x128] sm:$0xff]
    %v3226 = vld [vmem:[%s7 + $0x130] sm:$0xff]
    %v3227 = vld [vmem:[%s7 + $0x138] sm:$0xff]
    %v3228 = vrot.slane %v2505, 2
    %v3229 = vsel %vm2525, %v3228, 0
    %3231 = vmatprep.subr.mxu0 0.0
    %3232 = vmatpush1.msra.mxu0 %v3224
    %3233 = vmatprep.subr.mxu0 0.0
    %3234 = vmatpush1.msra.mxu0 %v3225
    %3235 = vmatprep.subr.mxu0 0.0
    %3236 = vmatpush1.msra.mxu0 %v3226
    %3237 = vmatprep.subr.mxu0 0.0
    %3238 = vmatpush1.msra.mxu0 %v3227
    %3239 = vmatprep.subr.mxu0 0.0
    %3240 = vmatpush1.msra.mxu0 0.0
    %3241 = vmatprep.subr.mxu0 0.0
    %3242 = vmatpush1.msra.mxu0 0.0
    %3243 = vmatprep.subr.mxu0 0.0
    %3244 = vmatpush1.msra.mxu0 0.0
    %3245 = vmatprep.subr.mxu0 0.0
    %3246 = vmatpush1.msra.mxu0 0.0
    %3247 = vmatprep.subr.mxu0 0.0
    %3248 = vmatpush1.msra.mxu0 0.0
    %3249 = vmatprep.subr.mxu0 0.0
    %3250 = vmatpush1.msra.mxu0 0.0
    %3251 = vmatprep.subr.mxu0 0.0
    %3252 = vmatpush1.msra.mxu0 0.0
    %3253 = vmatprep.subr.mxu0 0.0
    %3254 = vmatpush1.msra.mxu0 0.0
    %3255 = vmatprep.subr.mxu0 0.0
    %3256 = vmatpush1.msra.mxu0 0.0
    %3257 = vmatprep.subr.mxu0 0.0
    %3258 = vmatpush1.msra.mxu0 0.0
    %3259 = vmatprep.subr.mxu0 0.0
    %3260 = vmatpush1.msra.mxu0 0.0
    %3261 = vmatprep.subr.mxu0 0.0
    %3262 = vmatpush1.msra.mxu0 0.0
    %3263 = vmatprep.subr.mxu0 0.0
    %3264 = vmatpush1.msra.mxu0 0.0
    %3265 = vmatprep.subr.mxu0 0.0
    %3266 = vmatpush1.msra.mxu0 0.0
    %3267 = vmatprep.subr.mxu0 0.0
    %3268 = vmatpush1.msra.mxu0 0.0
    %3269 = vmatprep.subr.mxu0 0.0
    %3270 = vmatpush1.msra.mxu0 0.0
    %3271 = vmatprep.subr.mxu0 0.0
    %3272 = vmatpush1.msra.mxu0 0.0
    %3273 = vmatprep.subr.mxu0 0.0
    %3274 = vmatpush1.msra.mxu0 0.0
    %3275 = vmatprep.subr.mxu0 0.0
    %3276 = vmatpush1.msra.mxu0 0.0
    %3277 = vmatprep.subr.mxu0 0.0
    %3278 = vmatpush1.msra.mxu0 0.0
    %3279 = vmatprep.subr.mxu0 0.0
    %3280 = vmatpush1.msra.mxu0 0.0
    %3281 = vmatprep.subr.mxu0 0.0
    %3282 = vmatpush1.msra.mxu0 0.0
    %3283 = vmatprep.subr.mxu0 0.0
    %3284 = vmatpush1.msra.mxu0 0.0
    %3285 = vmatprep.subr.mxu0 0.0
    %3286 = vmatpush1.msra.mxu0 0.0
    %3287 = vmatprep.subr.mxu0 0.0
    %3288 = vmatpush1.msra.mxu0 0.0
    %3289 = vmatprep.subr.mxu0 0.0
    %3290 = vmatpush1.msra.mxu0 0.0
    %3291 = vmatprep.subr.mxu0 0.0
    %3292 = vmatpush1.msra.mxu0 0.0
    %3293 = vmatprep.subr.mxu0 0.0
    %3294 = vmatpush1.msra.mxu0 0.0
    %3295 = vmatprep.mubr.f32.mxu0 0.0
    %3296 = vmatmul.mubr.f32.gmra.mrb[0].mxu0 %v3229
    %v3297 = vpop.f32.mrb[0].mxu0
    %v3298 = vadd.f32 0.0, %v3297
    %v3299 = vpop.f32.mrb[0].mxu0
    %3300 = vdwg.mxu0
    %v3301 = vadd.f32 %v3223, %v3298
    %v3302 = vld [vmem:[%s7 + $0x140] sm:$0xff]
    %v3303 = vld [vmem:[%s7 + $0x148] sm:$0xff]
    %v3304 = vld [vmem:[%s7 + $0x150] sm:$0xff]
    %v3305 = vld [vmem:[%s7 + $0x158] sm:$0xff]
    %v3306 = vrot.slane %v2505, 4
    %v3307 = vsel %vm2525, %v3306, 0
    %3309 = vmatprep.subr.mxu0 0.0
    %3310 = vmatpush1.msra.mxu0 %v3302
    %3311 = vmatprep.subr.mxu0 0.0
    %3312 = vmatpush1.msra.mxu0 %v3303
    %3313 = vmatprep.subr.mxu0 0.0
    %3314 = vmatpush1.msra.mxu0 %v3304
    %3315 = vmatprep.subr.mxu0 0.0
    %3316 = vmatpush1.msra.mxu0 %v3305
    %3317 = vmatprep.subr.mxu0 0.0
    %3318 = vmatpush1.msra.mxu0 0.0
    %3319 = vmatprep.subr.mxu0 0.0
    %3320 = vmatpush1.msra.mxu0 0.0
    %3321 = vmatprep.subr.mxu0 0.0
    %3322 = vmatpush1.msra.mxu0 0.0
    %3323 = vmatprep.subr.mxu0 0.0
    %3324 = vmatpush1.msra.mxu0 0.0
    %3325 = vmatprep.subr.mxu0 0.0
    %3326 = vmatpush1.msra.mxu0 0.0
    %3327 = vmatprep.subr.mxu0 0.0
    %3328 = vmatpush1.msra.mxu0 0.0
    %3329 = vmatprep.subr.mxu0 0.0
    %3330 = vmatpush1.msra.mxu0 0.0
    %3331 = vmatprep.subr.mxu0 0.0
    %3332 = vmatpush1.msra.mxu0 0.0
    %3333 = vmatprep.subr.mxu0 0.0
    %3334 = vmatpush1.msra.mxu0 0.0
    %3335 = vmatprep.subr.mxu0 0.0
    %3336 = vmatpush1.msra.mxu0 0.0
    %3337 = vmatprep.subr.mxu0 0.0
    %3338 = vmatpush1.msra.mxu0 0.0
    %3339 = vmatprep.subr.mxu0 0.0
    %3340 = vmatpush1.msra.mxu0 0.0
    %3341 = vmatprep.subr.mxu0 0.0
    %3342 = vmatpush1.msra.mxu0 0.0
    %3343 = vmatprep.subr.mxu0 0.0
    %3344 = vmatpush1.msra.mxu0 0.0
    %3345 = vmatprep.subr.mxu0 0.0
    %3346 = vmatpush1.msra.mxu0 0.0
    %3347 = vmatprep.subr.mxu0 0.0
    %3348 = vmatpush1.msra.mxu0 0.0
    %3349 = vmatprep.subr.mxu0 0.0
    %3350 = vmatpush1.msra.mxu0 0.0
    %3351 = vmatprep.subr.mxu0 0.0
    %3352 = vmatpush1.msra.mxu0 0.0
    %3353 = vmatprep.subr.mxu0 0.0
    %3354 = vmatpush1.msra.mxu0 0.0
    %3355 = vmatprep.subr.mxu0 0.0
    %3356 = vmatpush1.msra.mxu0 0.0
    %3357 = vmatprep.subr.mxu0 0.0
    %3358 = vmatpush1.msra.mxu0 0.0
    %3359 = vmatprep.subr.mxu0 0.0
    %3360 = vmatpush1.msra.mxu0 0.0
    %3361 = vmatprep.subr.mxu0 0.0
    %3362 = vmatpush1.msra.mxu0 0.0
    %3363 = vmatprep.subr.mxu0 0.0
    %3364 = vmatpush1.msra.mxu0 0.0
    %3365 = vmatprep.subr.mxu0 0.0
    %3366 = vmatpush1.msra.mxu0 0.0
    %3367 = vmatprep.subr.mxu0 0.0
    %3368 = vmatpush1.msra.mxu0 0.0
    %3369 = vmatprep.subr.mxu0 0.0
    %3370 = vmatpush1.msra.mxu0 0.0
    %3371 = vmatprep.subr.mxu0 0.0
    %3372 = vmatpush1.msra.mxu0 0.0
    %3373 = vmatprep.mubr.f32.mxu0 0.0
    %3374 = vmatmul.mubr.f32.gmra.mrb[0].mxu0 %v3307
    %v3375 = vpop.f32.mrb[0].mxu0
    %v3376 = vadd.f32 0.0, %v3375
    %v3377 = vpop.f32.mrb[0].mxu0
    %3378 = vdwg.mxu0
    %v3379 = vadd.f32 %v3301, %v3376
    %v3380 = vld [vmem:[%s7 + $0x160] sm:$0xff]
    %v3381 = vld [vmem:[%s7 + $0x168] sm:$0xff]
    %v3382 = vld [vmem:[%s7 + $0x170] sm:$0xff]
    %v3383 = vld [vmem:[%s7 + $0x178] sm:$0xff]
    %v3384 = vrot.slane %v2505, 6
    %v3385 = vsel %vm2525, %v3384, 0
    %3387 = vmatprep.subr.mxu0 0.0
    %3388 = vmatpush1.msra.mxu0 %v3380
    %3389 = vmatprep.subr.mxu0 0.0
    %3390 = vmatpush1.msra.mxu0 %v3381
    %3391 = vmatprep.subr.mxu0 0.0
    %3392 = vmatpush1.msra.mxu0 %v3382
    %3393 = vmatprep.subr.mxu0 0.0
    %3394 = vmatpush1.msra.mxu0 %v3383
    %3395 = vmatprep.subr.mxu0 0.0
    %3396 = vmatpush1.msra.mxu0 0.0
    %3397 = vmatprep.subr.mxu0 0.0
    %3398 = vmatpush1.msra.mxu0 0.0
    %3399 = vmatprep.subr.mxu0 0.0
    %3400 = vmatpush1.msra.mxu0 0.0
    %3401 = vmatprep.subr.mxu0 0.0
    %3402 = vmatpush1.msra.mxu0 0.0
    %3403 = vmatprep.subr.mxu0 0.0
    %3404 = vmatpush1.msra.mxu0 0.0
    %3405 = vmatprep.subr.mxu0 0.0
    %3406 = vmatpush1.msra.mxu0 0.0
    %3407 = vmatprep.subr.mxu0 0.0
    %3408 = vmatpush1.msra.mxu0 0.0
    %3409 = vmatprep.subr.mxu0 0.0
    %3410 = vmatpush1.msra.mxu0 0.0
    %3411 = vmatprep.subr.mxu0 0.0
    %3412 = vmatpush1.msra.mxu0 0.0
    %3413 = vmatprep.subr.mxu0 0.0
    %3414 = vmatpush1.msra.mxu0 0.0
    %3415 = vmatprep.subr.mxu0 0.0
    %3416 = vmatpush1.msra.mxu0 0.0
    %3417 = vmatprep.subr.mxu0 0.0
    %3418 = vmatpush1.msra.mxu0 0.0
    %3419 = vmatprep.subr.mxu0 0.0
    %3420 = vmatpush1.msra.mxu0 0.0
    %3421 = vmatprep.subr.mxu0 0.0
    %3422 = vmatpush1.msra.mxu0 0.0
    %3423 = vmatprep.subr.mxu0 0.0
    %3424 = vmatpush1.msra.mxu0 0.0
    %3425 = vmatprep.subr.mxu0 0.0
    %3426 = vmatpush1.msra.mxu0 0.0
    %3427 = vmatprep.subr.mxu0 0.0
    %3428 = vmatpush1.msra.mxu0 0.0
    %3429 = vmatprep.subr.mxu0 0.0
    %3430 = vmatpush1.msra.mxu0 0.0
    %3431 = vmatprep.subr.mxu0 0.0
    %3432 = vmatpush1.msra.mxu0 0.0
    %3433 = vmatprep.subr.mxu0 0.0
    %3434 = vmatpush1.msra.mxu0 0.0
    %3435 = vmatprep.subr.mxu0 0.0
    %3436 = vmatpush1.msra.mxu0 0.0
    %3437 = vmatprep.subr.mxu0 0.0
    %3438 = vmatpush1.msra.mxu0 0.0
    %3439 = vmatprep.subr.mxu0 0.0
    %3440 = vmatpush1.msra.mxu0 0.0
    %3441 = vmatprep.subr.mxu0 0.0
    %3442 = vmatpush1.msra.mxu0 0.0
    %3443 = vmatprep.subr.mxu0 0.0
    %3444 = vmatpush1.msra.mxu0 0.0
    %3445 = vmatprep.subr.mxu0 0.0
    %3446 = vmatpush1.msra.mxu0 0.0
    %3447 = vmatprep.subr.mxu0 0.0
    %3448 = vmatpush1.msra.mxu0 0.0
    %3449 = vmatprep.subr.mxu0 0.0
    %3450 = vmatpush1.msra.mxu0 0.0
    %3451 = vmatprep.mubr.f32.mxu0 0.0
    %3452 = vmatmul.mubr.f32.gmra.mrb[0].mxu0 %v3385
    %v3453 = vpop.f32.mrb[0].mxu0
    %v3454 = vadd.f32 0.0, %v3453
    %v3455 = vpop.f32.mrb[0].mxu0
    %3456 = vdwg.mxu0
    %v3457 = vadd.f32 %v3379, %v3454
    %v3458 = vld [vmem:[%s7 + $0x180] sm:$0xff]
    %v3459 = vld [vmem:[%s7 + $0x188] sm:$0xff]
    %v3460 = vld [vmem:[%s7 + $0x190] sm:$0xff]
    %v3461 = vld [vmem:[%s7 + $0x198] sm:$0xff]
    %v3463 = vsel %vm2525, %v2510, 0
    %3465 = vmatprep.subr.mxu0 0.0
    %3466 = vmatpush1.msra.mxu0 %v3458
    %3467 = vmatprep.subr.mxu0 0.0
    %3468 = vmatpush1.msra.mxu0 %v3459
    %3469 = vmatprep.subr.mxu0 0.0
    %3470 = vmatpush1.msra.mxu0 %v3460
    %3471 = vmatprep.subr.mxu0 0.0
    %3472 = vmatpush1.msra.mxu0 %v3461
    %3473 = vmatprep.subr.mxu0 0.0
    %3474 = vmatpush1.msra.mxu0 0.0
    %3475 = vmatprep.subr.mxu0 0.0
    %3476 = vmatpush1.msra.mxu0 0.0
    %3477 = vmatprep.subr.mxu0 0.0
    %3478 = vmatpush1.msra.mxu0 0.0
    %3479 = vmatprep.subr.mxu0 0.0
    %3480 = vmatpush1.msra.mxu0 0.0
    %3481 = vmatprep.subr.mxu0 0.0
    %3482 = vmatpush1.msra.mxu0 0.0
    %3483 = vmatprep.subr.mxu0 0.0
    %3484 = vmatpush1.msra.mxu0 0.0
    %3485 = vmatprep.subr.mxu0 0.0
    %3486 = vmatpush1.msra.mxu0 0.0
    %3487 = vmatprep.subr.mxu0 0.0
    %3488 = vmatpush1.msra.mxu0 0.0
    %3489 = vmatprep.subr.mxu0 0.0
    %3490 = vmatpush1.msra.mxu0 0.0
    %3491 = vmatprep.subr.mxu0 0.0
    %3492 = vmatpush1.msra.mxu0 0.0
    %3493 = vmatprep.subr.mxu0 0.0
    %3494 = vmatpush1.msra.mxu0 0.0
    %3495 = vmatprep.subr.mxu0 0.0
    %3496 = vmatpush1.msra.mxu0 0.0
    %3497 = vmatprep.subr.mxu0 0.0
    %3498 = vmatpush1.msra.mxu0 0.0
    %3499 = vmatprep.subr.mxu0 0.0
    %3500 = vmatpush1.msra.mxu0 0.0
    %3501 = vmatprep.subr.mxu0 0.0
    %3502 = vmatpush1.msra.mxu0 0.0
    %3503 = vmatprep.subr.mxu0 0.0
    %3504 = vmatpush1.msra.mxu0 0.0
    %3505 = vmatprep.subr.mxu0 0.0
    %3506 = vmatpush1.msra.mxu0 0.0
    %3507 = vmatprep.subr.mxu0 0.0
    %3508 = vmatpush1.msra.mxu0 0.0
    %3509 = vmatprep.subr.mxu0 0.0
    %3510 = vmatpush1.msra.mxu0 0.0
    %3511 = vmatprep.subr.mxu0 0.0
    %3512 = vmatpush1.msra.mxu0 0.0
    %3513 = vmatprep.subr.mxu0 0.0
    %3514 = vmatpush1.msra.mxu0 0.0
    %3515 = vmatprep.subr.mxu0 0.0
    %3516 = vmatpush1.msra.mxu0 0.0
    %3517 = vmatprep.subr.mxu0 0.0
    %3518 = vmatpush1.msra.mxu0 0.0
    %3519 = vmatprep.subr.mxu0 0.0
    %3520 = vmatpush1.msra.mxu0 0.0
    %3521 = vmatprep.subr.mxu0 0.0
    %3522 = vmatpush1.msra.mxu0 0.0
    %3523 = vmatprep.subr.mxu0 0.0
    %3524 = vmatpush1.msra.mxu0 0.0
    %3525 = vmatprep.subr.mxu0 0.0
    %3526 = vmatpush1.msra.mxu0 0.0
    %3527 = vmatprep.subr.mxu0 0.0
    %3528 = vmatpush1.msra.mxu0 0.0
    %3529 = vmatprep.mubr.f32.mxu0 0.0
    %3530 = vmatmul.mubr.f32.gmra.mrb[0].mxu0 %v3463
    %v3531 = vpop.f32.mrb[0].mxu0
    %v3532 = vadd.f32 0.0, %v3531
    %v3533 = vpop.f32.mrb[0].mxu0
    %3534 = vdwg.mxu0
    %v3535 = vadd.f32 %v3457, %v3532
    %v3536 = vld [vmem:[%s7 + $0x1a0] sm:$0xff]
    %v3537 = vld [vmem:[%s7 + $0x1a8] sm:$0xff]
    %v3538 = vld [vmem:[%s7 + $0x1b0] sm:$0xff]
    %v3539 = vld [vmem:[%s7 + $0x1b8] sm:$0xff]
    %v3540 = vrot.slane %v2510, 2
    %v3541 = vsel %vm2525, %v3540, 0
    %3543 = vmatprep.subr.mxu0 0.0
    %3544 = vmatpush1.msra.mxu0 %v3536
    %3545 = vmatprep.subr.mxu0 0.0
    %3546 = vmatpush1.msra.mxu0 %v3537
    %3547 = vmatprep.subr.mxu0 0.0
    %3548 = vmatpush1.msra.mxu0 %v3538
    %3549 = vmatprep.subr.mxu0 0.0
    %3550 = vmatpush1.msra.mxu0 %v3539
    %3551 = vmatprep.subr.mxu0 0.0
    %3552 = vmatpush1.msra.mxu0 0.0
    %3553 = vmatprep.subr.mxu0 0.0
    %3554 = vmatpush1.msra.mxu0 0.0
    %3555 = vmatprep.subr.mxu0 0.0
    %3556 = vmatpush1.msra.mxu0 0.0
    %3557 = vmatprep.subr.mxu0 0.0
    %3558 = vmatpush1.msra.mxu0 0.0
    %3559 = vmatprep.subr.mxu0 0.0
    %3560 = vmatpush1.msra.mxu0 0.0
    %3561 = vmatprep.subr.mxu0 0.0
    %3562 = vmatpush1.msra.mxu0 0.0
    %3563 = vmatprep.subr.mxu0 0.0
    %3564 = vmatpush1.msra.mxu0 0.0
    %3565 = vmatprep.subr.mxu0 0.0
    %3566 = vmatpush1.msra.mxu0 0.0
    %3567 = vmatprep.subr.mxu0 0.0
    %3568 = vmatpush1.msra.mxu0 0.0
    %3569 = vmatprep.subr.mxu0 0.0
    %3570 = vmatpush1.msra.mxu0 0.0
    %3571 = vmatprep.subr.mxu0 0.0
    %3572 = vmatpush1.msra.mxu0 0.0
    %3573 = vmatprep.subr.mxu0 0.0
    %3574 = vmatpush1.msra.mxu0 0.0
    %3575 = vmatprep.subr.mxu0 0.0
    %3576 = vmatpush1.msra.mxu0 0.0
    %3577 = vmatprep.subr.mxu0 0.0
    %3578 = vmatpush1.msra.mxu0 0.0
    %3579 = vmatprep.subr.mxu0 0.0
    %3580 = vmatpush1.msra.mxu0 0.0
    %3581 = vmatprep.subr.mxu0 0.0
    %3582 = vmatpush1.msra.mxu0 0.0
    %3583 = vmatprep.subr.mxu0 0.0
    %3584 = vmatpush1.msra.mxu0 0.0
    %3585 = vmatprep.subr.mxu0 0.0
    %3586 = vmatpush1.msra.mxu0 0.0
    %3587 = vmatprep.subr.mxu0 0.0
    %3588 = vmatpush1.msra.mxu0 0.0
    %3589 = vmatprep.subr.mxu0 0.0
    %3590 = vmatpush1.msra.mxu0 0.0
    %3591 = vmatprep.subr.mxu0 0.0
    %3592 = vmatpush1.msra.mxu0 0.0
    %3593 = vmatprep.subr.mxu0 0.0
    %3594 = vmatpush1.msra.mxu0 0.0
    %3595 = vmatprep.subr.mxu0 0.0
    %3596 = vmatpush1.msra.mxu0 0.0
    %3597 = vmatprep.subr.mxu0 0.0
    %3598 = vmatpush1.msra.mxu0 0.0
    %3599 = vmatprep.subr.mxu0 0.0
    %3600 = vmatpush1.msra.mxu0 0.0
    %3601 = vmatprep.subr.mxu0 0.0
    %3602 = vmatpush1.msra.mxu0 0.0
    %3603 = vmatprep.subr.mxu0 0.0
    %3604 = vmatpush1.msra.mxu0 0.0
    %3605 = vmatprep.subr.mxu0 0.0
    %3606 = vmatpush1.msra.mxu0 0.0
    %3607 = vmatprep.mubr.f32.mxu0 0.0
    %3608 = vmatmul.mubr.f32.gmra.mrb[0].mxu0 %v3541
    %v3609 = vpop.f32.mrb[0].mxu0
    %v3610 = vadd.f32 0.0, %v3609
    %v3611 = vpop.f32.mrb[0].mxu0
    %3612 = vdwg.mxu0
    %v3613 = vadd.f32 %v3535, %v3610
    %v3614 = vld [vmem:[%s7 + $0x1c0] sm:$0xff]
    %v3615 = vld [vmem:[%s7 + $0x1c8] sm:$0xff]
    %v3616 = vld [vmem:[%s7 + $0x1d0] sm:$0xff]
    %v3617 = vld [vmem:[%s7 + $0x1d8] sm:$0xff]
    %v3618 = vrot.slane %v2510, 4
    %v3619 = vsel %vm2525, %v3618, 0
    %3621 = vmatprep.subr.mxu0 0.0
    %3622 = vmatpush1.msra.mxu0 %v3614
    %3623 = vmatprep.subr.mxu0 0.0
    %3624 = vmatpush1.msra.mxu0 %v3615
    %3625 = vmatprep.subr.mxu0 0.0
    %3626 = vmatpush1.msra.mxu0 %v3616
    %3627 = vmatprep.subr.mxu0 0.0
    %3628 = vmatpush1.msra.mxu0 %v3617
    %3629 = vmatprep.subr.mxu0 0.0
    %3630 = vmatpush1.msra.mxu0 0.0
    %3631 = vmatprep.subr.mxu0 0.0
    %3632 = vmatpush1.msra.mxu0 0.0
    %3633 = vmatprep.subr.mxu0 0.0
    %3634 = vmatpush1.msra.mxu0 0.0
    %3635 = vmatprep.subr.mxu0 0.0
    %3636 = vmatpush1.msra.mxu0 0.0
    %3637 = vmatprep.subr.mxu0 0.0
    %3638 = vmatpush1.msra.mxu0 0.0
    %3639 = vmatprep.subr.mxu0 0.0
    %3640 = vmatpush1.msra.mxu0 0.0
    %3641 = vmatprep.subr.mxu0 0.0
    %3642 = vmatpush1.msra.mxu0 0.0
    %3643 = vmatprep.subr.mxu0 0.0
    %3644 = vmatpush1.msra.mxu0 0.0
    %3645 = vmatprep.subr.mxu0 0.0
    %3646 = vmatpush1.msra.mxu0 0.0
    %3647 = vmatprep.subr.mxu0 0.0
    %3648 = vmatpush1.msra.mxu0 0.0
    %3649 = vmatprep.subr.mxu0 0.0
    %3650 = vmatpush1.msra.mxu0 0.0
    %3651 = vmatprep.subr.mxu0 0.0
    %3652 = vmatpush1.msra.mxu0 0.0
    %3653 = vmatprep.subr.mxu0 0.0
    %3654 = vmatpush1.msra.mxu0 0.0
    %3655 = vmatprep.subr.mxu0 0.0
    %3656 = vmatpush1.msra.mxu0 0.0
    %3657 = vmatprep.subr.mxu0 0.0
    %3658 = vmatpush1.msra.mxu0 0.0
    %3659 = vmatprep.subr.mxu0 0.0
    %3660 = vmatpush1.msra.mxu0 0.0
    %3661 = vmatprep.subr.mxu0 0.0
    %3662 = vmatpush1.msra.mxu0 0.0
    %3663 = vmatprep.subr.mxu0 0.0
    %3664 = vmatpush1.msra.mxu0 0.0
    %3665 = vmatprep.subr.mxu0 0.0
    %3666 = vmatpush1.msra.mxu0 0.0
    %3667 = vmatprep.subr.mxu0 0.0
    %3668 = vmatpush1.msra.mxu0 0.0
    %3669 = vmatprep.subr.mxu0 0.0
    %3670 = vmatpush1.msra.mxu0 0.0
    %3671 = vmatprep.subr.mxu0 0.0
    %3672 = vmatpush1.msra.mxu0 0.0
    %3673 = vmatprep.subr.mxu0 0.0
    %3674 = vmatpush1.msra.mxu0 0.0
    %3675 = vmatprep.subr.mxu0 0.0
    %3676 = vmatpush1.msra.mxu0 0.0
    %3677 = vmatprep.subr.mxu0 0.0
    %3678 = vmatpush1.msra.mxu0 0.0
    %3679 = vmatprep.subr.mxu0 0.0
    %3680 = vmatpush1.msra.mxu0 0.0
    %3681 = vmatprep.subr.mxu0 0.0
    %3682 = vmatpush1.msra.mxu0 0.0
    %3683 = vmatprep.subr.mxu0 0.0
    %3684 = vmatpush1.msra.mxu0 0.0
    %3685 = vmatprep.mubr.f32.mxu0 0.0
    %3686 = vmatmul.mubr.f32.gmra.mrb[0].mxu0 %v3619
    %v3687 = vpop.f32.mrb[0].mxu0
    %v3688 = vadd.f32 0.0, %v3687
    %v3689 = vpop.f32.mrb[0].mxu0
    %3690 = vdwg.mxu0
    %v3691 = vadd.f32 %v3613, %v3688
    %v3692 = vld [vmem:[%s7 + $0x1e0] sm:$0xff]
    %v3693 = vld [vmem:[%s7 + $0x1e8] sm:$0xff]
    %v3694 = vld [vmem:[%s7 + $0x1f0] sm:$0xff]
    %v3695 = vld [vmem:[%s7 + $0x1f8] sm:$0xff]
    %v3696 = vrot.slane %v2510, 6
    %v3697 = vsel %vm2525, %v3696, 0
    %3699 = vmatprep.subr.mxu0 0.0
    %3700 = vmatpush1.msra.mxu0 %v3692
    %3701 = vmatprep.subr.mxu0 0.0
    %3702 = vmatpush1.msra.mxu0 %v3693
    %3703 = vmatprep.subr.mxu0 0.0
    %3704 = vmatpush1.msra.mxu0 %v3694
    %3705 = vmatprep.subr.mxu0 0.0
    %3706 = vmatpush1.msra.mxu0 %v3695
    %3707 = vmatprep.subr.mxu0 0.0
    %3708 = vmatpush1.msra.mxu0 0.0
    %3709 = vmatprep.subr.mxu0 0.0
    %3710 = vmatpush1.msra.mxu0 0.0
    %3711 = vmatprep.subr.mxu0 0.0
    %3712 = vmatpush1.msra.mxu0 0.0
    %3713 = vmatprep.subr.mxu0 0.0
    %3714 = vmatpush1.msra.mxu0 0.0
    %3715 = vmatprep.subr.mxu0 0.0
    %3716 = vmatpush1.msra.mxu0 0.0
    %3717 = vmatprep.subr.mxu0 0.0
    %3718 = vmatpush1.msra.mxu0 0.0
    %3719 = vmatprep.subr.mxu0 0.0
    %3720 = vmatpush1.msra.mxu0 0.0
    %3721 = vmatprep.subr.mxu0 0.0
    %3722 = vmatpush1.msra.mxu0 0.0
    %3723 = vmatprep.subr.mxu0 0.0
    %3724 = vmatpush1.msra.mxu0 0.0
    %3725 = vmatprep.subr.mxu0 0.0
    %3726 = vmatpush1.msra.mxu0 0.0
    %3727 = vmatprep.subr.mxu0 0.0
    %3728 = vmatpush1.msra.mxu0 0.0
    %3729 = vmatprep.subr.mxu0 0.0
    %3730 = vmatpush1.msra.mxu0 0.0
    %3731 = vmatprep.subr.mxu0 0.0
    %3732 = vmatpush1.msra.mxu0 0.0
    %3733 = vmatprep.subr.mxu0 0.0
    %3734 = vmatpush1.msra.mxu0 0.0
    %3735 = vmatprep.subr.mxu0 0.0
    %3736 = vmatpush1.msra.mxu0 0.0
    %3737 = vmatprep.subr.mxu0 0.0
    %3738 = vmatpush1.msra.mxu0 0.0
    %3739 = vmatprep.subr.mxu0 0.0
    %3740 = vmatpush1.msra.mxu0 0.0
    %3741 = vmatprep.subr.mxu0 0.0
    %3742 = vmatpush1.msra.mxu0 0.0
    %3743 = vmatprep.subr.mxu0 0.0
    %3744 = vmatpush1.msra.mxu0 0.0
    %3745 = vmatprep.subr.mxu0 0.0
    %3746 = vmatpush1.msra.mxu0 0.0
    %3747 = vmatprep.subr.mxu0 0.0
    %3748 = vmatpush1.msra.mxu0 0.0
    %3749 = vmatprep.subr.mxu0 0.0
    %3750 = vmatpush1.msra.mxu0 0.0
    %3751 = vmatprep.subr.mxu0 0.0
    %3752 = vmatpush1.msra.mxu0 0.0
    %3753 = vmatprep.subr.mxu0 0.0
    %3754 = vmatpush1.msra.mxu0 0.0
    %3755 = vmatprep.subr.mxu0 0.0
    %3756 = vmatpush1.msra.mxu0 0.0
    %3757 = vmatprep.subr.mxu0 0.0
    %3758 = vmatpush1.msra.mxu0 0.0
    %3759 = vmatprep.subr.mxu0 0.0
    %3760 = vmatpush1.msra.mxu0 0.0
    %3761 = vmatprep.subr.mxu0 0.0
    %3762 = vmatpush1.msra.mxu0 0.0
    %3763 = vmatprep.mubr.f32.mxu0 0.0
    %3764 = vmatmul.mubr.f32.gmra.mrb[0].mxu0 %v3697
    %v3765 = vpop.f32.mrb[0].mxu0
    %v3766 = vadd.f32 0.0, %v3765
    %v3767 = vpop.f32.mrb[0].mxu0
    %3768 = vdwg.mxu0
    %v3769 = vadd.f32 %v3691, %v3766
    %v3770 = vmax.f32 %v3769, 0.0
    %v3771 = vld [vmem:[%s9] sm:$0xff]
    %v3772 = vld [vmem:[%s9 + $0x8] sm:$0xff]
    %v3773 = vld [vmem:[%s9 + $0x10] sm:$0xff]
    %v3774 = vld [vmem:[%s9 + $0x18] sm:$0xff]
    %v3775 = vld [vmem:[%s9 + $0x20] sm:$0xff]
    %v3776 = vld [vmem:[%s9 + $0x28] sm:$0xff]
    %v3777 = vld [vmem:[%s9 + $0x30] sm:$0xff]
    %v3778 = vld [vmem:[%s9 + $0x38] sm:$0xff]
    %v3779 = vld [vmem:[%s9 + $0x40] sm:$0xff]
    %v3780 = vld [vmem:[%s9 + $0x48] sm:$0xff]
    %v3781 = vld [vmem:[%s9 + $0x50] sm:$0xff]
    %v3782 = vld [vmem:[%s9 + $0x58] sm:$0xff]
    %v3783 = vld [vmem:[%s9 + $0x60] sm:$0xff]
    %v3784 = vld [vmem:[%s9 + $0x68] sm:$0xff]
    %v3785 = vld [vmem:[%s9 + $0x70] sm:$0xff]
    %v3786 = vld [vmem:[%s9 + $0x78] sm:$0xff]
    %v3787 = vld [vmem:[%s9 + $0x80] sm:$0xff]
    %v3788 = vld [vmem:[%s9 + $0x88] sm:$0xff]
    %v3789 = vld [vmem:[%s9 + $0x90] sm:$0xff]
    %v3790 = vld [vmem:[%s9 + $0x98] sm:$0xff]
    %v3791 = vld [vmem:[%s9 + $0xa0] sm:$0xff]
    %v3792 = vld [vmem:[%s9 + $0xa8] sm:$0xff]
    %v3793 = vld [vmem:[%s9 + $0xb0] sm:$0xff]
    %v3794 = vld [vmem:[%s9 + $0xb8] sm:$0xff]
    %v3795 = vld [vmem:[%s9 + $0xc0] sm:$0xff]
    %v3796 = vld [vmem:[%s9 + $0xc8] sm:$0xff]
    %v3797 = vld [vmem:[%s9 + $0xd0] sm:$0xff]
    %v3798 = vld [vmem:[%s9 + $0xd8] sm:$0xff]
    %v3799 = vld [vmem:[%s9 + $0xe0] sm:$0xff]
    %v3800 = vld [vmem:[%s9 + $0xe8] sm:$0xff]
    %v3801 = vld [vmem:[%s9 + $0xf0] sm:$0xff]
    %v3802 = vld [vmem:[%s9 + $0xf8] sm:$0xff]
    %v3803 = vld [vmem:[%s10] sm:$0x3]
    %v3805 = vlaneseq
    %v3806 = vshrl.u32 %v3805, 7
    %v3807 = vsub.s32 0, %v3806
    %v3808 = vrot.slane %v3803, %v3807
    %v3809 = vlaneseq
    %v3810 = vshrl.u32 %v3809, 7
    %v3811 = vsub.s32 1, %v3810
    %v3812 = vrot.slane %v3803, %v3811
    %3815 = vmatprep.subr.mxu0 %v3772
    %3816 = vmatpush1.msra.mxu0 %v3771
    %3817 = vmatprep.subr.mxu0 %v3774
    %3818 = vmatpush1.msra.mxu0 %v3773
    %3819 = vmatprep.subr.mxu0 %v3776
    %3820 = vmatpush1.msra.mxu0 %v3775
    %3821 = vmatprep.subr.mxu0 %v3778
    %3822 = vmatpush1.msra.mxu0 %v3777
    %3823 = vmatprep.subr.mxu0 %v3780
    %3824 = vmatpush1.msra.mxu0 %v3779
    %3825 = vmatprep.subr.mxu0 %v3782
    %3826 = vmatpush1.msra.mxu0 %v3781
    %3827 = vmatprep.subr.mxu0 %v3784
    %3828 = vmatpush1.msra.mxu0 %v3783
    %3829 = vmatprep.subr.mxu0 %v3786
    %3830 = vmatpush1.msra.mxu0 %v3785
    %3831 = vmatprep.subr.mxu0 %v3788
    %3832 = vmatpush1.msra.mxu0 %v3787
    %3833 = vmatprep.subr.mxu0 %v3790
    %3834 = vmatpush1.msra.mxu0 %v3789
    %3835 = vmatprep.subr.mxu0 %v3792
    %3836 = vmatpush1.msra.mxu0 %v3791
    %3837 = vmatprep.subr.mxu0 %v3794
    %3838 = vmatpush1.msra.mxu0 %v3793
    %3839 = vmatprep.subr.mxu0 %v3796
    %3840 = vmatpush1.msra.mxu0 %v3795
    %3841 = vmatprep.subr.mxu0 %v3798
    %3842 = vmatpush1.msra.mxu0 %v3797
    %3843 = vmatprep.subr.mxu0 %v3800
    %3844 = vmatpush1.msra.mxu0 %v3799
    %3845 = vmatprep.subr.mxu0 %v3802
    %3846 = vmatpush1.msra.mxu0 %v3801
    %3847 = vmatprep.subr.mxu0 0.0
    %3848 = vmatpush1.msra.mxu0 0.0
    %3849 = vmatprep.subr.mxu0 0.0
    %3850 = vmatpush1.msra.mxu0 0.0
    %3851 = vmatprep.subr.mxu0 0.0
    %3852 = vmatpush1.msra.mxu0 0.0
    %3853 = vmatprep.subr.mxu0 0.0
    %3854 = vmatpush1.msra.mxu0 0.0
    %3855 = vmatprep.subr.mxu0 0.0
    %3856 = vmatpush1.msra.mxu0 0.0
    %3857 = vmatprep.subr.mxu0 0.0
    %3858 = vmatpush1.msra.mxu0 0.0
    %3859 = vmatprep.subr.mxu0 0.0
    %3860 = vmatpush1.msra.mxu0 0.0
    %3861 = vmatprep.subr.mxu0 0.0
    %3862 = vmatpush1.msra.mxu0 0.0
    %3863 = vmatprep.subr.mxu0 0.0
    %3864 = vmatpush1.msra.mxu0 0.0
    %3865 = vmatprep.subr.mxu0 0.0
    %3866 = vmatpush1.msra.mxu0 0.0
    %3867 = vmatprep.subr.mxu0 0.0
    %3868 = vmatpush1.msra.mxu0 0.0
    %3869 = vmatprep.subr.mxu0 0.0
    %3870 = vmatpush1.msra.mxu0 0.0
    %3871 = vmatprep.subr.mxu0 0.0
    %3872 = vmatpush1.msra.mxu0 0.0
    %3873 = vmatprep.subr.mxu0 0.0
    %3874 = vmatpush1.msra.mxu0 0.0
    %3875 = vmatprep.subr.mxu0 0.0
    %3876 = vmatpush1.msra.mxu0 0.0
    %3877 = vmatprep.subr.mxu0 0.0
    %3878 = vmatpush1.msra.mxu0 0.0
    %3879 = vmatprep.mubr.f32.mxu0 0.0
    %3880 = vmatmul.mubr.f32.gmra.mrb[0].mxu0 %v3770
    %v3881 = vpop.f32.mrb[0].mxu0
    %v3882 = vadd.f32 %v3808, %v3881
    %v3883 = vpop.f32.mrb[0].mxu0
    %v3884 = vadd.f32 %v3812, %v3883
    %3885 = vdwg.mxu0
    %v3886 = vld [vmem:[%s11] sm:$0xff]
    %v3887 = vld [vmem:[%s11 + $0x8] sm:$0xff]
    %v3888 = vld [vmem:[%s11 + $0x10] sm:$0xff]
    %v3889 = vld [vmem:[%s11 + $0x18] sm:$0xff]
    %v3890 = vld [vmem:[%s11 + $0x20] sm:$0xff]
    %v3891 = vld [vmem:[%s11 + $0x28] sm:$0xff]
    %v3892 = vld [vmem:[%s11 + $0x30] sm:$0xff]
    %v3893 = vld [vmem:[%s11 + $0x38] sm:$0xff]
    %v3894 = vld [vmem:[%s11 + $0x40] sm:$0xff]
    %v3895 = vld [vmem:[%s11 + $0x48] sm:$0xff]
    %v3896 = vld [vmem:[%s11 + $0x50] sm:$0xff]
    %v3897 = vld [vmem:[%s11 + $0x58] sm:$0xff]
    %v3898 = vld [vmem:[%s11 + $0x60] sm:$0xff]
    %v3899 = vld [vmem:[%s11 + $0x68] sm:$0xff]
    %v3900 = vld [vmem:[%s11 + $0x70] sm:$0xff]
    %v3901 = vld [vmem:[%s11 + $0x78] sm:$0xff]
    %v3902 = vld [vmem:[%s11 + $0x80] sm:$0xff]
    %v3903 = vld [vmem:[%s11 + $0x88] sm:$0xff]
    %v3904 = vld [vmem:[%s11 + $0x90] sm:$0xff]
    %v3905 = vld [vmem:[%s11 + $0x98] sm:$0xff]
    %v3906 = vld [vmem:[%s11 + $0xa0] sm:$0xff]
    %v3907 = vld [vmem:[%s11 + $0xa8] sm:$0xff]
    %v3908 = vld [vmem:[%s11 + $0xb0] sm:$0xff]
    %v3909 = vld [vmem:[%s11 + $0xb8] sm:$0xff]
    %v3910 = vld [vmem:[%s11 + $0xc0] sm:$0xff]
    %v3911 = vld [vmem:[%s11 + $0xc8] sm:$0xff]
    %v3912 = vld [vmem:[%s11 + $0xd0] sm:$0xff]
    %v3913 = vld [vmem:[%s11 + $0xd8] sm:$0xff]
    %v3914 = vld [vmem:[%s11 + $0xe0] sm:$0xff]
    %v3915 = vld [vmem:[%s11 + $0xe8] sm:$0xff]
    %v3916 = vld [vmem:[%s11 + $0xf0] sm:$0xff]
    %v3917 = vld [vmem:[%s11 + $0xf8] sm:$0xff]
    %v3918 = vld [vmem:[%s12] sm:$0x1]
    %v3920 = vlaneseq
    %v3921 = vshrl.u32 %v3920, 7
    %v3922 = vsub.s32 0, %v3921
    %v3923 = vrot.slane %v3918, %v3922
    %3925 = vmatprep.subr.mxu0 0.0
    %3926 = vmatpush1.msra.mxu0 %v3886
    %3927 = vmatprep.subr.mxu0 0.0
    %3928 = vmatpush1.msra.mxu0 %v3887
    %3929 = vmatprep.subr.mxu0 0.0
    %3930 = vmatpush1.msra.mxu0 %v3888
    %3931 = vmatprep.subr.mxu0 0.0
    %3932 = vmatpush1.msra.mxu0 %v3889
    %3933 = vmatprep.subr.mxu0 0.0
    %3934 = vmatpush1.msra.mxu0 %v3890
    %3935 = vmatprep.subr.mxu0 0.0
    %3936 = vmatpush1.msra.mxu0 %v3891
    %3937 = vmatprep.subr.mxu0 0.0
    %3938 = vmatpush1.msra.mxu0 %v3892
    %3939 = vmatprep.subr.mxu0 0.0
    %3940 = vmatpush1.msra.mxu0 %v3893
    %3941 = vmatprep.subr.mxu0 0.0
    %3942 = vmatpush1.msra.mxu0 %v3894
    %3943 = vmatprep.subr.mxu0 0.0
    %3944 = vmatpush1.msra.mxu0 %v3895
    %3945 = vmatprep.subr.mxu0 0.0
    %3946 = vmatpush1.msra.mxu0 %v3896
    %3947 = vmatprep.subr.mxu0 0.0
    %3948 = vmatpush1.msra.mxu0 %v3897
    %3949 = vmatprep.subr.mxu0 0.0
    %3950 = vmatpush1.msra.mxu0 %v3898
    %3951 = vmatprep.subr.mxu0 0.0
    %3952 = vmatpush1.msra.mxu0 %v3899
    %3953 = vmatprep.subr.mxu0 0.0
    %3954 = vmatpush1.msra.mxu0 %v3900
    %3955 = vmatprep.subr.mxu0 0.0
    %3956 = vmatpush1.msra.mxu0 %v3901
    %3957 = vmatprep.subr.mxu0 0.0
    %3958 = vmatpush1.msra.mxu0 %v3902
    %3959 = vmatprep.subr.mxu0 0.0
    %3960 = vmatpush1.msra.mxu0 %v3903
    %3961 = vmatprep.subr.mxu0 0.0
    %3962 = vmatpush1.msra.mxu0 %v3904
    %3963 = vmatprep.subr.mxu0 0.0
    %3964 = vmatpush1.msra.mxu0 %v3905
    %3965 = vmatprep.subr.mxu0 0.0
    %3966 = vmatpush1.msra.mxu0 %v3906
    %3967 = vmatprep.subr.mxu0 0.0
    %3968 = vmatpush1.msra.mxu0 %v3907
    %3969 = vmatprep.subr.mxu0 0.0
    %3970 = vmatpush1.msra.mxu0 %v3908
    %3971 = vmatprep.subr.mxu0 0.0
    %3972 = vmatpush1.msra.mxu0 %v3909
    %3973 = vmatprep.subr.mxu0 0.0
    %3974 = vmatpush1.msra.mxu0 %v3910
    %3975 = vmatprep.subr.mxu0 0.0
    %3976 = vmatpush1.msra.mxu0 %v3911
    %3977 = vmatprep.subr.mxu0 0.0
    %3978 = vmatpush1.msra.mxu0 %v3912
    %3979 = vmatprep.subr.mxu0 0.0
    %3980 = vmatpush1.msra.mxu0 %v3913
    %3981 = vmatprep.subr.mxu0 0.0
    %3982 = vmatpush1.msra.mxu0 %v3914
    %3983 = vmatprep.subr.mxu0 0.0
    %3984 = vmatpush1.msra.mxu0 %v3915
    %3985 = vmatprep.subr.mxu0 0.0
    %3986 = vmatpush1.msra.mxu0 %v3916
    %3987 = vmatprep.subr.mxu0 0.0
    %3988 = vmatpush1.msra.mxu0 %v3917
    %3989 = vmatprep.mubr.f32.mxu0 %v3884
    %3990 = vmatmul.mubr.f32.gmra.mrb[0].mxu0 %v3882
    %v3991 = vpop.f32.mrb[0].mxu0
    %v3992 = vadd.f32 %v3923, %v3991
    %v3993 = vpop.f32.mrb[0].mxu0
    %3994 = vdwg.mxu0
    %v3995 = vmul.f32 %v3992, 0.5
    %v3996 = vmul.f32 %v3995, 1.442695
    %v3997 = vpow.pop %v3996
    %v3998 = vld [vmem:[%s13] sm:$0x3]
    %4000 = vrot.lane.b32.xlu0 %v3998, 4
    %v4001 = vpop.permute.xlu0 %4000
    %v4003 = vmul.f32 %v3997, %v4001
    %4005 = vrot.lane.b32.xlu0 %v4003, 124
    %v4006 = vpop.permute.xlu0 %4005
    %v4008 = vadd.f32 %v3992, %v4006
    %vm4009 = vcmask 25600
    %4010 = vst.msk [vmem:[#allocation2] sm:$0x3] %vm4009, %v4008
    %v4011 = vadd.f32 %v3992, 1.0
    %v4012 = vmul.f32 %v3992, %v3992
    %4014 = vrot.lane.b32.xlu0 %v4012, 4
    %v4015 = vpop.permute.xlu0 %4014
    %v4017 = vsub.f32 %v4011, %v4015
    %v4018 = vmul.f32 %v3992, 1.442695
    %v4019 = vpow.pop %v4018
    %v4020 = vsub.f32 %v4017, %v4019
    %v4021 = vmul.f32 %v4020, -0.5
    %4023 = vrot.lane.b32.xlu0 %v4021, 124
    %v4024 = vpop.permute.xlu0 %4023
    %v4026 = vsel %vm4009, %v4024, 0.0
    %4027 = vadd.xlane.f32.xlu0 %v4026
    %v4028 = vpop.xlane.xlu0 %4027
    %v4029 = vrot.slane %v4028, 4
    %v4030 = vadd.f32 %v4028, %v4029
    %v4031 = vrot.slane %v4030, 2
    %v4032 = vadd.f32 %v4030, %v4031
    %v4033 = vrot.slane %v4032, 1
    %v4034 = vadd.f32 %v4032, %v4033
    %s4035 = vtos %v4034
    %v4036 = vstv %s4035
    %vm4037 = vcmask 0
    %4038 = vst.msk [vmem:[#allocation4] sm:$0x1] %vm4037, %v4036
    // Predicated region
    $region58: #{encoder_forward.3} parent=1 // pred_check
      _
    $region59: #{encoder_forward.3} parent=1 // pred_check_branch
      %4040 = sbr.rel (0) target = $region61
    $region60: #{encoder_forward.3} parent=1 // pred_region
      %s4042 = ssub.s32 32, 32
      %4043 = vsyncadd [#allocation3], %s4042
      %s4045 = sshll.u32 [#allocation2], 4
      %s4046 = int_to_ptr.vmem [resolvable:$true] %s4045
      %4048 = dma.vmem_to_hbm [thread:$0]  %s4046, 32, %s14, [#allocation3]
    $region61: #{encoder_forward.3} parent=1 // pred_fallthru
      _
    // Predicated region
    $region62: #{encoder_forward.3} parent=1 // pred_check
      _
    $region63: #{encoder_forward.3} parent=1 // pred_check_branch
      %4050 = sbr.rel (0) target = $region65
    $region64: #{encoder_forward.3} parent=1 // pred_region
      %s4052 = ssub.s32 16, 16
      %4053 = vsyncadd [#allocation5], %s4052
      %s4055 = sshll.u32 [#allocation4], 4
      %s4056 = int_to_ptr.vmem [resolvable:$true] %s4055
      %4058 = dma.vmem_to_hbm [thread:$0]  %s4056, 16, %s15, [#allocation5]
    $region65: #{encoder_forward.3} parent=1 // pred_fallthru
      _
    // Predicated region
    $region66: #{encoder_forward.3} parent=1 // pred_check
      _
    $region67: #{encoder_forward.3} parent=1 // pred_check_branch
      %4060 = sbr.rel (0) target = $region69
    $region68: #{encoder_forward.3} parent=1 // pred_region
      %4061 = dma.done [#allocation3], 32
    $region69: #{encoder_forward.3} parent=1 // pred_fallthru
      _
    // Predicated region
    $region70: #{encoder_forward.3} parent=1 // pred_check
      _
    $region71: #{encoder_forward.3} parent=1 // pred_check_branch
      %4063 = sbr.rel (0) target = $region73
    $region72: #{encoder_forward.3} parent=1 // pred_region
      %4064 = dma.done [#allocation5], 16
    $region73: #{encoder_forward.3} parent=1 // pred_fallthru
      _
    %4065 = vsyncpa [#allocation3], 1
    %4066 = vsyncpa [#allocation5], 1

</llo_original>
